<compile_context>
chip_gen: v7x
topology: tpu7x:2x2x1
jax: 0.10.0
libtpu: 0.0.40
codegen_flags: <defaults>
</compile_context>

<pallas_src>
import jax
import jax.numpy as jnp
from jax.experimental import pallas as pl
from jax.experimental.pallas import tpu as pltpu

_MXU_DTYPE = jnp.bfloat16   # matmul-operand dtype (v6e/v7x full-rate MXU path)


def _zero_border(xp_ref, H, W):
    """Zero only the 1-pixel border strips of the (H+2, W+2, C) f32 scratch."""
    C = xp_ref.shape[2]
    xp_ref[0:1, :, :] = jnp.zeros((1, W + 2, C), jnp.float32)
    xp_ref[H + 1:H + 2, :, :] = jnp.zeros((1, W + 2, C), jnp.float32)
    xp_ref[1:H + 1, 0:1, :] = jnp.zeros((H, 1, C), jnp.float32)
    xp_ref[1:H + 1, W + 1:W + 2, :] = jnp.zeros((H, 1, C), jnp.float32)


def conv_block_kernel(p1_ref, w1_ref, b1_ref, w2_ref, b2_ref, o_ref,
                      xp2_ref, slab2_ref):
    # p1_ref:    (1, H*W, 9*C1)  bf16   pre-im2col'd conv1 input patches
    # w1_ref:    (9*C1, C2)      bf16
    # w2_ref:    (9*C2, C2)      bf16
    # b*_ref:    (1, C2)         f32
    # o_ref:     (1, H/2, W/2, C2) f32
    # xp2_ref:   (H+2, W+2, C2)  f32   persistent padded conv2 input scratch
    # slab2_ref: (H*W, 9*C2)     bf16  conv2 im2col slab
    C2 = w1_ref.shape[1]
    Hh, Wh = o_ref.shape[1], o_ref.shape[2]
    H, W = 2 * Hh, 2 * Wh

    # ---- conv1 + ReLU: single (H*W, 27) x (27, C2) MXU matmul, f32 accum ----
    h1 = jnp.dot(p1_ref[0], w1_ref[...], preferred_element_type=jnp.float32)
    h1 = jnp.maximum(h1 + b1_ref[...], 0.0)                    # f32 VPU

    # ---- conv2 + ReLU: pad -> im2col slab -> one (H*W, 576) x (576, C2) ----
    _zero_border(xp2_ref, H, W)                 # border only; interior below
    xp2_ref[1:H + 1, 1:W + 1, :] = h1.reshape(H, W, C2)
    for dh in range(3):                         # 9 tap copies, then ONE matmul
        for dw in range(3):
            k = (dh * 3 + dw) * C2
            slab2_ref[:, k:k + C2] = (
                xp2_ref[dh:dh + H, dw:dw + W, :]
                .reshape(H * W, C2).astype(_MXU_DTYPE))
    h2 = jnp.dot(slab2_ref[...], w2_ref[...],
                 preferred_element_type=jnp.float32)
    h2 = jnp.maximum(h2 + b2_ref[...], 0.0)                    # (H*W, C2) f32

    # ---- 2x2 / stride-2 max pool via major-dim-only reshapes, one store ----
    wp = jnp.max(h2.reshape(H * W // 2, 2, C2), axis=1)        # pool over W
    hp = jnp.max(wp.reshape(Hh, 2, Wh, C2), axis=1)            # pool over H
    o_ref[0] = hp                                              # single store
    # TODO(synk): Dropout(0.25) is identity in eval mode; training-mode dropout
    # would need pltpu.prng_seed / pltpu.prng_random_bits masking.


def _im2col_3x3_same(x_nhwc):
    """(N, H, W, C) -> (N, H*W, 9*C) patches for a 3x3 / pad=1 / stride=1 conv.

    Wrapper-side layout plumbing on the tiny C=3 input (no FLOPs hoisted);
    column order is (dh, dw, c), matching the flattened HWIO weights.
    """
    N, H, W, C = x_nhwc.shape
    xp = jnp.pad(x_nhwc, ((0, 0), (1, 1), (1, 1), (0, 0)))
    taps = [xp[:, dh:dh + H, dw:dw + W, :] for dh in range(3) for dw in range(3)]
    return jnp.concatenate(taps, axis=-1).reshape(N, H * W, 9 * C)


def conv1_block(x_nchw, w1, b1, w2, b2):
    """PyTorch-compatible wrapper. x_nchw: (N, 3, H, W); w*: OIHW; b*: (Cout,)."""
    N, C1, H, W = x_nchw.shape
    C2 = w1.shape[0]
    Hh, Wh = H // 2, W // 2

    # Layout glue: NCHW -> NHWC, OIHW -> (9*Cin, Cout); matmul operands in bf16.
    x_nhwc = jnp.transpose(x_nchw, (0, 2, 3, 1)).astype(jnp.float32)
    p1 = _im2col_3x3_same(x_nhwc).astype(_MXU_DTYPE)            # (N, H*W, 27)
    w1k = jnp.transpose(w1, (2, 3, 1, 0)).reshape(9 * C1, C2).astype(_MXU_DTYPE)
    w2k = jnp.transpose(w2, (2, 3, 1, 0)).reshape(9 * C2, C2).astype(_MXU_DTYPE)
    b1k = b1.reshape(1, C2).astype(jnp.float32)
    b2k = b2.reshape(1, C2).astype(jnp.float32)

    out = pl.pallas_call(
        conv_block_kernel,
        out_shape=jax.ShapeDtypeStruct((N, Hh, Wh, C2), jnp.float32),
        grid_spec=pltpu.PrefetchScalarGridSpec(
            num_scalar_prefetch=0,
            grid=(N,),
            in_specs=[
                pl.BlockSpec((1, H * W, 9 * C1), lambda n: (n, 0, 0)),
                pl.BlockSpec((9 * C1, C2), lambda n: (0, 0)),
                pl.BlockSpec((1, C2), lambda n: (0, 0)),
                pl.BlockSpec((9 * C2, C2), lambda n: (0, 0)),
                pl.BlockSpec((1, C2), lambda n: (0, 0)),
            ],
            out_specs=pl.BlockSpec((1, Hh, Wh, C2), lambda n: (n, 0, 0, 0)),
            scratch_shapes=[
                pltpu.VMEM((H + 2, W + 2, C2), jnp.float32),     # padded h1
                pltpu.VMEM((H * W, 9 * C2), _MXU_DTYPE),         # conv2 im2col
            ],
        ),
        compiler_params=pltpu.CompilerParams(
            dimension_semantics=("parallel",)),
    )(p1, w1k, b1k, w2k, b2k)

    # Back to PyTorch NCHW.
    return jnp.transpose(out, (0, 3, 1, 2))


def ref_conv1_block(x, w1, b1, w2, b2):
    """Pure-JAX reference with the same precision policy (bf16 matmul operands,
    f32 accumulation / elementwise), in NCHW."""
    dn = ("NCHW", "OIHW", "NCHW")
    y = jax.lax.conv_general_dilated(
        x.astype(_MXU_DTYPE), w1.astype(_MXU_DTYPE), (1, 1), "SAME",
        dimension_numbers=dn, preferred_element_type=jnp.float32)
    y = jax.nn.relu(y + b1.reshape(1, -1, 1, 1))
    y = jax.lax.conv_general_dilated(
        y.astype(_MXU_DTYPE), w2.astype(_MXU_DTYPE), (1, 1), "SAME",
        dimension_numbers=dn, preferred_element_type=jnp.float32)
    y = jax.nn.relu(y + b2.reshape(1, -1, 1, 1))
    y = jax.lax.reduce_window(y, -jnp.inf, jax.lax.max,
                              (1, 1, 2, 2), (1, 1, 2, 2), "VALID")
    return y


if __name__ == "__main__":
    # Small, deterministic synthetic parameters / inputs.
    N, C1, H, W, C2 = 2, 3, 16, 16, 64
    key = jax.random.PRNGKey(0)
    k1, k2, k3, k4, k5 = jax.random.split(key, 5)

    x = jax.random.normal(k1, (N, C1, H, W), jnp.float32)
    w1 = jax.random.normal(k2, (C2, C1, 3, 3), jnp.float32) * 0.10
    b1 = jax.random.normal(k3, (C2,), jnp.float32) * 0.10
    w2 = jax.random.normal(k4, (C2, C2, 3, 3), jnp.float32) * 0.05
    b2 = jax.random.normal(k5, (C2,), jnp.float32) * 0.10

    out = jax.block_until_ready(conv1_block(x, w1, b1, w2, b2))
    assert out.shape == (N, C2, H // 2, W // 2), out.shape

    ref = ref_conv1_block(x, w1, b1, w2, b2)
    max_err = float(jnp.max(jnp.abs(out - ref)))
    assert max_err < 2e-3, max_err

    print("KERNEL_OK")
</pallas_src>

<mosaic_0001>
module attributes {stable_mosaic.version = 11 : i64} {
  func.func @conv_block_kernel(%arg0: i32, %arg1: memref<1x256x27xbf16, #tpu.memory_space<vmem>>, %arg2: memref<27x64xbf16, #tpu.memory_space<vmem>>, %arg3: memref<1x64xf32, #tpu.memory_space<vmem>>, %arg4: memref<576x64xbf16, #tpu.memory_space<vmem>>, %arg5: memref<1x64xf32, #tpu.memory_space<vmem>>, %arg6: memref<1x8x8x64xf32, #tpu.memory_space<vmem>>, %arg7: memref<18x18x64xf32, #tpu.memory_space<vmem>>, %arg8: memref<256x576xbf16, #tpu.memory_space<vmem>>) attributes {dimension_semantics = [#tpu.dimension_semantics<parallel>], iteration_bounds = array<i64: 2>, scalar_prefetch = 0 : i64, scratch_operands = 2 : i64, tpu.core_type = #tpu.core_type<tc>, window_params = [{transform_indices = @transform_0, window_bounds = array<i64: 1, 256, 27>}, {pipeline_mode = #tpu.pipeline_mode<synchronous>, transform_indices = @transform_1, window_bounds = array<i64: 27, 64>}, {pipeline_mode = #tpu.pipeline_mode<synchronous>, transform_indices = @transform_2, window_bounds = array<i64: 1, 64>}, {pipeline_mode = #tpu.pipeline_mode<synchronous>, transform_indices = @transform_3, window_bounds = array<i64: 576, 64>}, {pipeline_mode = #tpu.pipeline_mode<synchronous>, transform_indices = @transform_4, window_bounds = array<i64: 1, 64>}, {transform_indices = @transform_5, window_bounds = array<i64: 1, 8, 8, 64>}]} {
    %c0 = arith.constant 0 : index
    %c0_0 = arith.constant 0 : index
    %c0_1 = arith.constant 0 : index
    %0 = vector.load %arg1[%c0, %c0_0, %c0_1] : memref<1x256x27xbf16, #tpu.memory_space<vmem>>, vector<1x256x27xbf16>
    %1 = vector.shape_cast %0 : vector<1x256x27xbf16> to vector<256x27xbf16>
    %c0_2 = arith.constant 0 : index
    %c0_3 = arith.constant 0 : index
    %2 = vector.load %arg2[%c0_2, %c0_3] : memref<27x64xbf16, #tpu.memory_space<vmem>>, vector<27x64xbf16>
    %cst = arith.constant dense<0.000000e+00> : vector<256x64xf32>
    %3 = tpu.matmul %1, %2, %cst {dimension_numbers = #tpu.dot_dimension_numbers<[1], [0], [0], [1], [0, 0, 1, 1], [], []>} : vector<256x27xbf16>, vector<27x64xbf16>, vector<256x64xf32> -> vector<256x64xf32>
    %c0_4 = arith.constant 0 : index
    %c0_5 = arith.constant 0 : index
    %4 = vector.load %arg3[%c0_4, %c0_5] : memref<1x64xf32, #tpu.memory_space<vmem>>, vector<1x64xf32>
    %5 = vector.broadcast %4 : vector<1x64xf32> to vector<256x64xf32>
    %6 = arith.addf %3, %5 : vector<256x64xf32>
    %cst_6 = arith.constant 0.000000e+00 : f32
    %7 = vector.broadcast %cst_6 : f32 to vector<256x64xf32>
    %8 = arith.maximumf %6, %7 : vector<256x64xf32>
    %cst_7 = arith.constant 0.000000e+00 : f32
    %9 = vector.broadcast %cst_7 : f32 to vector<1x18x64xf32>
    %c0_8 = arith.constant 0 : index
    %c0_9 = arith.constant 0 : index
    %c0_10 = arith.constant 0 : index
    %10 = vector.load %arg7[%c0_8, %c0_9, %c0_10] : memref<18x18x64xf32, #tpu.memory_space<vmem>>, vector<1x18x64xf32>
    tpu.vector_store %arg7[%c0_8, %c0_9, %c0_10], %9 {strides = array<i32>} : memref<18x18x64xf32, #tpu.memory_space<vmem>>, vector<1x18x64xf32>,
    %cst_11 = arith.constant 0.000000e+00 : f32
    %11 = vector.broadcast %cst_11 : f32 to vector<1x18x64xf32>
    %c17 = arith.constant 17 : index
    %c0_12 = arith.constant 0 : index
    %c0_13 = arith.constant 0 : index
    %12 = vector.load %arg7[%c17, %c0_12, %c0_13] : memref<18x18x64xf32, #tpu.memory_space<vmem>>, vector<1x18x64xf32>
    tpu.vector_store %arg7[%c17, %c0_12, %c0_13], %11 {strides = array<i32>} : memref<18x18x64xf32, #tpu.memory_space<vmem>>, vector<1x18x64xf32>,
    %cst_14 = arith.constant 0.000000e+00 : f32
    %13 = vector.broadcast %cst_14 : f32 to vector<16x1x64xf32>
    %c1 = arith.constant 1 : index
    %c0_15 = arith.constant 0 : index
    %c0_16 = arith.constant 0 : index
    %14 = vector.load %arg7[%c1, %c0_15, %c0_16] : memref<18x18x64xf32, #tpu.memory_space<vmem>>, vector<16x1x64xf32>
    tpu.vector_store %arg7[%c1, %c0_15, %c0_16], %13 {strides = array<i32>} : memref<18x18x64xf32, #tpu.memory_space<vmem>>, vector<16x1x64xf32>,
    %cst_17 = arith.constant 0.000000e+00 : f32
    %15 = vector.broadcast %cst_17 : f32 to vector<16x1x64xf32>
    %c1_18 = arith.constant 1 : index
    %c17_19 = arith.constant 17 : index
    %c0_20 = arith.constant 0 : index
    %16 = vector.load %arg7[%c1_18, %c17_19, %c0_20] : memref<18x18x64xf32, #tpu.memory_space<vmem>>, vector<16x1x64xf32>
    tpu.vector_store %arg7[%c1_18, %c17_19, %c0_20], %15 {strides = array<i32>} : memref<18x18x64xf32, #tpu.memory_space<vmem>>, vector<16x1x64xf32>,
    %17 = vector.shape_cast %8 : vector<256x64xf32> to vector<16x16x64xf32>
    %c1_21 = arith.constant 1 : index
    %c1_22 = arith.constant 1 : index
    %c0_23 = arith.constant 0 : index
    %18 = vector.load %arg7[%c1_21, %c1_22, %c0_23] : memref<18x18x64xf32, #tpu.memory_space<vmem>>, vector<16x16x64xf32>
    tpu.vector_store %arg7[%c1_21, %c1_22, %c0_23], %17 {strides = array<i32>} : memref<18x18x64xf32, #tpu.memory_space<vmem>>, vector<16x16x64xf32>,
    %c0_24 = arith.constant 0 : index
    %c0_25 = arith.constant 0 : index
    %c0_26 = arith.constant 0 : index
    %19 = vector.load %arg7[%c0_24, %c0_25, %c0_26] : memref<18x18x64xf32, #tpu.memory_space<vmem>>, vector<16x16x64xf32>
    %20 = vector.shape_cast %19 : vector<16x16x64xf32> to vector<256x64xf32>
    %21 = arith.truncf %20 : vector<256x64xf32> to vector<256x64xbf16>
    %c0_27 = arith.constant 0 : index
    %c0_28 = arith.constant 0 : index
    %22 = vector.load %arg8[%c0_27, %c0_28] : memref<256x576xbf16, #tpu.memory_space<vmem>>, vector<256x64xbf16>
    tpu.vector_store %arg8[%c0_27, %c0_28], %21 {strides = array<i32>} : memref<256x576xbf16, #tpu.memory_space<vmem>>, vector<256x64xbf16>,
    %c0_29 = arith.constant 0 : index
    %c1_30 = arith.constant 1 : index
    %c0_31 = arith.constant 0 : index
    %23 = vector.load %arg7[%c0_29, %c1_30, %c0_31] : memref<18x18x64xf32, #tpu.memory_space<vmem>>, vector<16x16x64xf32>
    %24 = vector.shape_cast %23 : vector<16x16x64xf32> to vector<256x64xf32>
    %25 = arith.truncf %24 : vector<256x64xf32> to vector<256x64xbf16>
    %c0_32 = arith.constant 0 : index
    %c64 = arith.constant 64 : index
    %26 = vector.load %arg8[%c0_32, %c64] : memref<256x576xbf16, #tpu.memory_space<vmem>>, vector<256x64xbf16>
    tpu.vector_store %arg8[%c0_32, %c64], %25 {strides = array<i32>} : memref<256x576xbf16, #tpu.memory_space<vmem>>, vector<256x64xbf16>,
    %c0_33 = arith.constant 0 : index
    %c2 = arith.constant 2 : index
    %c0_34 = arith.constant 0 : index
    %27 = vector.load %arg7[%c0_33, %c2, %c0_34] : memref<18x18x64xf32, #tpu.memory_space<vmem>>, vector<16x16x64xf32>
    %28 = vector.shape_cast %27 : vector<16x16x64xf32> to vector<256x64xf32>
    %29 = arith.truncf %28 : vector<256x64xf32> to vector<256x64xbf16>
    %c0_35 = arith.constant 0 : index
    %c128 = arith.constant 128 : index
    %30 = vector.load %arg8[%c0_35, %c128] : memref<256x576xbf16, #tpu.memory_space<vmem>>, vector<256x64xbf16>
    tpu.vector_store %arg8[%c0_35, %c128], %29 {strides = array<i32>} : memref<256x576xbf16, #tpu.memory_space<vmem>>, vector<256x64xbf16>,
    %c1_36 = arith.constant 1 : index
    %c0_37 = arith.constant 0 : index
    %c0_38 = arith.constant 0 : index
    %31 = vector.load %arg7[%c1_36, %c0_37, %c0_38] : memref<18x18x64xf32, #tpu.memory_space<vmem>>, vector<16x16x64xf32>
    %32 = vector.shape_cast %31 : vector<16x16x64xf32> to vector<256x64xf32>
    %33 = arith.truncf %32 : vector<256x64xf32> to vector<256x64xbf16>
    %c0_39 = arith.constant 0 : index
    %c192 = arith.constant 192 : index
    %34 = vector.load %arg8[%c0_39, %c192] : memref<256x576xbf16, #tpu.memory_space<vmem>>, vector<256x64xbf16>
    tpu.vector_store %arg8[%c0_39, %c192], %33 {strides = array<i32>} : memref<256x576xbf16, #tpu.memory_space<vmem>>, vector<256x64xbf16>,
    %c1_40 = arith.constant 1 : index
    %c1_41 = arith.constant 1 : index
    %c0_42 = arith.constant 0 : index
    %35 = vector.load %arg7[%c1_40, %c1_41, %c0_42] : memref<18x18x64xf32, #tpu.memory_space<vmem>>, vector<16x16x64xf32>
    %36 = vector.shape_cast %35 : vector<16x16x64xf32> to vector<256x64xf32>
    %37 = arith.truncf %36 : vector<256x64xf32> to vector<256x64xbf16>
    %c0_43 = arith.constant 0 : index
    %c256 = arith.constant 256 : index
    %38 = vector.load %arg8[%c0_43, %c256] : memref<256x576xbf16, #tpu.memory_space<vmem>>, vector<256x64xbf16>
    tpu.vector_store %arg8[%c0_43, %c256], %37 {strides = array<i32>} : memref<256x576xbf16, #tpu.memory_space<vmem>>, vector<256x64xbf16>,
    %c1_44 = arith.constant 1 : index
    %c2_45 = arith.constant 2 : index
    %c0_46 = arith.constant 0 : index
    %39 = vector.load %arg7[%c1_44, %c2_45, %c0_46] : memref<18x18x64xf32, #tpu.memory_space<vmem>>, vector<16x16x64xf32>
    %40 = vector.shape_cast %39 : vector<16x16x64xf32> to vector<256x64xf32>
    %41 = arith.truncf %40 : vector<256x64xf32> to vector<256x64xbf16>
    %c0_47 = arith.constant 0 : index
    %c320 = arith.constant 320 : index
    %42 = vector.load %arg8[%c0_47, %c320] : memref<256x576xbf16, #tpu.memory_space<vmem>>, vector<256x64xbf16>
    tpu.vector_store %arg8[%c0_47, %c320], %41 {strides = array<i32>} : memref<256x576xbf16, #tpu.memory_space<vmem>>, vector<256x64xbf16>,
    %c2_48 = arith.constant 2 : index
    %c0_49 = arith.constant 0 : index
    %c0_50 = arith.constant 0 : index
    %43 = vector.load %arg7[%c2_48, %c0_49, %c0_50] : memref<18x18x64xf32, #tpu.memory_space<vmem>>, vector<16x16x64xf32>
    %44 = vector.shape_cast %43 : vector<16x16x64xf32> to vector<256x64xf32>
    %45 = arith.truncf %44 : vector<256x64xf32> to vector<256x64xbf16>
    %c0_51 = arith.constant 0 : index
    %c384 = arith.constant 384 : index
    %46 = vector.load %arg8[%c0_51, %c384] : memref<256x576xbf16, #tpu.memory_space<vmem>>, vector<256x64xbf16>
    tpu.vector_store %arg8[%c0_51, %c384], %45 {strides = array<i32>} : memref<256x576xbf16, #tpu.memory_space<vmem>>, vector<256x64xbf16>,
    %c2_52 = arith.constant 2 : index
    %c1_53 = arith.constant 1 : index
    %c0_54 = arith.constant 0 : index
    %47 = vector.load %arg7[%c2_52, %c1_53, %c0_54] : memref<18x18x64xf32, #tpu.memory_space<vmem>>, vector<16x16x64xf32>
    %48 = vector.shape_cast %47 : vector<16x16x64xf32> to vector<256x64xf32>
    %49 = arith.truncf %48 : vector<256x64xf32> to vector<256x64xbf16>
    %c0_55 = arith.constant 0 : index
    %c448 = arith.constant 448 : index
    %50 = vector.load %arg8[%c0_55, %c448] : memref<256x576xbf16, #tpu.memory_space<vmem>>, vector<256x64xbf16>
    tpu.vector_store %arg8[%c0_55, %c448], %49 {strides = array<i32>} : memref<256x576xbf16, #tpu.memory_space<vmem>>, vector<256x64xbf16>,
    %c2_56 = arith.constant 2 : index
    %c2_57 = arith.constant 2 : index
    %c0_58 = arith.constant 0 : index
    %51 = vector.load %arg7[%c2_56, %c2_57, %c0_58] : memref<18x18x64xf32, #tpu.memory_space<vmem>>, vector<16x16x64xf32>
    %52 = vector.shape_cast %51 : vector<16x16x64xf32> to vector<256x64xf32>
    %53 = arith.truncf %52 : vector<256x64xf32> to vector<256x64xbf16>
    %c0_59 = arith.constant 0 : index
    %c512 = arith.constant 512 : index
    %54 = vector.load %arg8[%c0_59, %c512] : memref<256x576xbf16, #tpu.memory_space<vmem>>, vector<256x64xbf16>
    tpu.vector_store %arg8[%c0_59, %c512], %53 {strides = array<i32>} : memref<256x576xbf16, #tpu.memory_space<vmem>>, vector<256x64xbf16>,
    %c0_60 = arith.constant 0 : index
    %c0_61 = arith.constant 0 : index
    %55 = vector.load %arg8[%c0_60, %c0_61] : memref<256x576xbf16, #tpu.memory_space<vmem>>, vector<256x576xbf16>
    %c0_62 = arith.constant 0 : index
    %c0_63 = arith.constant 0 : index
    %56 = vector.load %arg4[%c0_62, %c0_63] : memref<576x64xbf16, #tpu.memory_space<vmem>>, vector<576x64xbf16>
    %cst_64 = arith.constant dense<0.000000e+00> : vector<256x64xf32>
    %57 = tpu.matmul %55, %56, %cst_64 {dimension_numbers = #tpu.dot_dimension_numbers<[1], [0], [0], [1], [0, 0, 1, 1], [], []>} : vector<256x576xbf16>, vector<576x64xbf16>, vector<256x64xf32> -> vector<256x64xf32>
    %c0_65 = arith.constant 0 : index
    %c0_66 = arith.constant 0 : index
    %58 = vector.load %arg5[%c0_65, %c0_66] : memref<1x64xf32, #tpu.memory_space<vmem>>, vector<1x64xf32>
    %59 = vector.broadcast %58 : vector<1x64xf32> to vector<256x64xf32>
    %60 = arith.addf %57, %59 : vector<256x64xf32>
    %cst_67 = arith.constant 0.000000e+00 : f32
    %61 = vector.broadcast %cst_67 : f32 to vector<256x64xf32>
    %62 = arith.maximumf %60, %61 : vector<256x64xf32>
    %63 = vector.shape_cast %62 : vector<256x64xf32> to vector<128x2x64xf32>
    %cst_68 = arith.constant dense<0xFF800000> : vector<128x64xf32>
    %64 = vector.multi_reduction <maximumf>, %63, %cst_68 [1] : vector<128x2x64xf32> to vector<128x64xf32>
    %65 = vector.shape_cast %64 : vector<128x64xf32> to vector<8x2x8x64xf32>
    %cst_69 = arith.constant dense<0xFF800000> : vector<8x8x64xf32>
    %66 = vector.multi_reduction <maximumf>, %65, %cst_69 [1] : vector<8x2x8x64xf32> to vector<8x8x64xf32>
    %c0_70 = arith.constant 0 : index
    %c0_71 = arith.constant 0 : index
    %c0_72 = arith.constant 0 : index
    %c0_73 = arith.constant 0 : index
    %67 = vector.load %arg6[%c0_70, %c0_71, %c0_72, %c0_73] : memref<1x8x8x64xf32, #tpu.memory_space<vmem>>, vector<1x8x8x64xf32>
    %68 = vector.shape_cast %67 : vector<1x8x8x64xf32> to vector<8x8x64xf32>
    %69 = vector.shape_cast %66 : vector<8x8x64xf32> to vector<1x8x8x64xf32>
    tpu.vector_store %arg6[%c0_70, %c0_71, %c0_72, %c0_73], %69 {strides = array<i32>} : memref<1x8x8x64xf32, #tpu.memory_space<vmem>>, vector<1x8x8x64xf32>,
    return
  }
  func.func @transform_0(%arg0: i32) -> (i32, i32, i32) {
    %c0_i32 = arith.constant 0 : i32
    %c0_i32_0 = arith.constant 0 : i32
    %c0_i32_1 = arith.constant 0 : i32
    return %arg0, %c0_i32, %c0_i32_0 : i32, i32, i32
  }
  func.func @transform_1(%arg0: i32) -> (i32, i32) {
    %c0_i32 = arith.constant 0 : i32
    %c0_i32_0 = arith.constant 0 : i32
    %c0_i32_1 = arith.constant 0 : i32
    return %c0_i32, %c0_i32_0 : i32, i32
  }
  func.func @transform_2(%arg0: i32) -> (i32, i32) {
    %c0_i32 = arith.constant 0 : i32
    %c0_i32_0 = arith.constant 0 : i32
    %c0_i32_1 = arith.constant 0 : i32
    return %c0_i32, %c0_i32_0 : i32, i32
  }
  func.func @transform_3(%arg0: i32) -> (i32, i32) {
    %c0_i32 = arith.constant 0 : i32
    %c0_i32_0 = arith.constant 0 : i32
    %c0_i32_1 = arith.constant 0 : i32
    return %c0_i32, %c0_i32_0 : i32, i32
  }
  func.func @transform_4(%arg0: i32) -> (i32, i32) {
    %c0_i32 = arith.constant 0 : i32
    %c0_i32_0 = arith.constant 0 : i32
    %c0_i32_1 = arith.constant 0 : i32
    return %c0_i32, %c0_i32_0 : i32, i32
  }
  func.func @transform_5(%arg0: i32) -> (i32, i32, i32, i32) {
    %c0_i32 = arith.constant 0 : i32
    %c0_i32_0 = arith.constant 0 : i32
    %c0_i32_1 = arith.constant 0 : i32
    %c0_i32_2 = arith.constant 0 : i32
    return %arg0, %c0_i32, %c0_i32_0, %c0_i32_1 : i32, i32, i32, i32
  }
}

</mosaic_0001>

<llo_original>
// kernel: tpu_custom_call.1
$region0: #{tpu_custom_call.1}
  #allocation0 [shape = 'u32[]', space=smem, size = 0x4, offset = 0x4, fixed_abs, tag = 'smem constant byte address 0x4 - core index']
  #allocation1 [shape = 'u32[144,128]{1,0:T(1,128)}', space=vmem, size = 0x12000, scoped, tag = 'internal scratch']
  #allocation2 [shape = 'f32[18,18,64]{2,1,0:T(8,128)}', space=vmem, size = 0x36000, scoped, tag = 'scratch operand']
  #allocation3 [shape = 'bf16[256,576]{1,0:T(16,128)(2,1)}', space=vmem, size = 0x50000, scoped, tag = 'scratch operand']
  %s0 = inlined_call_operand.vmem [shape: bf16[2,256,27], index: 0, kind: input, shape index: {}]
  %s1 = inlined_call_operand.vmem [shape: bf16[27,64], index: 1, kind: input, shape index: {}]
  %s2 = inlined_call_operand.vmem [shape: f32[1,64], index: 2, kind: input, shape index: {}]
  %s3 = inlined_call_operand.vmem [shape: bf16[576,64], index: 3, kind: input, shape index: {}]
  %s4 = inlined_call_operand.vmem [shape: f32[1,64], index: 4, kind: input, shape index: {}]
  %s5 = inlined_call_operand.hbm [shape: f32[2,8,8,64], index: 5, kind: output, shape index: {}]
  %s6 = sld [smem:[#allocation0]]
  $region53: #{tpu_custom_call.1} parent=0
    _
  %s8 = ssub.s32 1, %s6
  %s9 = scalar_select 0, %s8, %s6
  $region1: #{tpu_custom_call.1} parent=0
    #allocation4 [shape = 'u8[65536]{0}', space=vmem, size = 0x10000, scoped, tag = 'output window, operand 0']
    #allocation5 [shape = 's32[2]{0}', space=sflag, size = 0x8, scoped, tag = 'scoped memory for tpu_custom_call.1']
    %10 = vsyncpa [#allocation5], 0
    %s11 = scalar_lea.sflag [#allocation5], 1
    %12 = vsyncpa %s11, 0
    loop: start=0, step=1, limit=4
    $region2: #{tpu_custom_call.1} parent=1 // loop_pre_header
      _
    $region3: #{tpu_custom_call.1} parent=1 // loop_header
      %s14 = sphi 0, %s18
      %p15 = scmp.ge.s32.totalorder %s14, 4
      %s24 = sphi 0, %s26
      %s27 = sphi 0, %s24
      %s28 = sphi 0, %s27
      %s44 = sphi 0, %s28
      %s48 = sphi 0, %s48
      %s50 = sphi 0, %s48
      %s51 = sphi 0, %s50
      %s65 = sphi 0, %s51
      %s69 = sphi 0, %s69
      %s71 = sphi 0, %s69
      %s72 = sphi 0, %s71
      %s86 = sphi 0, %s72
      %s90 = sphi 0, %s90
      %s92 = sphi 0, %s90
      %s93 = sphi 0, %s92
      %s107 = sphi 0, %s93
      %s111 = sphi 0, %s111
      %s113 = sphi 0, %s111
      %s114 = sphi 0, %s113
      %s128 = sphi 0, %s114
      %s134 = sphi 0, %s136
      %s137 = sphi 0, %s134
      %s138 = sphi 0, %s137
      %s154 = sphi 0, %s138
    $region4: #{tpu_custom_call.1} parent=1 // loop_header_branch
      %17 = sbr.rel (%p15) target = $region8
    $region5: #{tpu_custom_call.1} parent=1 // loop_body
      %s19 = ssub.s32 %s14, 1
      %s20 = ssub.s32 %s14, 2
      %s21 = sadd.s32 %s14, 1
      %s22 = ssub.s32 %s14, %s21
      %p23 = scmp.eq.s32.totalorder %s22, 0
      %s25 = sadd.s32 %s24, 1
      %s26 = scalar_select %p23, %s24, %s25
      %p29 = pneg %p23
      %p30 = scmp.eq.s32.totalorder %s14, 1
      %p31 = por %p29, %p30
      %p32 = scmp.ne.s32.totalorder %s24, %s27
      %p33 = scmp.eq.s32.totalorder %s14, 0
      %p34 = por %p32, %p33
      %p35 = scmp.ne.s32.totalorder %s24, %s27
      %p36 = scmp.eq.s32.totalorder %s19, 1
      %p37 = por %p35, %p36
      %p38 = scmp.ne.s32.totalorder %s27, %s28
      %p39 = scmp.eq.s32.totalorder %s19, 0
      %p40 = por %p38, %p39
      %p41 = scmp.ne.s32.totalorder %s27, %s28
      %p42 = scmp.eq.s32.totalorder %s20, 1
      %p43 = por %p41, %p42
      %p45 = scmp.ne.s32.totalorder %s28, %s44
      %p46 = scmp.eq.s32.totalorder %s20, 0
      %p47 = por %p45, %p46
      %s49 = sadd.s32 %s48, 1
      %p52 = scmp.eq.s32.totalorder %s14, 1
      %p53 = scmp.ne.s32.totalorder %s48, %s50
      %p54 = scmp.eq.s32.totalorder %s14, 0
      %p55 = por %p53, %p54
      %p56 = scmp.ne.s32.totalorder %s48, %s50
      %p57 = scmp.eq.s32.totalorder %s19, 1
      %p58 = por %p56, %p57
      %p59 = scmp.ne.s32.totalorder %s50, %s51
      %p60 = scmp.eq.s32.totalorder %s19, 0
      %p61 = por %p59, %p60
      %p62 = scmp.ne.s32.totalorder %s50, %s51
      %p63 = scmp.eq.s32.totalorder %s20, 1
      %p64 = por %p62, %p63
      %p66 = scmp.ne.s32.totalorder %s51, %s65
      %p67 = scmp.eq.s32.totalorder %s20, 0
      %p68 = por %p66, %p67
      %s70 = sadd.s32 %s69, 1
      %p73 = scmp.eq.s32.totalorder %s14, 1
      %p74 = scmp.ne.s32.totalorder %s69, %s71
      %p75 = scmp.eq.s32.totalorder %s14, 0
      %p76 = por %p74, %p75
      %p77 = scmp.ne.s32.totalorder %s69, %s71
      %p78 = scmp.eq.s32.totalorder %s19, 1
      %p79 = por %p77, %p78
      %p80 = scmp.ne.s32.totalorder %s71, %s72
      %p81 = scmp.eq.s32.totalorder %s19, 0
      %p82 = por %p80, %p81
      %p83 = scmp.ne.s32.totalorder %s71, %s72
      %p84 = scmp.eq.s32.totalorder %s20, 1
      %p85 = por %p83, %p84
      %p87 = scmp.ne.s32.totalorder %s72, %s86
      %p88 = scmp.eq.s32.totalorder %s20, 0
      %p89 = por %p87, %p88
      %s91 = sadd.s32 %s90, 1
      %p94 = scmp.eq.s32.totalorder %s14, 1
      %p95 = scmp.ne.s32.totalorder %s90, %s92
      %p96 = scmp.eq.s32.totalorder %s14, 0
      %p97 = por %p95, %p96
      %p98 = scmp.ne.s32.totalorder %s90, %s92
      %p99 = scmp.eq.s32.totalorder %s19, 1
      %p100 = por %p98, %p99
      %p101 = scmp.ne.s32.totalorder %s92, %s93
      %p102 = scmp.eq.s32.totalorder %s19, 0
      %p103 = por %p101, %p102
      %p104 = scmp.ne.s32.totalorder %s92, %s93
      %p105 = scmp.eq.s32.totalorder %s20, 1
      %p106 = por %p104, %p105
      %p108 = scmp.ne.s32.totalorder %s93, %s107
      %p109 = scmp.eq.s32.totalorder %s20, 0
      %p110 = por %p108, %p109
      %s112 = sadd.s32 %s111, 1
      %p115 = scmp.eq.s32.totalorder %s14, 1
      %p116 = scmp.ne.s32.totalorder %s111, %s113
      %p117 = scmp.eq.s32.totalorder %s14, 0
      %p118 = por %p116, %p117
      %p119 = scmp.ne.s32.totalorder %s111, %s113
      %p120 = scmp.eq.s32.totalorder %s19, 1
      %p121 = por %p119, %p120
      %p122 = scmp.ne.s32.totalorder %s113, %s114
      %p123 = scmp.eq.s32.totalorder %s19, 0
      %p124 = por %p122, %p123
      %p125 = scmp.ne.s32.totalorder %s113, %s114
      %p126 = scmp.eq.s32.totalorder %s20, 1
      %p127 = por %p125, %p126
      %p129 = scmp.ne.s32.totalorder %s114, %s128
      %p130 = scmp.eq.s32.totalorder %s20, 0
      %p131 = por %p129, %p130
      %s132 = ssub.s32 %s14, %s21
      %p133 = scmp.eq.s32.totalorder %s132, 0
      %s135 = sadd.s32 %s134, 1
      %s136 = scalar_select %p133, %s134, %s135
      %p139 = pneg %p133
      %p140 = scmp.eq.s32.totalorder %s14, 1
      %p141 = por %p139, %p140
      %p142 = scmp.ne.s32.totalorder %s134, %s137
      %p143 = scmp.eq.s32.totalorder %s14, 0
      %p144 = por %p142, %p143
      %p145 = scmp.ne.s32.totalorder %s134, %s137
      %p146 = scmp.eq.s32.totalorder %s19, 1
      %p147 = por %p145, %p146
      %p148 = scmp.ne.s32.totalorder %s137, %s138
      %p149 = scmp.eq.s32.totalorder %s19, 0
      %p150 = por %p148, %p149
      %p151 = scmp.ne.s32.totalorder %s137, %s138
      %p152 = scmp.eq.s32.totalorder %s20, 1
      %p153 = por %p151, %p152
      %p155 = scmp.ne.s32.totalorder %s138, %s154
      %p156 = scmp.eq.s32.totalorder %s20, 0
      %p157 = por %p155, %p156
      %p158 = scmp.le.s32.totalorder 1, %s14
      %p159 = scmp.lt.s32.totalorder %s14, 3
      %p160 = pnand %p158, %p159
      %p161 = pneg %p160
      // Predicated region
      $region9: #{tpu_custom_call.1} parent=5 // pred_check
        _
      $region10: #{tpu_custom_call.1} parent=5 // pred_check_branch
        %163 = sbr.rel (%p160) target = $region12
      $region11: #{tpu_custom_call.1} parent=5 // pred_region
        %s164 = ssub.s32 %s14, 1
        // Predicated region
        $region13: #{tpu_custom_call.1} parent=11 // pred_check
          %p165 = pneg %p61
        $region14: #{tpu_custom_call.1} parent=11 // pred_check_branch
          %167 = sbr.rel (%p165) target = $region16
        $region15: #{tpu_custom_call.1} parent=11 // pred_region
          _
        $region16: #{tpu_custom_call.1} parent=11 // pred_fallthru
          _
        // Predicated region
        $region17: #{tpu_custom_call.1} parent=11 // pred_check
          %p168 = pneg %p82
        $region18: #{tpu_custom_call.1} parent=11 // pred_check_branch
          %170 = sbr.rel (%p168) target = $region20
        $region19: #{tpu_custom_call.1} parent=11 // pred_region
          _
        $region20: #{tpu_custom_call.1} parent=11 // pred_fallthru
          _
        // Predicated region
        $region21: #{tpu_custom_call.1} parent=11 // pred_check
          %p171 = pneg %p103
        $region22: #{tpu_custom_call.1} parent=11 // pred_check_branch
          %173 = sbr.rel (%p171) target = $region24
        $region23: #{tpu_custom_call.1} parent=11 // pred_region
          _
        $region24: #{tpu_custom_call.1} parent=11 // pred_fallthru
          _
        // Predicated region
        $region25: #{tpu_custom_call.1} parent=11 // pred_check
          %p174 = pneg %p124
        $region26: #{tpu_custom_call.1} parent=11 // pred_check_branch
          %176 = sbr.rel (%p174) target = $region28
        $region27: #{tpu_custom_call.1} parent=11 // pred_region
          _
        $region28: #{tpu_custom_call.1} parent=11 // pred_fallthru
          _
      $region12: #{tpu_custom_call.1} parent=5 // pred_fallthru
        _
      %p177 = scmp.lt.s32.totalorder %s14, 2
      // Predicated region
      $region29: #{tpu_custom_call.1} parent=5 // pred_check
        %p178 = pneg %p177
      $region30: #{tpu_custom_call.1} parent=5 // pred_check_branch
        %180 = sbr.rel (%p178) target = $region32
      $region31: #{tpu_custom_call.1} parent=5 // pred_region
        // Predicated region
        $region33: #{tpu_custom_call.1} parent=31 // pred_check
          %p181 = pneg %p34
        $region34: #{tpu_custom_call.1} parent=31 // pred_check_branch
          %183 = sbr.rel (%p181) target = $region36
        $region35: #{tpu_custom_call.1} parent=31 // pred_region
          %p184 = scmp.lt.s32.totalorder %s14, 1
          %s185 = scalar_select %p184, %s14, 1
          %s186 = smul.addr %s185, 32
          %s187 = smul.addr %s186, 4
          %s188 = scalar_lea.vmem %s0, %s187
        $region36: #{tpu_custom_call.1} parent=31 // pred_fallthru
          _
      $region32: #{tpu_custom_call.1} parent=5 // pred_fallthru
        _
      %p189 = scmp.le.s32.totalorder 1, %s14
      %p190 = scmp.lt.s32.totalorder %s14, 3
      %p191 = pnand %p189, %p190
      %p192 = pneg %p191
      // Predicated region
      $region37: #{tpu_custom_call.1} parent=5 // pred_check
        _
      $region38: #{tpu_custom_call.1} parent=5 // pred_check_branch
        %194 = sbr.rel (%p191) target = $region40
      $region39: #{tpu_custom_call.1} parent=5 // pred_region
        %s195 = ssub.s32 %s14, 1
        %p196 = scmp.lt.s32.totalorder %s19, 1
        %s197 = scalar_select %p196, %s19, 1
        %s198 = smul.addr %s197, 32
        %s199 = smul.addr %s198, 4
        %s200 = scalar_lea.vmem %s0, %s199
        %p201 = pneg %p40
        %p202 = pneg %p37
        %p203 = pneg %p61
        %p204 = pneg %p58
        %p205 = pneg %p82
        %p206 = pneg %p79
        %p207 = pneg %p103
        %p208 = pneg %p100
        %p209 = pneg %p124
        %p210 = pneg %p121
        %p211 = pneg %p150
        %p212 = pneg %p147
        %s213 = sand.u32 %s137, 1
        %s214 = scalar_lea.sflag [#allocation5], %s213
        %s215 = sand.u32 %s137, 1
        %s216 = smul.addr %s215, 64
        %s217 = scalar_lea.vmem [#allocation4], %s216
        %p218 = scmp.lt.s32.totalorder %s19, 1
        %s219 = scalar_select %p218, %s19, 1
        %s220 = smul.addr %s219, 32
        %s221 = smul.addr %s220, 4
        %s222 = scalar_lea.vmem %s0, %s221
        %v224 = vld [vmem:[%s222] sm:$0xf]
        %v225 = vld [vmem:[%s222 + $0x4] sm:$0xf]
        %v226 = vld [vmem:[%s222 + $0x8] sm:$0xf]
        %v227 = vld [vmem:[%s222 + $0xc] sm:$0xf]
        %v228 = vld [vmem:[%s222 + $0x10] sm:$0xf]
        %v229 = vld [vmem:[%s222 + $0x14] sm:$0xf]
        %v230 = vld [vmem:[%s222 + $0x18] sm:$0xf]
        %v231 = vld [vmem:[%s222 + $0x1c] sm:$0xf]
        %v232 = vld [vmem:[%s222 + $0x20] sm:$0xf]
        %v233 = vld [vmem:[%s222 + $0x24] sm:$0xf]
        %v234 = vld [vmem:[%s222 + $0x28] sm:$0xf]
        %v235 = vld [vmem:[%s222 + $0x2c] sm:$0xf]
        %v236 = vld [vmem:[%s222 + $0x30] sm:$0xf]
        %v237 = vld [vmem:[%s222 + $0x34] sm:$0xf]
        %v238 = vld [vmem:[%s222 + $0x38] sm:$0xf]
        %v239 = vld [vmem:[%s222 + $0x3c] sm:$0xf]
        %v240 = vld [vmem:[%s222 + $0x40] sm:$0xf]
        %v241 = vld [vmem:[%s222 + $0x44] sm:$0xf]
        %v242 = vld [vmem:[%s222 + $0x48] sm:$0xf]
        %v243 = vld [vmem:[%s222 + $0x4c] sm:$0xf]
        %v244 = vld [vmem:[%s222 + $0x50] sm:$0xf]
        %v245 = vld [vmem:[%s222 + $0x54] sm:$0xf]
        %v246 = vld [vmem:[%s222 + $0x58] sm:$0xf]
        %v247 = vld [vmem:[%s222 + $0x5c] sm:$0xf]
        %v248 = vld [vmem:[%s222 + $0x60] sm:$0xf]
        %v249 = vld [vmem:[%s222 + $0x64] sm:$0xf]
        %v250 = vld [vmem:[%s222 + $0x68] sm:$0xf]
        %v251 = vld [vmem:[%s222 + $0x6c] sm:$0xf]
        %v252 = vld [vmem:[%s222 + $0x70] sm:$0xf]
        %v253 = vld [vmem:[%s222 + $0x74] sm:$0xf]
        %v254 = vld [vmem:[%s222 + $0x78] sm:$0xf]
        %v255 = vld [vmem:[%s222 + $0x7c] sm:$0xf]
        %v256 = vld [vmem:[%s1] sm:$0xf]
        %v257 = vld [vmem:[%s1 + $0x4] sm:$0xf]
        %v258 = vld [vmem:[%s1 + $0x8] sm:$0xf]
        %v259 = vld [vmem:[%s1 + $0xc] sm:$0x3]
        %v260 = vld [vmem:[%s2] sm:$0x1]
        %v262 = vlaneseq
        %v263 = vshrl.u32 %v262, 7
        %v264 = vsub.s32 0, %v263
        %v265 = vrot.slane %v260, %v264
        %v299 = vunpack.c.l.b16 %v224
        %v300 = vunpack.c.l.b16 %v225
        %v301 = vunpack.c.l.b16 %v226
        %v302 = vunpack.c.l.b16 %v227
        %v303 = vunpack.c.l.b16 %v228
        %v304 = vunpack.c.l.b16 %v229
        %v305 = vunpack.c.l.b16 %v230
        %v306 = vunpack.c.l.b16 %v231
        %v307 = vunpack.c.l.b16 %v232
        %v308 = vunpack.c.l.b16 %v233
        %v309 = vunpack.c.l.b16 %v234
        %v310 = vunpack.c.l.b16 %v235
        %v311 = vunpack.c.l.b16 %v236
        %v312 = vunpack.c.l.b16 %v237
        %v313 = vunpack.c.l.b16 %v238
        %v314 = vunpack.c.l.b16 %v239
        %v315 = vunpack.c.l.b16 %v240
        %v316 = vunpack.c.l.b16 %v241
        %v317 = vunpack.c.l.b16 %v242
        %v318 = vunpack.c.l.b16 %v243
        %v319 = vunpack.c.l.b16 %v244
        %v320 = vunpack.c.l.b16 %v245
        %v321 = vunpack.c.l.b16 %v246
        %v322 = vunpack.c.l.b16 %v247
        %v323 = vunpack.c.l.b16 %v248
        %v324 = vunpack.c.l.b16 %v249
        %v325 = vunpack.c.l.b16 %v250
        %v326 = vunpack.c.l.b16 %v251
        %v327 = vunpack.c.l.b16 %v252
        %v328 = vunpack.c.l.b16 %v253
        %v329 = vunpack.c.l.b16 %v254
        %v330 = vunpack.c.l.b16 %v255
        %v331 = vpack.c.b16 %v300, %v299
        %v332 = vpack.c.b16 %v302, %v301
        %v333 = vpack.c.b16 %v304, %v303
        %v334 = vpack.c.b16 %v306, %v305
        %v335 = vpack.c.b16 %v308, %v307
        %v336 = vpack.c.b16 %v310, %v309
        %v337 = vpack.c.b16 %v312, %v311
        %v338 = vpack.c.b16 %v314, %v313
        %v339 = vpack.c.b16 %v316, %v315
        %v340 = vpack.c.b16 %v318, %v317
        %v341 = vpack.c.b16 %v320, %v319
        %v342 = vpack.c.b16 %v322, %v321
        %v343 = vpack.c.b16 %v324, %v323
        %v344 = vpack.c.b16 %v326, %v325
        %v345 = vpack.c.b16 %v328, %v327
        %v346 = vpack.c.b16 %v330, %v329
        %v351 = vunpack.c.l.b16 %v256
        %v352 = vunpack.c.l.b16 %v257
        %v353 = vunpack.c.l.b16 %v258
        %v354 = vunpack.c.l.b16 %v259
        %v355 = vpack.c.b16 %v352, %v351
        %v356 = vpack.c.b16 %v354, %v353
        %vm358 = vcmask 220160
        %v360 = vsel %vm358, %v331, 0
        %v363 = vsel %vm358, %v332, 0
        %v366 = vsel %vm358, %v333, 0
        %v369 = vsel %vm358, %v334, 0
        %v372 = vsel %vm358, %v335, 0
        %v375 = vsel %vm358, %v336, 0
        %v378 = vsel %vm358, %v337, 0
        %v381 = vsel %vm358, %v338, 0
        %v384 = vsel %vm358, %v339, 0
        %v387 = vsel %vm358, %v340, 0
        %v390 = vsel %vm358, %v341, 0
        %v393 = vsel %vm358, %v342, 0
        %v396 = vsel %vm358, %v343, 0
        %v399 = vsel %vm358, %v344, 0
        %v402 = vsel %vm358, %v345, 0
        %v405 = vsel %vm358, %v346, 0
        %vm407 = vcmask 1044480
        %vm408 = vcmask 1045504
        %v409 = vsel %vm407, 4294967295, 65535
        %v410 = vsel %vm408, %v409, 0
        %v412 = vand.u32 %v356, %v410
        %414 = vmatprep.subr.bf16.mxu0 0
        %415 = vmatpush1.bf16.msra.mxu0 %v355
        %416 = vmatprep.subr.bf16.mxu0 0
        %417 = vmatpush1.bf16.msra.mxu0 %v412
        %418 = vmatprep.subr.bf16.mxu0 0
        %419 = vmatpush1.bf16.msra.mxu0 0
        %420 = vmatprep.subr.bf16.mxu0 0
        %421 = vmatpush1.bf16.msra.mxu0 0
        %422 = vmatprep.subr.bf16.mxu0 0
        %423 = vmatpush1.bf16.msra.mxu0 0
        %424 = vmatprep.subr.bf16.mxu0 0
        %425 = vmatpush1.bf16.msra.mxu0 0
        %426 = vmatprep.subr.bf16.mxu0 0
        %427 = vmatpush1.bf16.msra.mxu0 0
        %428 = vmatprep.subr.bf16.mxu0 0
        %429 = vmatpush1.bf16.msra.mxu0 0
        %430 = vmatprep.subr.bf16.mxu0 0
        %431 = vmatpush1.bf16.msra.mxu0 0
        %432 = vmatprep.subr.bf16.mxu0 0
        %433 = vmatpush1.bf16.msra.mxu0 0
        %434 = vmatprep.subr.bf16.mxu0 0
        %435 = vmatpush1.bf16.msra.mxu0 0
        %436 = vmatprep.subr.bf16.mxu0 0
        %437 = vmatpush1.bf16.msra.mxu0 0
        %438 = vmatprep.subr.bf16.mxu0 0
        %439 = vmatpush1.bf16.msra.mxu0 0
        %440 = vmatprep.subr.bf16.mxu0 0
        %441 = vmatpush1.bf16.msra.mxu0 0
        %442 = vmatprep.subr.bf16.mxu0 0
        %443 = vmatpush1.bf16.msra.mxu0 0
        %444 = vmatprep.subr.bf16.mxu0 0
        %445 = vmatpush1.bf16.msra.mxu0 0
        %446 = vmatprep.mubr.bf16.mxu0 0
        %447 = vmatmul.mubr.bf16.gmra.mrb[0].mxu0 %v360
        %v448 = vpop.f32.mrb[0].mxu0
        %v449 = vadd.f32 %v265, %v448
        %v450 = vpop.f32.mrb[0].mxu0
        %v451 = vpop.f32.mrb[0].mxu0
        %v452 = vadd.f32 %v265, %v451
        %v453 = vpop.f32.mrb[0].mxu0
        %454 = vmatprep.mubr.bf16.mxu0 0
        %455 = vmatmul.mubr.bf16.gmra.mrb[0].mxu0 %v363
        %v456 = vpop.f32.mrb[0].mxu0
        %v457 = vadd.f32 %v265, %v456
        %v458 = vpop.f32.mrb[0].mxu0
        %v459 = vpop.f32.mrb[0].mxu0
        %v460 = vadd.f32 %v265, %v459
        %v461 = vpop.f32.mrb[0].mxu0
        %462 = vmatprep.mubr.bf16.mxu0 0
        %463 = vmatmul.mubr.bf16.gmra.mrb[0].mxu0 %v366
        %v464 = vpop.f32.mrb[0].mxu0
        %v465 = vadd.f32 %v265, %v464
        %v466 = vpop.f32.mrb[0].mxu0
        %v467 = vpop.f32.mrb[0].mxu0
        %v468 = vadd.f32 %v265, %v467
        %v469 = vpop.f32.mrb[0].mxu0
        %470 = vmatprep.mubr.bf16.mxu0 0
        %471 = vmatmul.mubr.bf16.gmra.mrb[0].mxu0 %v369
        %v472 = vpop.f32.mrb[0].mxu0
        %v473 = vadd.f32 %v265, %v472
        %v474 = vpop.f32.mrb[0].mxu0
        %v475 = vpop.f32.mrb[0].mxu0
        %v476 = vadd.f32 %v265, %v475
        %v477 = vpop.f32.mrb[0].mxu0
        %478 = vmatprep.mubr.bf16.mxu0 0
        %479 = vmatmul.mubr.bf16.gmra.mrb[0].mxu0 %v372
        %v480 = vpop.f32.mrb[0].mxu0
        %v481 = vadd.f32 %v265, %v480
        %v482 = vpop.f32.mrb[0].mxu0
        %v483 = vpop.f32.mrb[0].mxu0
        %v484 = vadd.f32 %v265, %v483
        %v485 = vpop.f32.mrb[0].mxu0
        %486 = vmatprep.mubr.bf16.mxu0 0
        %487 = vmatmul.mubr.bf16.gmra.mrb[0].mxu0 %v375
        %v488 = vpop.f32.mrb[0].mxu0
        %v489 = vadd.f32 %v265, %v488
        %v490 = vpop.f32.mrb[0].mxu0
        %v491 = vpop.f32.mrb[0].mxu0
        %v492 = vadd.f32 %v265, %v491
        %v493 = vpop.f32.mrb[0].mxu0
        %494 = vmatprep.mubr.bf16.mxu0 0
        %495 = vmatmul.mubr.bf16.gmra.mrb[0].mxu0 %v378
        %v496 = vpop.f32.mrb[0].mxu0
        %v497 = vadd.f32 %v265, %v496
        %v498 = vpop.f32.mrb[0].mxu0
        %v499 = vpop.f32.mrb[0].mxu0
        %v500 = vadd.f32 %v265, %v499
        %v501 = vpop.f32.mrb[0].mxu0
        %502 = vmatprep.mubr.bf16.mxu0 0
        %503 = vmatmul.mubr.bf16.gmra.mrb[0].mxu0 %v381
        %v504 = vpop.f32.mrb[0].mxu0
        %v505 = vadd.f32 %v265, %v504
        %v506 = vpop.f32.mrb[0].mxu0
        %v507 = vpop.f32.mrb[0].mxu0
        %v508 = vadd.f32 %v265, %v507
        %v509 = vpop.f32.mrb[0].mxu0
        %510 = vmatprep.mubr.bf16.mxu0 0
        %511 = vmatmul.mubr.bf16.gmra.mrb[0].mxu0 %v384
        %v512 = vpop.f32.mrb[0].mxu0
        %v513 = vadd.f32 %v265, %v512
        %v514 = vpop.f32.mrb[0].mxu0
        %v515 = vpop.f32.mrb[0].mxu0
        %v516 = vadd.f32 %v265, %v515
        %v517 = vpop.f32.mrb[0].mxu0
        %518 = vmatprep.mubr.bf16.mxu0 0
        %519 = vmatmul.mubr.bf16.gmra.mrb[0].mxu0 %v387
        %v520 = vpop.f32.mrb[0].mxu0
        %v521 = vadd.f32 %v265, %v520
        %v522 = vpop.f32.mrb[0].mxu0
        %v523 = vpop.f32.mrb[0].mxu0
        %v524 = vadd.f32 %v265, %v523
        %v525 = vpop.f32.mrb[0].mxu0
        %526 = vmatprep.mubr.bf16.mxu0 0
        %527 = vmatmul.mubr.bf16.gmra.mrb[0].mxu0 %v390
        %v528 = vpop.f32.mrb[0].mxu0
        %v529 = vadd.f32 %v265, %v528
        %v530 = vpop.f32.mrb[0].mxu0
        %v531 = vpop.f32.mrb[0].mxu0
        %v532 = vadd.f32 %v265, %v531
        %v533 = vpop.f32.mrb[0].mxu0
        %534 = vmatprep.mubr.bf16.mxu0 0
        %535 = vmatmul.mubr.bf16.gmra.mrb[0].mxu0 %v393
        %v536 = vpop.f32.mrb[0].mxu0
        %v537 = vadd.f32 %v265, %v536
        %v538 = vpop.f32.mrb[0].mxu0
        %v539 = vpop.f32.mrb[0].mxu0
        %v540 = vadd.f32 %v265, %v539
        %v541 = vpop.f32.mrb[0].mxu0
        %542 = vmatprep.mubr.bf16.mxu0 0
        %543 = vmatmul.mubr.bf16.gmra.mrb[0].mxu0 %v396
        %v544 = vpop.f32.mrb[0].mxu0
        %v545 = vadd.f32 %v265, %v544
        %v546 = vpop.f32.mrb[0].mxu0
        %v547 = vpop.f32.mrb[0].mxu0
        %v548 = vadd.f32 %v265, %v547
        %v549 = vpop.f32.mrb[0].mxu0
        %550 = vmatprep.mubr.bf16.mxu0 0
        %551 = vmatmul.mubr.bf16.gmra.mrb[0].mxu0 %v399
        %v552 = vpop.f32.mrb[0].mxu0
        %v553 = vadd.f32 %v265, %v552
        %v554 = vpop.f32.mrb[0].mxu0
        %v555 = vpop.f32.mrb[0].mxu0
        %v556 = vadd.f32 %v265, %v555
        %v557 = vpop.f32.mrb[0].mxu0
        %558 = vmatprep.mubr.bf16.mxu0 0
        %559 = vmatmul.mubr.bf16.gmra.mrb[0].mxu0 %v402
        %v560 = vpop.f32.mrb[0].mxu0
        %v561 = vadd.f32 %v265, %v560
        %v562 = vpop.f32.mrb[0].mxu0
        %v563 = vpop.f32.mrb[0].mxu0
        %v564 = vadd.f32 %v265, %v563
        %v565 = vpop.f32.mrb[0].mxu0
        %566 = vmatprep.mubr.bf16.mxu0 0
        %567 = vmatmul.mubr.bf16.gmra.mrb[0].mxu0 %v405
        %v568 = vpop.f32.mrb[0].mxu0
        %v569 = vadd.f32 %v265, %v568
        %v570 = vpop.f32.mrb[0].mxu0
        %v571 = vpop.f32.mrb[0].mxu0
        %v572 = vadd.f32 %v265, %v571
        %v573 = vpop.f32.mrb[0].mxu0
        %574 = vdwg.mxu0
        %v575 = vmax.f32 %v449, 0.0
        %v576 = vmax.f32 %v452, 0.0
        %v577 = vmax.f32 %v457, 0.0
        %v578 = vmax.f32 %v460, 0.0
        %v579 = vmax.f32 %v465, 0.0
        %v580 = vmax.f32 %v468, 0.0
        %v581 = vmax.f32 %v473, 0.0
        %v582 = vmax.f32 %v476, 0.0
        %v583 = vmax.f32 %v481, 0.0
        %v584 = vmax.f32 %v484, 0.0
        %v585 = vmax.f32 %v489, 0.0
        %v586 = vmax.f32 %v492, 0.0
        %v587 = vmax.f32 %v497, 0.0
        %v588 = vmax.f32 %v500, 0.0
        %v589 = vmax.f32 %v505, 0.0
        %v590 = vmax.f32 %v508, 0.0
        %v591 = vmax.f32 %v513, 0.0
        %v592 = vmax.f32 %v516, 0.0
        %v593 = vmax.f32 %v521, 0.0
        %v594 = vmax.f32 %v524, 0.0
        %v595 = vmax.f32 %v529, 0.0
        %v596 = vmax.f32 %v532, 0.0
        %v597 = vmax.f32 %v537, 0.0
        %v598 = vmax.f32 %v540, 0.0
        %v599 = vmax.f32 %v545, 0.0
        %v600 = vmax.f32 %v548, 0.0
        %v601 = vmax.f32 %v553, 0.0
        %v602 = vmax.f32 %v556, 0.0
        %v603 = vmax.f32 %v561, 0.0
        %v604 = vmax.f32 %v564, 0.0
        %v605 = vmax.f32 %v569, 0.0
        %v606 = vmax.f32 %v572, 0.0
        %vm607 = vcmask 523264
        %608 = vst.msk [vmem:[#allocation2] sm:$0xff] %vm607, 0.0
        %609 = vst.msk [vmem:[#allocation2 + $0x8] sm:$0xff] %vm607, 0.0
        %vm610 = vcmask 517120
        %611 = vst.msk [vmem:[#allocation2 + $0x10] sm:$0x3] %vm610, 0.0
        %s612 = scalar_lea.vmem [#allocation2], 408
        %613 = vst.msk [vmem:[%s612] sm:$0xff] %vm607, 0.0
        %614 = vst.msk [vmem:[%s612 + $0x8] sm:$0xff] %vm607, 0.0
        %615 = vst.msk [vmem:[%s612 + $0x10] sm:$0x3] %vm610, 0.0
        %s616 = scalar_lea.vmem [#allocation2], 24
        %vm617 = vcmask 516096
        %618 = vst.msk [vmem:[%s616] sm:$0x1] %vm617, 0.0
        %619 = vst.msk [vmem:[%s616 + $0x18] sm:$0x1] %vm617, 0.0
        %620 = vst.msk [vmem:[%s616 + $0x30] sm:$0x1] %vm617, 0.0
        %621 = vst.msk [vmem:[%s616 + $0x48] sm:$0x1] %vm617, 0.0
        %622 = vst.msk [vmem:[%s616 + $0x60] sm:$0x1] %vm617, 0.0
        %623 = vst.msk [vmem:[%s616 + $0x78] sm:$0x1] %vm617, 0.0
        %624 = vst.msk [vmem:[%s616 + $0x90] sm:$0x1] %vm617, 0.0
        %625 = vst.msk [vmem:[%s616 + $0xa8] sm:$0x1] %vm617, 0.0
        %626 = vst.msk [vmem:[%s616 + $0xc0] sm:$0x1] %vm617, 0.0
        %627 = vst.msk [vmem:[%s616 + $0xd8] sm:$0x1] %vm617, 0.0
        %628 = vst.msk [vmem:[%s616 + $0xf0] sm:$0x1] %vm617, 0.0
        %629 = vst.msk [vmem:[%s616 + $0x108] sm:$0x1] %vm617, 0.0
        %630 = vst.msk [vmem:[%s616 + $0x120] sm:$0x1] %vm617, 0.0
        %631 = vst.msk [vmem:[%s616 + $0x138] sm:$0x1] %vm617, 0.0
        %632 = vst.msk [vmem:[%s616 + $0x150] sm:$0x1] %vm617, 0.0
        %633 = vst.msk [vmem:[%s616 + $0x168] sm:$0x1] %vm617, 0.0
        %634 = vst.msk [vmem:[%s616 + $0x11] sm:$0x1] %vm617, 0.0
        %635 = vst.msk [vmem:[%s616 + $0x29] sm:$0x1] %vm617, 0.0
        %636 = vst.msk [vmem:[%s616 + $0x41] sm:$0x1] %vm617, 0.0
        %637 = vst.msk [vmem:[%s616 + $0x59] sm:$0x1] %vm617, 0.0
        %638 = vst.msk [vmem:[%s616 + $0x71] sm:$0x1] %vm617, 0.0
        %639 = vst.msk [vmem:[%s616 + $0x89] sm:$0x1] %vm617, 0.0
        %640 = vst.msk [vmem:[%s616 + $0xa1] sm:$0x1] %vm617, 0.0
        %641 = vst.msk [vmem:[%s616 + $0xb9] sm:$0x1] %vm617, 0.0
        %642 = vst.msk [vmem:[%s616 + $0xd1] sm:$0x1] %vm617, 0.0
        %643 = vst.msk [vmem:[%s616 + $0xe9] sm:$0x1] %vm617, 0.0
        %644 = vst.msk [vmem:[%s616 + $0x101] sm:$0x1] %vm617, 0.0
        %645 = vst.msk [vmem:[%s616 + $0x119] sm:$0x1] %vm617, 0.0
        %646 = vst.msk [vmem:[%s616 + $0x131] sm:$0x1] %vm617, 0.0
        %647 = vst.msk [vmem:[%s616 + $0x149] sm:$0x1] %vm617, 0.0
        %648 = vst.msk [vmem:[%s616 + $0x161] sm:$0x1] %vm617, 0.0
        %649 = vst.msk [vmem:[%s616 + $0x179] sm:$0x1] %vm617, 0.0
        %650 = vst.msk [vmem:[%s616 + $0x1] sm:$0xff] %vm607, %v575
        %651 = vst.msk [vmem:[%s616 + $0x9] sm:$0xff] %vm607, %v576
        %652 = vst.msk [vmem:[%s616 + $0x19] sm:$0xff] %vm607, %v577
        %653 = vst.msk [vmem:[%s616 + $0x21] sm:$0xff] %vm607, %v578
        %654 = vst.msk [vmem:[%s616 + $0x31] sm:$0xff] %vm607, %v579
        %655 = vst.msk [vmem:[%s616 + $0x39] sm:$0xff] %vm607, %v580
        %656 = vst.msk [vmem:[%s616 + $0x49] sm:$0xff] %vm607, %v581
        %657 = vst.msk [vmem:[%s616 + $0x51] sm:$0xff] %vm607, %v582
        %658 = vst.msk [vmem:[%s616 + $0x61] sm:$0xff] %vm607, %v583
        %659 = vst.msk [vmem:[%s616 + $0x69] sm:$0xff] %vm607, %v584
        %660 = vst.msk [vmem:[%s616 + $0x79] sm:$0xff] %vm607, %v585
        %661 = vst.msk [vmem:[%s616 + $0x81] sm:$0xff] %vm607, %v586
        %662 = vst.msk [vmem:[%s616 + $0x91] sm:$0xff] %vm607, %v587
        %663 = vst.msk [vmem:[%s616 + $0x99] sm:$0xff] %vm607, %v588
        %664 = vst.msk [vmem:[%s616 + $0xa9] sm:$0xff] %vm607, %v589
        %665 = vst.msk [vmem:[%s616 + $0xb1] sm:$0xff] %vm607, %v590
        %666 = vst.msk [vmem:[%s616 + $0xc1] sm:$0xff] %vm607, %v591
        %667 = vst.msk [vmem:[%s616 + $0xc9] sm:$0xff] %vm607, %v592
        %668 = vst.msk [vmem:[%s616 + $0xd9] sm:$0xff] %vm607, %v593
        %669 = vst.msk [vmem:[%s616 + $0xe1] sm:$0xff] %vm607, %v594
        %670 = vst.msk [vmem:[%s616 + $0xf1] sm:$0xff] %vm607, %v595
        %671 = vst.msk [vmem:[%s616 + $0xf9] sm:$0xff] %vm607, %v596
        %672 = vst.msk [vmem:[%s616 + $0x109] sm:$0xff] %vm607, %v597
        %673 = vst.msk [vmem:[%s616 + $0x111] sm:$0xff] %vm607, %v598
        %674 = vst.msk [vmem:[%s616 + $0x121] sm:$0xff] %vm607, %v599
        %675 = vst.msk [vmem:[%s616 + $0x129] sm:$0xff] %vm607, %v600
        %676 = vst.msk [vmem:[%s616 + $0x139] sm:$0xff] %vm607, %v601
        %677 = vst.msk [vmem:[%s616 + $0x141] sm:$0xff] %vm607, %v602
        %678 = vst.msk [vmem:[%s616 + $0x151] sm:$0xff] %vm607, %v603
        %679 = vst.msk [vmem:[%s616 + $0x159] sm:$0xff] %vm607, %v604
        %680 = vst.msk [vmem:[%s616 + $0x169] sm:$0xff] %vm607, %v605
        %681 = vst.msk [vmem:[%s616 + $0x171] sm:$0xff] %vm607, %v606
        %v682 = vld [vmem:[#allocation2] sm:$0xff]
        %v683 = vld [vmem:[#allocation2 + $0x8] sm:$0xff]
        %v684 = vld [vmem:[#allocation2 + $0x18] sm:$0xff]
        %v685 = vld [vmem:[#allocation2 + $0x20] sm:$0xff]
        %v686 = vld [vmem:[#allocation2 + $0x30] sm:$0xff]
        %v687 = vld [vmem:[#allocation2 + $0x38] sm:$0xff]
        %v688 = vld [vmem:[#allocation2 + $0x48] sm:$0xff]
        %v689 = vld [vmem:[#allocation2 + $0x50] sm:$0xff]
        %v690 = vld [vmem:[#allocation2 + $0x60] sm:$0xff]
        %v691 = vld [vmem:[#allocation2 + $0x68] sm:$0xff]
        %v692 = vld [vmem:[#allocation2 + $0x78] sm:$0xff]
        %v693 = vld [vmem:[#allocation2 + $0x80] sm:$0xff]
        %v694 = vld [vmem:[#allocation2 + $0x90] sm:$0xff]
        %v695 = vld [vmem:[#allocation2 + $0x98] sm:$0xff]
        %v696 = vld [vmem:[#allocation2 + $0xa8] sm:$0xff]
        %v697 = vld [vmem:[#allocation2 + $0xb0] sm:$0xff]
        %v698 = vld [vmem:[#allocation2 + $0xc0] sm:$0xff]
        %v699 = vld [vmem:[#allocation2 + $0xc8] sm:$0xff]
        %v700 = vld [vmem:[#allocation2 + $0xd8] sm:$0xff]
        %v701 = vld [vmem:[#allocation2 + $0xe0] sm:$0xff]
        %v702 = vld [vmem:[#allocation2 + $0xf0] sm:$0xff]
        %v703 = vld [vmem:[#allocation2 + $0xf8] sm:$0xff]
        %v704 = vld [vmem:[#allocation2 + $0x108] sm:$0xff]
        %v705 = vld [vmem:[#allocation2 + $0x110] sm:$0xff]
        %v706 = vld [vmem:[#allocation2 + $0x120] sm:$0xff]
        %v707 = vld [vmem:[#allocation2 + $0x128] sm:$0xff]
        %v708 = vld [vmem:[#allocation2 + $0x138] sm:$0xff]
        %v709 = vld [vmem:[#allocation2 + $0x140] sm:$0xff]
        %v710 = vld [vmem:[#allocation2 + $0x150] sm:$0xff]
        %v711 = vld [vmem:[#allocation2 + $0x158] sm:$0xff]
        %v712 = vld [vmem:[#allocation2 + $0x168] sm:$0xff]
        %v713 = vld [vmem:[#allocation2 + $0x170] sm:$0xff]
        %v714 = vpack.c.bf16 %v683, %v682
        %v715 = vpack.c.bf16 %v685, %v684
        %v716 = vpack.c.bf16 %v687, %v686
        %v717 = vpack.c.bf16 %v689, %v688
        %v718 = vpack.c.bf16 %v691, %v690
        %v719 = vpack.c.bf16 %v693, %v692
        %v720 = vpack.c.bf16 %v695, %v694
        %v721 = vpack.c.bf16 %v697, %v696
        %v722 = vpack.c.bf16 %v699, %v698
        %v723 = vpack.c.bf16 %v701, %v700
        %v724 = vpack.c.bf16 %v703, %v702
        %v725 = vpack.c.bf16 %v705, %v704
        %v726 = vpack.c.bf16 %v707, %v706
        %v727 = vpack.c.bf16 %v709, %v708
        %v728 = vpack.c.bf16 %v711, %v710
        %v729 = vpack.c.bf16 %v713, %v712
        %730 = vst.msk [vmem:[#allocation3] sm:$0xff] %vm607, %v714
        %731 = vst.msk [vmem:[#allocation3 + $0x28] sm:$0xff] %vm607, %v715
        %732 = vst.msk [vmem:[#allocation3 + $0x50] sm:$0xff] %vm607, %v716
        %733 = vst.msk [vmem:[#allocation3 + $0x78] sm:$0xff] %vm607, %v717
        %734 = vst.msk [vmem:[#allocation3 + $0xa0] sm:$0xff] %vm607, %v718
        %735 = vst.msk [vmem:[#allocation3 + $0xc8] sm:$0xff] %vm607, %v719
        %736 = vst.msk [vmem:[#allocation3 + $0xf0] sm:$0xff] %vm607, %v720
        %737 = vst.msk [vmem:[#allocation3 + $0x118] sm:$0xff] %vm607, %v721
        %738 = vst.msk [vmem:[#allocation3 + $0x140] sm:$0xff] %vm607, %v722
        %739 = vst.msk [vmem:[#allocation3 + $0x168] sm:$0xff] %vm607, %v723
        %740 = vst.msk [vmem:[#allocation3 + $0x190] sm:$0xff] %vm607, %v724
        %741 = vst.msk [vmem:[#allocation3 + $0x1b8] sm:$0xff] %vm607, %v725
        %742 = vst.msk [vmem:[#allocation3 + $0x1e0] sm:$0xff] %vm607, %v726
        %743 = vst.msk [vmem:[#allocation3 + $0x208] sm:$0xff] %vm607, %v727
        %744 = vst.msk [vmem:[#allocation3 + $0x230] sm:$0xff] %vm607, %v728
        %745 = vst.msk [vmem:[#allocation3 + $0x258] sm:$0xff] %vm607, %v729
        %v746 = vld [vmem:[#allocation2 + $0x1] sm:$0xff]
        %v747 = vld [vmem:[#allocation2 + $0x9] sm:$0xff]
        %v748 = vld [vmem:[#allocation2 + $0x19] sm:$0xff]
        %v749 = vld [vmem:[#allocation2 + $0x21] sm:$0xff]
        %v750 = vld [vmem:[#allocation2 + $0x31] sm:$0xff]
        %v751 = vld [vmem:[#allocation2 + $0x39] sm:$0xff]
        %v752 = vld [vmem:[#allocation2 + $0x49] sm:$0xff]
        %v753 = vld [vmem:[#allocation2 + $0x51] sm:$0xff]
        %v754 = vld [vmem:[#allocation2 + $0x61] sm:$0xff]
        %v755 = vld [vmem:[#allocation2 + $0x69] sm:$0xff]
        %v756 = vld [vmem:[#allocation2 + $0x79] sm:$0xff]
        %v757 = vld [vmem:[#allocation2 + $0x81] sm:$0xff]
        %v758 = vld [vmem:[#allocation2 + $0x91] sm:$0xff]
        %v759 = vld [vmem:[#allocation2 + $0x99] sm:$0xff]
        %v760 = vld [vmem:[#allocation2 + $0xa9] sm:$0xff]
        %v761 = vld [vmem:[#allocation2 + $0xb1] sm:$0xff]
        %v762 = vld [vmem:[#allocation2 + $0xc1] sm:$0xff]
        %v763 = vld [vmem:[#allocation2 + $0xc9] sm:$0xff]
        %v764 = vld [vmem:[#allocation2 + $0xd9] sm:$0xff]
        %v765 = vld [vmem:[#allocation2 + $0xe1] sm:$0xff]
        %v766 = vld [vmem:[#allocation2 + $0xf1] sm:$0xff]
        %v767 = vld [vmem:[#allocation2 + $0xf9] sm:$0xff]
        %v768 = vld [vmem:[#allocation2 + $0x109] sm:$0xff]
        %v769 = vld [vmem:[#allocation2 + $0x111] sm:$0xff]
        %v770 = vld [vmem:[#allocation2 + $0x121] sm:$0xff]
        %v771 = vld [vmem:[#allocation2 + $0x129] sm:$0xff]
        %v772 = vld [vmem:[#allocation2 + $0x139] sm:$0xff]
        %v773 = vld [vmem:[#allocation2 + $0x141] sm:$0xff]
        %v774 = vld [vmem:[#allocation2 + $0x151] sm:$0xff]
        %v775 = vld [vmem:[#allocation2 + $0x159] sm:$0xff]
        %v776 = vld [vmem:[#allocation2 + $0x169] sm:$0xff]
        %v777 = vld [vmem:[#allocation2 + $0x171] sm:$0xff]
        %v778 = vpack.c.bf16 %v747, %v746
        %v779 = vpack.c.bf16 %v749, %v748
        %v780 = vpack.c.bf16 %v751, %v750
        %v781 = vpack.c.bf16 %v753, %v752
        %v782 = vpack.c.bf16 %v755, %v754
        %v783 = vpack.c.bf16 %v757, %v756
        %v784 = vpack.c.bf16 %v759, %v758
        %v785 = vpack.c.bf16 %v761, %v760
        %v786 = vpack.c.bf16 %v763, %v762
        %v787 = vpack.c.bf16 %v765, %v764
        %v788 = vpack.c.bf16 %v767, %v766
        %v789 = vpack.c.bf16 %v769, %v768
        %v790 = vpack.c.bf16 %v771, %v770
        %v791 = vpack.c.bf16 %v773, %v772
        %v792 = vpack.c.bf16 %v775, %v774
        %v793 = vpack.c.bf16 %v777, %v776
        %810 = vrot.lane.b32.xlu0 %v778, 64
        %v811 = vpop.permute.xlu0 %810
        %812 = vrot.lane.b32.xlu0 %v779, 64
        %v813 = vpop.permute.xlu0 %812
        %814 = vrot.lane.b32.xlu0 %v780, 64
        %v815 = vpop.permute.xlu0 %814
        %816 = vrot.lane.b32.xlu0 %v781, 64
        %v817 = vpop.permute.xlu0 %816
        %818 = vrot.lane.b32.xlu0 %v782, 64
        %v819 = vpop.permute.xlu0 %818
        %820 = vrot.lane.b32.xlu0 %v783, 64
        %v821 = vpop.permute.xlu0 %820
        %822 = vrot.lane.b32.xlu0 %v784, 64
        %v823 = vpop.permute.xlu0 %822
        %824 = vrot.lane.b32.xlu0 %v785, 64
        %v825 = vpop.permute.xlu0 %824
        %826 = vrot.lane.b32.xlu0 %v786, 64
        %v827 = vpop.permute.xlu0 %826
        %828 = vrot.lane.b32.xlu0 %v787, 64
        %v829 = vpop.permute.xlu0 %828
        %830 = vrot.lane.b32.xlu0 %v788, 64
        %v831 = vpop.permute.xlu0 %830
        %832 = vrot.lane.b32.xlu0 %v789, 64
        %v833 = vpop.permute.xlu0 %832
        %834 = vrot.lane.b32.xlu0 %v790, 64
        %v835 = vpop.permute.xlu0 %834
        %836 = vrot.lane.b32.xlu0 %v791, 64
        %v837 = vpop.permute.xlu0 %836
        %838 = vrot.lane.b32.xlu0 %v792, 64
        %v839 = vpop.permute.xlu0 %838
        %840 = vrot.lane.b32.xlu0 %v793, 64
        %v841 = vpop.permute.xlu0 %840
        %vm858 = vcmask 1048064
        %859 = vst.msk [vmem:[#allocation3] sm:$0xff] %vm858, %v811
        %860 = vst.msk [vmem:[#allocation3 + $0x28] sm:$0xff] %vm858, %v813
        %861 = vst.msk [vmem:[#allocation3 + $0x50] sm:$0xff] %vm858, %v815
        %862 = vst.msk [vmem:[#allocation3 + $0x78] sm:$0xff] %vm858, %v817
        %863 = vst.msk [vmem:[#allocation3 + $0xa0] sm:$0xff] %vm858, %v819
        %864 = vst.msk [vmem:[#allocation3 + $0xc8] sm:$0xff] %vm858, %v821
        %865 = vst.msk [vmem:[#allocation3 + $0xf0] sm:$0xff] %vm858, %v823
        %866 = vst.msk [vmem:[#allocation3 + $0x118] sm:$0xff] %vm858, %v825
        %867 = vst.msk [vmem:[#allocation3 + $0x140] sm:$0xff] %vm858, %v827
        %868 = vst.msk [vmem:[#allocation3 + $0x168] sm:$0xff] %vm858, %v829
        %869 = vst.msk [vmem:[#allocation3 + $0x190] sm:$0xff] %vm858, %v831
        %870 = vst.msk [vmem:[#allocation3 + $0x1b8] sm:$0xff] %vm858, %v833
        %871 = vst.msk [vmem:[#allocation3 + $0x1e0] sm:$0xff] %vm858, %v835
        %872 = vst.msk [vmem:[#allocation3 + $0x208] sm:$0xff] %vm858, %v837
        %873 = vst.msk [vmem:[#allocation3 + $0x230] sm:$0xff] %vm858, %v839
        %874 = vst.msk [vmem:[#allocation3 + $0x258] sm:$0xff] %vm858, %v841
        %v875 = vld [vmem:[#allocation2 + $0x2] sm:$0xff]
        %v876 = vld [vmem:[#allocation2 + $0xa] sm:$0xff]
        %v877 = vld [vmem:[#allocation2 + $0x1a] sm:$0xff]
        %v878 = vld [vmem:[#allocation2 + $0x22] sm:$0xff]
        %v879 = vld [vmem:[#allocation2 + $0x32] sm:$0xff]
        %v880 = vld [vmem:[#allocation2 + $0x3a] sm:$0xff]
        %v881 = vld [vmem:[#allocation2 + $0x4a] sm:$0xff]
        %v882 = vld [vmem:[#allocation2 + $0x52] sm:$0xff]
        %v883 = vld [vmem:[#allocation2 + $0x62] sm:$0xff]
        %v884 = vld [vmem:[#allocation2 + $0x6a] sm:$0xff]
        %v885 = vld [vmem:[#allocation2 + $0x7a] sm:$0xff]
        %v886 = vld [vmem:[#allocation2 + $0x82] sm:$0xff]
        %v887 = vld [vmem:[#allocation2 + $0x92] sm:$0xff]
        %v888 = vld [vmem:[#allocation2 + $0x9a] sm:$0xff]
        %v889 = vld [vmem:[#allocation2 + $0xaa] sm:$0xff]
        %v890 = vld [vmem:[#allocation2 + $0xb2] sm:$0xff]
        %v891 = vld [vmem:[#allocation2 + $0xc2] sm:$0xff]
        %v892 = vld [vmem:[#allocation2 + $0xca] sm:$0xff]
        %v893 = vld [vmem:[#allocation2 + $0xda] sm:$0xff]
        %v894 = vld [vmem:[#allocation2 + $0xe2] sm:$0xff]
        %v895 = vld [vmem:[#allocation2 + $0xf2] sm:$0xff]
        %v896 = vld [vmem:[#allocation2 + $0xfa] sm:$0xff]
        %v897 = vld [vmem:[#allocation2 + $0x10a] sm:$0xff]
        %v898 = vld [vmem:[#allocation2 + $0x112] sm:$0xff]
        %v899 = vld [vmem:[#allocation2 + $0x122] sm:$0xff]
        %v900 = vld [vmem:[#allocation2 + $0x12a] sm:$0xff]
        %v901 = vld [vmem:[#allocation2 + $0x13a] sm:$0xff]
        %v902 = vld [vmem:[#allocation2 + $0x142] sm:$0xff]
        %v903 = vld [vmem:[#allocation2 + $0x152] sm:$0xff]
        %v904 = vld [vmem:[#allocation2 + $0x15a] sm:$0xff]
        %v905 = vld [vmem:[#allocation2 + $0x16a] sm:$0xff]
        %v906 = vld [vmem:[#allocation2 + $0x172] sm:$0xff]
        %v907 = vpack.c.bf16 %v876, %v875
        %v908 = vpack.c.bf16 %v878, %v877
        %v909 = vpack.c.bf16 %v880, %v879
        %v910 = vpack.c.bf16 %v882, %v881
        %v911 = vpack.c.bf16 %v884, %v883
        %v912 = vpack.c.bf16 %v886, %v885
        %v913 = vpack.c.bf16 %v888, %v887
        %v914 = vpack.c.bf16 %v890, %v889
        %v915 = vpack.c.bf16 %v892, %v891
        %v916 = vpack.c.bf16 %v894, %v893
        %v917 = vpack.c.bf16 %v896, %v895
        %v918 = vpack.c.bf16 %v898, %v897
        %v919 = vpack.c.bf16 %v900, %v899
        %v920 = vpack.c.bf16 %v902, %v901
        %v921 = vpack.c.bf16 %v904, %v903
        %v922 = vpack.c.bf16 %v906, %v905
        %923 = vst.msk [vmem:[#allocation3 + $0x8] sm:$0xff] %vm607, %v907
        %924 = vst.msk [vmem:[#allocation3 + $0x30] sm:$0xff] %vm607, %v908
        %925 = vst.msk [vmem:[#allocation3 + $0x58] sm:$0xff] %vm607, %v909
        %926 = vst.msk [vmem:[#allocation3 + $0x80] sm:$0xff] %vm607, %v910
        %927 = vst.msk [vmem:[#allocation3 + $0xa8] sm:$0xff] %vm607, %v911
        %928 = vst.msk [vmem:[#allocation3 + $0xd0] sm:$0xff] %vm607, %v912
        %929 = vst.msk [vmem:[#allocation3 + $0xf8] sm:$0xff] %vm607, %v913
        %930 = vst.msk [vmem:[#allocation3 + $0x120] sm:$0xff] %vm607, %v914
        %931 = vst.msk [vmem:[#allocation3 + $0x148] sm:$0xff] %vm607, %v915
        %932 = vst.msk [vmem:[#allocation3 + $0x170] sm:$0xff] %vm607, %v916
        %933 = vst.msk [vmem:[#allocation3 + $0x198] sm:$0xff] %vm607, %v917
        %934 = vst.msk [vmem:[#allocation3 + $0x1c0] sm:$0xff] %vm607, %v918
        %935 = vst.msk [vmem:[#allocation3 + $0x1e8] sm:$0xff] %vm607, %v919
        %936 = vst.msk [vmem:[#allocation3 + $0x210] sm:$0xff] %vm607, %v920
        %937 = vst.msk [vmem:[#allocation3 + $0x238] sm:$0xff] %vm607, %v921
        %938 = vst.msk [vmem:[#allocation3 + $0x260] sm:$0xff] %vm607, %v922
        %v939 = vld [vmem:[%s616] sm:$0xff]
        %v940 = vld [vmem:[%s616 + $0x8] sm:$0xff]
        %v941 = vld [vmem:[%s616 + $0x18] sm:$0xff]
        %v942 = vld [vmem:[%s616 + $0x20] sm:$0xff]
        %v943 = vld [vmem:[%s616 + $0x30] sm:$0xff]
        %v944 = vld [vmem:[%s616 + $0x38] sm:$0xff]
        %v945 = vld [vmem:[%s616 + $0x48] sm:$0xff]
        %v946 = vld [vmem:[%s616 + $0x50] sm:$0xff]
        %v947 = vld [vmem:[%s616 + $0x60] sm:$0xff]
        %v948 = vld [vmem:[%s616 + $0x68] sm:$0xff]
        %v949 = vld [vmem:[%s616 + $0x78] sm:$0xff]
        %v950 = vld [vmem:[%s616 + $0x80] sm:$0xff]
        %v951 = vld [vmem:[%s616 + $0x90] sm:$0xff]
        %v952 = vld [vmem:[%s616 + $0x98] sm:$0xff]
        %v953 = vld [vmem:[%s616 + $0xa8] sm:$0xff]
        %v954 = vld [vmem:[%s616 + $0xb0] sm:$0xff]
        %v955 = vld [vmem:[%s616 + $0xc0] sm:$0xff]
        %v956 = vld [vmem:[%s616 + $0xc8] sm:$0xff]
        %v957 = vld [vmem:[%s616 + $0xd8] sm:$0xff]
        %v958 = vld [vmem:[%s616 + $0xe0] sm:$0xff]
        %v959 = vld [vmem:[%s616 + $0xf0] sm:$0xff]
        %v960 = vld [vmem:[%s616 + $0xf8] sm:$0xff]
        %v961 = vld [vmem:[%s616 + $0x108] sm:$0xff]
        %v962 = vld [vmem:[%s616 + $0x110] sm:$0xff]
        %v963 = vld [vmem:[%s616 + $0x120] sm:$0xff]
        %v964 = vld [vmem:[%s616 + $0x128] sm:$0xff]
        %v965 = vld [vmem:[%s616 + $0x138] sm:$0xff]
        %v966 = vld [vmem:[%s616 + $0x140] sm:$0xff]
        %v967 = vld [vmem:[%s616 + $0x150] sm:$0xff]
        %v968 = vld [vmem:[%s616 + $0x158] sm:$0xff]
        %v969 = vld [vmem:[%s616 + $0x168] sm:$0xff]
        %v970 = vld [vmem:[%s616 + $0x170] sm:$0xff]
        %v971 = vpack.c.bf16 %v940, %v939
        %v972 = vpack.c.bf16 %v942, %v941
        %v973 = vpack.c.bf16 %v944, %v943
        %v974 = vpack.c.bf16 %v946, %v945
        %v975 = vpack.c.bf16 %v948, %v947
        %v976 = vpack.c.bf16 %v950, %v949
        %v977 = vpack.c.bf16 %v952, %v951
        %v978 = vpack.c.bf16 %v954, %v953
        %v979 = vpack.c.bf16 %v956, %v955
        %v980 = vpack.c.bf16 %v958, %v957
        %v981 = vpack.c.bf16 %v960, %v959
        %v982 = vpack.c.bf16 %v962, %v961
        %v983 = vpack.c.bf16 %v964, %v963
        %v984 = vpack.c.bf16 %v966, %v965
        %v985 = vpack.c.bf16 %v968, %v967
        %v986 = vpack.c.bf16 %v970, %v969
        %1003 = vrot.lane.b32.xlu0 %v971, 64
        %v1004 = vpop.permute.xlu0 %1003
        %1005 = vrot.lane.b32.xlu0 %v972, 64
        %v1006 = vpop.permute.xlu0 %1005
        %1007 = vrot.lane.b32.xlu0 %v973, 64
        %v1008 = vpop.permute.xlu0 %1007
        %1009 = vrot.lane.b32.xlu0 %v974, 64
        %v1010 = vpop.permute.xlu0 %1009
        %1011 = vrot.lane.b32.xlu0 %v975, 64
        %v1012 = vpop.permute.xlu0 %1011
        %1013 = vrot.lane.b32.xlu0 %v976, 64
        %v1014 = vpop.permute.xlu0 %1013
        %1015 = vrot.lane.b32.xlu0 %v977, 64
        %v1016 = vpop.permute.xlu0 %1015
        %1017 = vrot.lane.b32.xlu0 %v978, 64
        %v1018 = vpop.permute.xlu0 %1017
        %1019 = vrot.lane.b32.xlu0 %v979, 64
        %v1020 = vpop.permute.xlu0 %1019
        %1021 = vrot.lane.b32.xlu0 %v980, 64
        %v1022 = vpop.permute.xlu0 %1021
        %1023 = vrot.lane.b32.xlu0 %v981, 64
        %v1024 = vpop.permute.xlu0 %1023
        %1025 = vrot.lane.b32.xlu0 %v982, 64
        %v1026 = vpop.permute.xlu0 %1025
        %1027 = vrot.lane.b32.xlu0 %v983, 64
        %v1028 = vpop.permute.xlu0 %1027
        %1029 = vrot.lane.b32.xlu0 %v984, 64
        %v1030 = vpop.permute.xlu0 %1029
        %1031 = vrot.lane.b32.xlu0 %v985, 64
        %v1032 = vpop.permute.xlu0 %1031
        %1033 = vrot.lane.b32.xlu0 %v986, 64
        %v1034 = vpop.permute.xlu0 %1033
        %1051 = vst.msk [vmem:[#allocation3 + $0x8] sm:$0xff] %vm858, %v1004
        %1052 = vst.msk [vmem:[#allocation3 + $0x30] sm:$0xff] %vm858, %v1006
        %1053 = vst.msk [vmem:[#allocation3 + $0x58] sm:$0xff] %vm858, %v1008
        %1054 = vst.msk [vmem:[#allocation3 + $0x80] sm:$0xff] %vm858, %v1010
        %1055 = vst.msk [vmem:[#allocation3 + $0xa8] sm:$0xff] %vm858, %v1012
        %1056 = vst.msk [vmem:[#allocation3 + $0xd0] sm:$0xff] %vm858, %v1014
        %1057 = vst.msk [vmem:[#allocation3 + $0xf8] sm:$0xff] %vm858, %v1016
        %1058 = vst.msk [vmem:[#allocation3 + $0x120] sm:$0xff] %vm858, %v1018
        %1059 = vst.msk [vmem:[#allocation3 + $0x148] sm:$0xff] %vm858, %v1020
        %1060 = vst.msk [vmem:[#allocation3 + $0x170] sm:$0xff] %vm858, %v1022
        %1061 = vst.msk [vmem:[#allocation3 + $0x198] sm:$0xff] %vm858, %v1024
        %1062 = vst.msk [vmem:[#allocation3 + $0x1c0] sm:$0xff] %vm858, %v1026
        %1063 = vst.msk [vmem:[#allocation3 + $0x1e8] sm:$0xff] %vm858, %v1028
        %1064 = vst.msk [vmem:[#allocation3 + $0x210] sm:$0xff] %vm858, %v1030
        %1065 = vst.msk [vmem:[#allocation3 + $0x238] sm:$0xff] %vm858, %v1032
        %1066 = vst.msk [vmem:[#allocation3 + $0x260] sm:$0xff] %vm858, %v1034
        %v1067 = vld [vmem:[%s616 + $0x1] sm:$0xff]
        %v1068 = vld [vmem:[%s616 + $0x9] sm:$0xff]
        %v1069 = vld [vmem:[%s616 + $0x19] sm:$0xff]
        %v1070 = vld [vmem:[%s616 + $0x21] sm:$0xff]
        %v1071 = vld [vmem:[%s616 + $0x31] sm:$0xff]
        %v1072 = vld [vmem:[%s616 + $0x39] sm:$0xff]
        %v1073 = vld [vmem:[%s616 + $0x49] sm:$0xff]
        %v1074 = vld [vmem:[%s616 + $0x51] sm:$0xff]
        %v1075 = vld [vmem:[%s616 + $0x61] sm:$0xff]
        %v1076 = vld [vmem:[%s616 + $0x69] sm:$0xff]
        %v1077 = vld [vmem:[%s616 + $0x79] sm:$0xff]
        %v1078 = vld [vmem:[%s616 + $0x81] sm:$0xff]
        %v1079 = vld [vmem:[%s616 + $0x91] sm:$0xff]
        %v1080 = vld [vmem:[%s616 + $0x99] sm:$0xff]
        %v1081 = vld [vmem:[%s616 + $0xa9] sm:$0xff]
        %v1082 = vld [vmem:[%s616 + $0xb1] sm:$0xff]
        %v1083 = vld [vmem:[%s616 + $0xc1] sm:$0xff]
        %v1084 = vld [vmem:[%s616 + $0xc9] sm:$0xff]
        %v1085 = vld [vmem:[%s616 + $0xd9] sm:$0xff]
        %v1086 = vld [vmem:[%s616 + $0xe1] sm:$0xff]
        %v1087 = vld [vmem:[%s616 + $0xf1] sm:$0xff]
        %v1088 = vld [vmem:[%s616 + $0xf9] sm:$0xff]
        %v1089 = vld [vmem:[%s616 + $0x109] sm:$0xff]
        %v1090 = vld [vmem:[%s616 + $0x111] sm:$0xff]
        %v1091 = vld [vmem:[%s616 + $0x121] sm:$0xff]
        %v1092 = vld [vmem:[%s616 + $0x129] sm:$0xff]
        %v1093 = vld [vmem:[%s616 + $0x139] sm:$0xff]
        %v1094 = vld [vmem:[%s616 + $0x141] sm:$0xff]
        %v1095 = vld [vmem:[%s616 + $0x151] sm:$0xff]
        %v1096 = vld [vmem:[%s616 + $0x159] sm:$0xff]
        %v1097 = vld [vmem:[%s616 + $0x169] sm:$0xff]
        %v1098 = vld [vmem:[%s616 + $0x171] sm:$0xff]
        %v1099 = vpack.c.bf16 %v1068, %v1067
        %v1100 = vpack.c.bf16 %v1070, %v1069
        %v1101 = vpack.c.bf16 %v1072, %v1071
        %v1102 = vpack.c.bf16 %v1074, %v1073
        %v1103 = vpack.c.bf16 %v1076, %v1075
        %v1104 = vpack.c.bf16 %v1078, %v1077
        %v1105 = vpack.c.bf16 %v1080, %v1079
        %v1106 = vpack.c.bf16 %v1082, %v1081
        %v1107 = vpack.c.bf16 %v1084, %v1083
        %v1108 = vpack.c.bf16 %v1086, %v1085
        %v1109 = vpack.c.bf16 %v1088, %v1087
        %v1110 = vpack.c.bf16 %v1090, %v1089
        %v1111 = vpack.c.bf16 %v1092, %v1091
        %v1112 = vpack.c.bf16 %v1094, %v1093
        %v1113 = vpack.c.bf16 %v1096, %v1095
        %v1114 = vpack.c.bf16 %v1098, %v1097
        %1115 = vst.msk [vmem:[#allocation3 + $0x10] sm:$0xff] %vm607, %v1099
        %1116 = vst.msk [vmem:[#allocation3 + $0x38] sm:$0xff] %vm607, %v1100
        %1117 = vst.msk [vmem:[#allocation3 + $0x60] sm:$0xff] %vm607, %v1101
        %1118 = vst.msk [vmem:[#allocation3 + $0x88] sm:$0xff] %vm607, %v1102
        %1119 = vst.msk [vmem:[#allocation3 + $0xb0] sm:$0xff] %vm607, %v1103
        %1120 = vst.msk [vmem:[#allocation3 + $0xd8] sm:$0xff] %vm607, %v1104
        %1121 = vst.msk [vmem:[#allocation3 + $0x100] sm:$0xff] %vm607, %v1105
        %1122 = vst.msk [vmem:[#allocation3 + $0x128] sm:$0xff] %vm607, %v1106
        %1123 = vst.msk [vmem:[#allocation3 + $0x150] sm:$0xff] %vm607, %v1107
        %1124 = vst.msk [vmem:[#allocation3 + $0x178] sm:$0xff] %vm607, %v1108
        %1125 = vst.msk [vmem:[#allocation3 + $0x1a0] sm:$0xff] %vm607, %v1109
        %1126 = vst.msk [vmem:[#allocation3 + $0x1c8] sm:$0xff] %vm607, %v1110
        %1127 = vst.msk [vmem:[#allocation3 + $0x1f0] sm:$0xff] %vm607, %v1111
        %1128 = vst.msk [vmem:[#allocation3 + $0x218] sm:$0xff] %vm607, %v1112
        %1129 = vst.msk [vmem:[#allocation3 + $0x240] sm:$0xff] %vm607, %v1113
        %1130 = vst.msk [vmem:[#allocation3 + $0x268] sm:$0xff] %vm607, %v1114
        %v1131 = vld [vmem:[%s616 + $0x2] sm:$0xff]
        %v1132 = vld [vmem:[%s616 + $0xa] sm:$0xff]
        %v1133 = vld [vmem:[%s616 + $0x1a] sm:$0xff]
        %v1134 = vld [vmem:[%s616 + $0x22] sm:$0xff]
        %v1135 = vld [vmem:[%s616 + $0x32] sm:$0xff]
        %v1136 = vld [vmem:[%s616 + $0x3a] sm:$0xff]
        %v1137 = vld [vmem:[%s616 + $0x4a] sm:$0xff]
        %v1138 = vld [vmem:[%s616 + $0x52] sm:$0xff]
        %v1139 = vld [vmem:[%s616 + $0x62] sm:$0xff]
        %v1140 = vld [vmem:[%s616 + $0x6a] sm:$0xff]
        %v1141 = vld [vmem:[%s616 + $0x7a] sm:$0xff]
        %v1142 = vld [vmem:[%s616 + $0x82] sm:$0xff]
        %v1143 = vld [vmem:[%s616 + $0x92] sm:$0xff]
        %v1144 = vld [vmem:[%s616 + $0x9a] sm:$0xff]
        %v1145 = vld [vmem:[%s616 + $0xaa] sm:$0xff]
        %v1146 = vld [vmem:[%s616 + $0xb2] sm:$0xff]
        %v1147 = vld [vmem:[%s616 + $0xc2] sm:$0xff]
        %v1148 = vld [vmem:[%s616 + $0xca] sm:$0xff]
        %v1149 = vld [vmem:[%s616 + $0xda] sm:$0xff]
        %v1150 = vld [vmem:[%s616 + $0xe2] sm:$0xff]
        %v1151 = vld [vmem:[%s616 + $0xf2] sm:$0xff]
        %v1152 = vld [vmem:[%s616 + $0xfa] sm:$0xff]
        %v1153 = vld [vmem:[%s616 + $0x10a] sm:$0xff]
        %v1154 = vld [vmem:[%s616 + $0x112] sm:$0xff]
        %v1155 = vld [vmem:[%s616 + $0x122] sm:$0xff]
        %v1156 = vld [vmem:[%s616 + $0x12a] sm:$0xff]
        %v1157 = vld [vmem:[%s616 + $0x13a] sm:$0xff]
        %v1158 = vld [vmem:[%s616 + $0x142] sm:$0xff]
        %v1159 = vld [vmem:[%s616 + $0x152] sm:$0xff]
        %v1160 = vld [vmem:[%s616 + $0x15a] sm:$0xff]
        %v1161 = vld [vmem:[%s616 + $0x16a] sm:$0xff]
        %v1162 = vld [vmem:[%s616 + $0x172] sm:$0xff]
        %v1163 = vpack.c.bf16 %v1132, %v1131
        %v1164 = vpack.c.bf16 %v1134, %v1133
        %v1165 = vpack.c.bf16 %v1136, %v1135
        %v1166 = vpack.c.bf16 %v1138, %v1137
        %v1167 = vpack.c.bf16 %v1140, %v1139
        %v1168 = vpack.c.bf16 %v1142, %v1141
        %v1169 = vpack.c.bf16 %v1144, %v1143
        %v1170 = vpack.c.bf16 %v1146, %v1145
        %v1171 = vpack.c.bf16 %v1148, %v1147
        %v1172 = vpack.c.bf16 %v1150, %v1149
        %v1173 = vpack.c.bf16 %v1152, %v1151
        %v1174 = vpack.c.bf16 %v1154, %v1153
        %v1175 = vpack.c.bf16 %v1156, %v1155
        %v1176 = vpack.c.bf16 %v1158, %v1157
        %v1177 = vpack.c.bf16 %v1160, %v1159
        %v1178 = vpack.c.bf16 %v1162, %v1161
        %1195 = vrot.lane.b32.xlu0 %v1163, 64
        %v1196 = vpop.permute.xlu0 %1195
        %1197 = vrot.lane.b32.xlu0 %v1164, 64
        %v1198 = vpop.permute.xlu0 %1197
        %1199 = vrot.lane.b32.xlu0 %v1165, 64
        %v1200 = vpop.permute.xlu0 %1199
        %1201 = vrot.lane.b32.xlu0 %v1166, 64
        %v1202 = vpop.permute.xlu0 %1201
        %1203 = vrot.lane.b32.xlu0 %v1167, 64
        %v1204 = vpop.permute.xlu0 %1203
        %1205 = vrot.lane.b32.xlu0 %v1168, 64
        %v1206 = vpop.permute.xlu0 %1205
        %1207 = vrot.lane.b32.xlu0 %v1169, 64
        %v1208 = vpop.permute.xlu0 %1207
        %1209 = vrot.lane.b32.xlu0 %v1170, 64
        %v1210 = vpop.permute.xlu0 %1209
        %1211 = vrot.lane.b32.xlu0 %v1171, 64
        %v1212 = vpop.permute.xlu0 %1211
        %1213 = vrot.lane.b32.xlu0 %v1172, 64
        %v1214 = vpop.permute.xlu0 %1213
        %1215 = vrot.lane.b32.xlu0 %v1173, 64
        %v1216 = vpop.permute.xlu0 %1215
        %1217 = vrot.lane.b32.xlu0 %v1174, 64
        %v1218 = vpop.permute.xlu0 %1217
        %1219 = vrot.lane.b32.xlu0 %v1175, 64
        %v1220 = vpop.permute.xlu0 %1219
        %1221 = vrot.lane.b32.xlu0 %v1176, 64
        %v1222 = vpop.permute.xlu0 %1221
        %1223 = vrot.lane.b32.xlu0 %v1177, 64
        %v1224 = vpop.permute.xlu0 %1223
        %1225 = vrot.lane.b32.xlu0 %v1178, 64
        %v1226 = vpop.permute.xlu0 %1225
        %1243 = vst.msk [vmem:[#allocation3 + $0x10] sm:$0xff] %vm858, %v1196
        %1244 = vst.msk [vmem:[#allocation3 + $0x38] sm:$0xff] %vm858, %v1198
        %1245 = vst.msk [vmem:[#allocation3 + $0x60] sm:$0xff] %vm858, %v1200
        %1246 = vst.msk [vmem:[#allocation3 + $0x88] sm:$0xff] %vm858, %v1202
        %1247 = vst.msk [vmem:[#allocation3 + $0xb0] sm:$0xff] %vm858, %v1204
        %1248 = vst.msk [vmem:[#allocation3 + $0xd8] sm:$0xff] %vm858, %v1206
        %1249 = vst.msk [vmem:[#allocation3 + $0x100] sm:$0xff] %vm858, %v1208
        %1250 = vst.msk [vmem:[#allocation3 + $0x128] sm:$0xff] %vm858, %v1210
        %1251 = vst.msk [vmem:[#allocation3 + $0x150] sm:$0xff] %vm858, %v1212
        %1252 = vst.msk [vmem:[#allocation3 + $0x178] sm:$0xff] %vm858, %v1214
        %1253 = vst.msk [vmem:[#allocation3 + $0x1a0] sm:$0xff] %vm858, %v1216
        %1254 = vst.msk [vmem:[#allocation3 + $0x1c8] sm:$0xff] %vm858, %v1218
        %1255 = vst.msk [vmem:[#allocation3 + $0x1f0] sm:$0xff] %vm858, %v1220
        %1256 = vst.msk [vmem:[#allocation3 + $0x218] sm:$0xff] %vm858, %v1222
        %1257 = vst.msk [vmem:[#allocation3 + $0x240] sm:$0xff] %vm858, %v1224
        %1258 = vst.msk [vmem:[#allocation3 + $0x268] sm:$0xff] %vm858, %v1226
        %s1259 = scalar_lea.vmem [#allocation2], 48
        %v1260 = vld [vmem:[%s1259] sm:$0xff]
        %v1261 = vld [vmem:[%s1259 + $0x8] sm:$0xff]
        %v1262 = vld [vmem:[%s1259 + $0x18] sm:$0xff]
        %v1263 = vld [vmem:[%s1259 + $0x20] sm:$0xff]
        %v1264 = vld [vmem:[%s1259 + $0x30] sm:$0xff]
        %v1265 = vld [vmem:[%s1259 + $0x38] sm:$0xff]
        %v1266 = vld [vmem:[%s1259 + $0x48] sm:$0xff]
        %v1267 = vld [vmem:[%s1259 + $0x50] sm:$0xff]
        %v1268 = vld [vmem:[%s1259 + $0x60] sm:$0xff]
        %v1269 = vld [vmem:[%s1259 + $0x68] sm:$0xff]
        %v1270 = vld [vmem:[%s1259 + $0x78] sm:$0xff]
        %v1271 = vld [vmem:[%s1259 + $0x80] sm:$0xff]
        %v1272 = vld [vmem:[%s1259 + $0x90] sm:$0xff]
        %v1273 = vld [vmem:[%s1259 + $0x98] sm:$0xff]
        %v1274 = vld [vmem:[%s1259 + $0xa8] sm:$0xff]
        %v1275 = vld [vmem:[%s1259 + $0xb0] sm:$0xff]
        %v1276 = vld [vmem:[%s1259 + $0xc0] sm:$0xff]
        %v1277 = vld [vmem:[%s1259 + $0xc8] sm:$0xff]
        %v1278 = vld [vmem:[%s1259 + $0xd8] sm:$0xff]
        %v1279 = vld [vmem:[%s1259 + $0xe0] sm:$0xff]
        %v1280 = vld [vmem:[%s1259 + $0xf0] sm:$0xff]
        %v1281 = vld [vmem:[%s1259 + $0xf8] sm:$0xff]
        %v1282 = vld [vmem:[%s1259 + $0x108] sm:$0xff]
        %v1283 = vld [vmem:[%s1259 + $0x110] sm:$0xff]
        %v1284 = vld [vmem:[%s1259 + $0x120] sm:$0xff]
        %v1285 = vld [vmem:[%s1259 + $0x128] sm:$0xff]
        %v1286 = vld [vmem:[%s1259 + $0x138] sm:$0xff]
        %v1287 = vld [vmem:[%s1259 + $0x140] sm:$0xff]
        %v1288 = vld [vmem:[%s1259 + $0x150] sm:$0xff]
        %v1289 = vld [vmem:[%s1259 + $0x158] sm:$0xff]
        %v1290 = vld [vmem:[%s1259 + $0x168] sm:$0xff]
        %v1291 = vld [vmem:[%s1259 + $0x170] sm:$0xff]
        %v1292 = vpack.c.bf16 %v1261, %v1260
        %v1293 = vpack.c.bf16 %v1263, %v1262
        %v1294 = vpack.c.bf16 %v1265, %v1264
        %v1295 = vpack.c.bf16 %v1267, %v1266
        %v1296 = vpack.c.bf16 %v1269, %v1268
        %v1297 = vpack.c.bf16 %v1271, %v1270
        %v1298 = vpack.c.bf16 %v1273, %v1272
        %v1299 = vpack.c.bf16 %v1275, %v1274
        %v1300 = vpack.c.bf16 %v1277, %v1276
        %v1301 = vpack.c.bf16 %v1279, %v1278
        %v1302 = vpack.c.bf16 %v1281, %v1280
        %v1303 = vpack.c.bf16 %v1283, %v1282
        %v1304 = vpack.c.bf16 %v1285, %v1284
        %v1305 = vpack.c.bf16 %v1287, %v1286
        %v1306 = vpack.c.bf16 %v1289, %v1288
        %v1307 = vpack.c.bf16 %v1291, %v1290
        %1308 = vst.msk [vmem:[#allocation3 + $0x18] sm:$0xff] %vm607, %v1292
        %1309 = vst.msk [vmem:[#allocation3 + $0x40] sm:$0xff] %vm607, %v1293
        %1310 = vst.msk [vmem:[#allocation3 + $0x68] sm:$0xff] %vm607, %v1294
        %1311 = vst.msk [vmem:[#allocation3 + $0x90] sm:$0xff] %vm607, %v1295
        %1312 = vst.msk [vmem:[#allocation3 + $0xb8] sm:$0xff] %vm607, %v1296
        %1313 = vst.msk [vmem:[#allocation3 + $0xe0] sm:$0xff] %vm607, %v1297
        %1314 = vst.msk [vmem:[#allocation3 + $0x108] sm:$0xff] %vm607, %v1298
        %1315 = vst.msk [vmem:[#allocation3 + $0x130] sm:$0xff] %vm607, %v1299
        %1316 = vst.msk [vmem:[#allocation3 + $0x158] sm:$0xff] %vm607, %v1300
        %1317 = vst.msk [vmem:[#allocation3 + $0x180] sm:$0xff] %vm607, %v1301
        %1318 = vst.msk [vmem:[#allocation3 + $0x1a8] sm:$0xff] %vm607, %v1302
        %1319 = vst.msk [vmem:[#allocation3 + $0x1d0] sm:$0xff] %vm607, %v1303
        %1320 = vst.msk [vmem:[#allocation3 + $0x1f8] sm:$0xff] %vm607, %v1304
        %1321 = vst.msk [vmem:[#allocation3 + $0x220] sm:$0xff] %vm607, %v1305
        %1322 = vst.msk [vmem:[#allocation3 + $0x248] sm:$0xff] %vm607, %v1306
        %1323 = vst.msk [vmem:[#allocation3 + $0x270] sm:$0xff] %vm607, %v1307
        %v1324 = vld [vmem:[%s1259 + $0x1] sm:$0xff]
        %v1325 = vld [vmem:[%s1259 + $0x9] sm:$0xff]
        %v1326 = vld [vmem:[%s1259 + $0x19] sm:$0xff]
        %v1327 = vld [vmem:[%s1259 + $0x21] sm:$0xff]
        %v1328 = vld [vmem:[%s1259 + $0x31] sm:$0xff]
        %v1329 = vld [vmem:[%s1259 + $0x39] sm:$0xff]
        %v1330 = vld [vmem:[%s1259 + $0x49] sm:$0xff]
        %v1331 = vld [vmem:[%s1259 + $0x51] sm:$0xff]
        %v1332 = vld [vmem:[%s1259 + $0x61] sm:$0xff]
        %v1333 = vld [vmem:[%s1259 + $0x69] sm:$0xff]
        %v1334 = vld [vmem:[%s1259 + $0x79] sm:$0xff]
        %v1335 = vld [vmem:[%s1259 + $0x81] sm:$0xff]
        %v1336 = vld [vmem:[%s1259 + $0x91] sm:$0xff]
        %v1337 = vld [vmem:[%s1259 + $0x99] sm:$0xff]
        %v1338 = vld [vmem:[%s1259 + $0xa9] sm:$0xff]
        %v1339 = vld [vmem:[%s1259 + $0xb1] sm:$0xff]
        %v1340 = vld [vmem:[%s1259 + $0xc1] sm:$0xff]
        %v1341 = vld [vmem:[%s1259 + $0xc9] sm:$0xff]
        %v1342 = vld [vmem:[%s1259 + $0xd9] sm:$0xff]
        %v1343 = vld [vmem:[%s1259 + $0xe1] sm:$0xff]
        %v1344 = vld [vmem:[%s1259 + $0xf1] sm:$0xff]
        %v1345 = vld [vmem:[%s1259 + $0xf9] sm:$0xff]
        %v1346 = vld [vmem:[%s1259 + $0x109] sm:$0xff]
        %v1347 = vld [vmem:[%s1259 + $0x111] sm:$0xff]
        %v1348 = vld [vmem:[%s1259 + $0x121] sm:$0xff]
        %v1349 = vld [vmem:[%s1259 + $0x129] sm:$0xff]
        %v1350 = vld [vmem:[%s1259 + $0x139] sm:$0xff]
        %v1351 = vld [vmem:[%s1259 + $0x141] sm:$0xff]
        %v1352 = vld [vmem:[%s1259 + $0x151] sm:$0xff]
        %v1353 = vld [vmem:[%s1259 + $0x159] sm:$0xff]
        %v1354 = vld [vmem:[%s1259 + $0x169] sm:$0xff]
        %v1355 = vld [vmem:[%s1259 + $0x171] sm:$0xff]
        %v1356 = vpack.c.bf16 %v1325, %v1324
        %v1357 = vpack.c.bf16 %v1327, %v1326
        %v1358 = vpack.c.bf16 %v1329, %v1328
        %v1359 = vpack.c.bf16 %v1331, %v1330
        %v1360 = vpack.c.bf16 %v1333, %v1332
        %v1361 = vpack.c.bf16 %v1335, %v1334
        %v1362 = vpack.c.bf16 %v1337, %v1336
        %v1363 = vpack.c.bf16 %v1339, %v1338
        %v1364 = vpack.c.bf16 %v1341, %v1340
        %v1365 = vpack.c.bf16 %v1343, %v1342
        %v1366 = vpack.c.bf16 %v1345, %v1344
        %v1367 = vpack.c.bf16 %v1347, %v1346
        %v1368 = vpack.c.bf16 %v1349, %v1348
        %v1369 = vpack.c.bf16 %v1351, %v1350
        %v1370 = vpack.c.bf16 %v1353, %v1352
        %v1371 = vpack.c.bf16 %v1355, %v1354
        %1388 = vrot.lane.b32.xlu0 %v1356, 64
        %v1389 = vpop.permute.xlu0 %1388
        %1390 = vrot.lane.b32.xlu0 %v1357, 64
        %v1391 = vpop.permute.xlu0 %1390
        %1392 = vrot.lane.b32.xlu0 %v1358, 64
        %v1393 = vpop.permute.xlu0 %1392
        %1394 = vrot.lane.b32.xlu0 %v1359, 64
        %v1395 = vpop.permute.xlu0 %1394
        %1396 = vrot.lane.b32.xlu0 %v1360, 64
        %v1397 = vpop.permute.xlu0 %1396
        %1398 = vrot.lane.b32.xlu0 %v1361, 64
        %v1399 = vpop.permute.xlu0 %1398
        %1400 = vrot.lane.b32.xlu0 %v1362, 64
        %v1401 = vpop.permute.xlu0 %1400
        %1402 = vrot.lane.b32.xlu0 %v1363, 64
        %v1403 = vpop.permute.xlu0 %1402
        %1404 = vrot.lane.b32.xlu0 %v1364, 64
        %v1405 = vpop.permute.xlu0 %1404
        %1406 = vrot.lane.b32.xlu0 %v1365, 64
        %v1407 = vpop.permute.xlu0 %1406
        %1408 = vrot.lane.b32.xlu0 %v1366, 64
        %v1409 = vpop.permute.xlu0 %1408
        %1410 = vrot.lane.b32.xlu0 %v1367, 64
        %v1411 = vpop.permute.xlu0 %1410
        %1412 = vrot.lane.b32.xlu0 %v1368, 64
        %v1413 = vpop.permute.xlu0 %1412
        %1414 = vrot.lane.b32.xlu0 %v1369, 64
        %v1415 = vpop.permute.xlu0 %1414
        %1416 = vrot.lane.b32.xlu0 %v1370, 64
        %v1417 = vpop.permute.xlu0 %1416
        %1418 = vrot.lane.b32.xlu0 %v1371, 64
        %v1419 = vpop.permute.xlu0 %1418
        %1436 = vst.msk [vmem:[#allocation3 + $0x18] sm:$0xff] %vm858, %v1389
        %1437 = vst.msk [vmem:[#allocation3 + $0x40] sm:$0xff] %vm858, %v1391
        %1438 = vst.msk [vmem:[#allocation3 + $0x68] sm:$0xff] %vm858, %v1393
        %1439 = vst.msk [vmem:[#allocation3 + $0x90] sm:$0xff] %vm858, %v1395
        %1440 = vst.msk [vmem:[#allocation3 + $0xb8] sm:$0xff] %vm858, %v1397
        %1441 = vst.msk [vmem:[#allocation3 + $0xe0] sm:$0xff] %vm858, %v1399
        %1442 = vst.msk [vmem:[#allocation3 + $0x108] sm:$0xff] %vm858, %v1401
        %1443 = vst.msk [vmem:[#allocation3 + $0x130] sm:$0xff] %vm858, %v1403
        %1444 = vst.msk [vmem:[#allocation3 + $0x158] sm:$0xff] %vm858, %v1405
        %1445 = vst.msk [vmem:[#allocation3 + $0x180] sm:$0xff] %vm858, %v1407
        %1446 = vst.msk [vmem:[#allocation3 + $0x1a8] sm:$0xff] %vm858, %v1409
        %1447 = vst.msk [vmem:[#allocation3 + $0x1d0] sm:$0xff] %vm858, %v1411
        %1448 = vst.msk [vmem:[#allocation3 + $0x1f8] sm:$0xff] %vm858, %v1413
        %1449 = vst.msk [vmem:[#allocation3 + $0x220] sm:$0xff] %vm858, %v1415
        %1450 = vst.msk [vmem:[#allocation3 + $0x248] sm:$0xff] %vm858, %v1417
        %1451 = vst.msk [vmem:[#allocation3 + $0x270] sm:$0xff] %vm858, %v1419
        %v1452 = vld [vmem:[%s1259 + $0x2] sm:$0xff]
        %v1453 = vld [vmem:[%s1259 + $0xa] sm:$0xff]
        %v1454 = vld [vmem:[%s1259 + $0x1a] sm:$0xff]
        %v1455 = vld [vmem:[%s1259 + $0x22] sm:$0xff]
        %v1456 = vld [vmem:[%s1259 + $0x32] sm:$0xff]
        %v1457 = vld [vmem:[%s1259 + $0x3a] sm:$0xff]
        %v1458 = vld [vmem:[%s1259 + $0x4a] sm:$0xff]
        %v1459 = vld [vmem:[%s1259 + $0x52] sm:$0xff]
        %v1460 = vld [vmem:[%s1259 + $0x62] sm:$0xff]
        %v1461 = vld [vmem:[%s1259 + $0x6a] sm:$0xff]
        %v1462 = vld [vmem:[%s1259 + $0x7a] sm:$0xff]
        %v1463 = vld [vmem:[%s1259 + $0x82] sm:$0xff]
        %v1464 = vld [vmem:[%s1259 + $0x92] sm:$0xff]
        %v1465 = vld [vmem:[%s1259 + $0x9a] sm:$0xff]
        %v1466 = vld [vmem:[%s1259 + $0xaa] sm:$0xff]
        %v1467 = vld [vmem:[%s1259 + $0xb2] sm:$0xff]
        %v1468 = vld [vmem:[%s1259 + $0xc2] sm:$0xff]
        %v1469 = vld [vmem:[%s1259 + $0xca] sm:$0xff]
        %v1470 = vld [vmem:[%s1259 + $0xda] sm:$0xff]
        %v1471 = vld [vmem:[%s1259 + $0xe2] sm:$0xff]
        %v1472 = vld [vmem:[%s1259 + $0xf2] sm:$0xff]
        %v1473 = vld [vmem:[%s1259 + $0xfa] sm:$0xff]
        %v1474 = vld [vmem:[%s1259 + $0x10a] sm:$0xff]
        %v1475 = vld [vmem:[%s1259 + $0x112] sm:$0xff]
        %v1476 = vld [vmem:[%s1259 + $0x122] sm:$0xff]
        %v1477 = vld [vmem:[%s1259 + $0x12a] sm:$0xff]
        %v1478 = vld [vmem:[%s1259 + $0x13a] sm:$0xff]
        %v1479 = vld [vmem:[%s1259 + $0x142] sm:$0xff]
        %v1480 = vld [vmem:[%s1259 + $0x152] sm:$0xff]
        %v1481 = vld [vmem:[%s1259 + $0x15a] sm:$0xff]
        %v1482 = vld [vmem:[%s1259 + $0x16a] sm:$0xff]
        %v1483 = vld [vmem:[%s1259 + $0x172] sm:$0xff]
        %v1484 = vpack.c.bf16 %v1453, %v1452
        %v1485 = vpack.c.bf16 %v1455, %v1454
        %v1486 = vpack.c.bf16 %v1457, %v1456
        %v1487 = vpack.c.bf16 %v1459, %v1458
        %v1488 = vpack.c.bf16 %v1461, %v1460
        %v1489 = vpack.c.bf16 %v1463, %v1462
        %v1490 = vpack.c.bf16 %v1465, %v1464
        %v1491 = vpack.c.bf16 %v1467, %v1466
        %v1492 = vpack.c.bf16 %v1469, %v1468
        %v1493 = vpack.c.bf16 %v1471, %v1470
        %v1494 = vpack.c.bf16 %v1473, %v1472
        %v1495 = vpack.c.bf16 %v1475, %v1474
        %v1496 = vpack.c.bf16 %v1477, %v1476
        %v1497 = vpack.c.bf16 %v1479, %v1478
        %v1498 = vpack.c.bf16 %v1481, %v1480
        %v1499 = vpack.c.bf16 %v1483, %v1482
        %1500 = vst.msk [vmem:[#allocation3 + $0x20] sm:$0xff] %vm607, %v1484
        %1501 = vst.msk [vmem:[#allocation3 + $0x48] sm:$0xff] %vm607, %v1485
        %1502 = vst.msk [vmem:[#allocation3 + $0x70] sm:$0xff] %vm607, %v1486
        %1503 = vst.msk [vmem:[#allocation3 + $0x98] sm:$0xff] %vm607, %v1487
        %1504 = vst.msk [vmem:[#allocation3 + $0xc0] sm:$0xff] %vm607, %v1488
        %1505 = vst.msk [vmem:[#allocation3 + $0xe8] sm:$0xff] %vm607, %v1489
        %1506 = vst.msk [vmem:[#allocation3 + $0x110] sm:$0xff] %vm607, %v1490
        %1507 = vst.msk [vmem:[#allocation3 + $0x138] sm:$0xff] %vm607, %v1491
        %1508 = vst.msk [vmem:[#allocation3 + $0x160] sm:$0xff] %vm607, %v1492
        %1509 = vst.msk [vmem:[#allocation3 + $0x188] sm:$0xff] %vm607, %v1493
        %1510 = vst.msk [vmem:[#allocation3 + $0x1b0] sm:$0xff] %vm607, %v1494
        %1511 = vst.msk [vmem:[#allocation3 + $0x1d8] sm:$0xff] %vm607, %v1495
        %1512 = vst.msk [vmem:[#allocation3 + $0x200] sm:$0xff] %vm607, %v1496
        %1513 = vst.msk [vmem:[#allocation3 + $0x228] sm:$0xff] %vm607, %v1497
        %1514 = vst.msk [vmem:[#allocation3 + $0x250] sm:$0xff] %vm607, %v1498
        %1515 = vst.msk [vmem:[#allocation3 + $0x278] sm:$0xff] %vm607, %v1499
        %v1516 = vld [vmem:[#allocation3] sm:$0xff]
        %v1517 = vld [vmem:[#allocation3 + $0x8] sm:$0xff]
        %v1518 = vld [vmem:[#allocation3 + $0x10] sm:$0xff]
        %v1519 = vld [vmem:[#allocation3 + $0x18] sm:$0xff]
        %v1520 = vld [vmem:[#allocation3 + $0x20] sm:$0xff]
        %v1521 = vld [vmem:[#allocation3 + $0x28] sm:$0xff]
        %v1522 = vld [vmem:[#allocation3 + $0x30] sm:$0xff]
        %v1523 = vld [vmem:[#allocation3 + $0x38] sm:$0xff]
        %v1524 = vld [vmem:[#allocation3 + $0x40] sm:$0xff]
        %v1525 = vld [vmem:[#allocation3 + $0x48] sm:$0xff]
        %v1526 = vld [vmem:[#allocation3 + $0x50] sm:$0xff]
        %v1527 = vld [vmem:[#allocation3 + $0x58] sm:$0xff]
        %v1528 = vld [vmem:[#allocation3 + $0x60] sm:$0xff]
        %v1529 = vld [vmem:[#allocation3 + $0x68] sm:$0xff]
        %v1530 = vld [vmem:[#allocation3 + $0x70] sm:$0xff]
        %v1531 = vld [vmem:[#allocation3 + $0x78] sm:$0xff]
        %v1532 = vld [vmem:[#allocation3 + $0x80] sm:$0xff]
        %v1533 = vld [vmem:[#allocation3 + $0x88] sm:$0xff]
        %v1534 = vld [vmem:[#allocation3 + $0x90] sm:$0xff]
        %v1535 = vld [vmem:[#allocation3 + $0x98] sm:$0xff]
        %v1536 = vld [vmem:[#allocation3 + $0xa0] sm:$0xff]
        %v1537 = vld [vmem:[#allocation3 + $0xa8] sm:$0xff]
        %v1538 = vld [vmem:[#allocation3 + $0xb0] sm:$0xff]
        %v1539 = vld [vmem:[#allocation3 + $0xb8] sm:$0xff]
        %v1540 = vld [vmem:[#allocation3 + $0xc0] sm:$0xff]
        %v1541 = vld [vmem:[#allocation3 + $0xc8] sm:$0xff]
        %v1542 = vld [vmem:[#allocation3 + $0xd0] sm:$0xff]
        %v1543 = vld [vmem:[#allocation3 + $0xd8] sm:$0xff]
        %v1544 = vld [vmem:[#allocation3 + $0xe0] sm:$0xff]
        %v1545 = vld [vmem:[#allocation3 + $0xe8] sm:$0xff]
        %v1546 = vld [vmem:[#allocation3 + $0xf0] sm:$0xff]
        %v1547 = vld [vmem:[#allocation3 + $0xf8] sm:$0xff]
        %v1548 = vld [vmem:[#allocation3 + $0x100] sm:$0xff]
        %v1549 = vld [vmem:[#allocation3 + $0x108] sm:$0xff]
        %v1550 = vld [vmem:[#allocation3 + $0x110] sm:$0xff]
        %v1551 = vld [vmem:[#allocation3 + $0x118] sm:$0xff]
        %v1552 = vld [vmem:[#allocation3 + $0x120] sm:$0xff]
        %v1553 = vld [vmem:[#allocation3 + $0x128] sm:$0xff]
        %v1554 = vld [vmem:[#allocation3 + $0x130] sm:$0xff]
        %v1555 = vld [vmem:[#allocation3 + $0x138] sm:$0xff]
        %v1556 = vld [vmem:[#allocation3 + $0x140] sm:$0xff]
        %v1557 = vld [vmem:[#allocation3 + $0x148] sm:$0xff]
        %v1558 = vld [vmem:[#allocation3 + $0x150] sm:$0xff]
        %v1559 = vld [vmem:[#allocation3 + $0x158] sm:$0xff]
        %v1560 = vld [vmem:[#allocation3 + $0x160] sm:$0xff]
        %v1561 = vld [vmem:[#allocation3 + $0x168] sm:$0xff]
        %v1562 = vld [vmem:[#allocation3 + $0x170] sm:$0xff]
        %v1563 = vld [vmem:[#allocation3 + $0x178] sm:$0xff]
        %v1564 = vld [vmem:[#allocation3 + $0x180] sm:$0xff]
        %v1565 = vld [vmem:[#allocation3 + $0x188] sm:$0xff]
        %v1566 = vld [vmem:[#allocation3 + $0x190] sm:$0xff]
        %v1567 = vld [vmem:[#allocation3 + $0x198] sm:$0xff]
        %v1568 = vld [vmem:[#allocation3 + $0x1a0] sm:$0xff]
        %v1569 = vld [vmem:[#allocation3 + $0x1a8] sm:$0xff]
        %v1570 = vld [vmem:[#allocation3 + $0x1b0] sm:$0xff]
        %v1571 = vld [vmem:[#allocation3 + $0x1b8] sm:$0xff]
        %v1572 = vld [vmem:[#allocation3 + $0x1c0] sm:$0xff]
        %v1573 = vld [vmem:[#allocation3 + $0x1c8] sm:$0xff]
        %v1574 = vld [vmem:[#allocation3 + $0x1d0] sm:$0xff]
        %v1575 = vld [vmem:[#allocation3 + $0x1d8] sm:$0xff]
        %v1576 = vld [vmem:[#allocation3 + $0x1e0] sm:$0xff]
        %v1577 = vld [vmem:[#allocation3 + $0x1e8] sm:$0xff]
        %v1578 = vld [vmem:[#allocation3 + $0x1f0] sm:$0xff]
        %v1579 = vld [vmem:[#allocation3 + $0x1f8] sm:$0xff]
        %v1580 = vld [vmem:[#allocation3 + $0x200] sm:$0xff]
        %v1581 = vld [vmem:[#allocation3 + $0x208] sm:$0xff]
        %v1582 = vld [vmem:[#allocation3 + $0x210] sm:$0xff]
        %v1583 = vld [vmem:[#allocation3 + $0x218] sm:$0xff]
        %v1584 = vld [vmem:[#allocation3 + $0x220] sm:$0xff]
        %v1585 = vld [vmem:[#allocation3 + $0x228] sm:$0xff]
        %v1586 = vld [vmem:[#allocation3 + $0x230] sm:$0xff]
        %v1587 = vld [vmem:[#allocation3 + $0x238] sm:$0xff]
        %v1588 = vld [vmem:[#allocation3 + $0x240] sm:$0xff]
        %v1589 = vld [vmem:[#allocation3 + $0x248] sm:$0xff]
        %v1590 = vld [vmem:[#allocation3 + $0x250] sm:$0xff]
        %v1591 = vld [vmem:[#allocation3 + $0x258] sm:$0xff]
        %v1592 = vld [vmem:[#allocation3 + $0x260] sm:$0xff]
        %v1593 = vld [vmem:[#allocation3 + $0x268] sm:$0xff]
        %v1594 = vld [vmem:[#allocation3 + $0x270] sm:$0xff]
        %v1595 = vld [vmem:[#allocation3 + $0x278] sm:$0xff]
        %v1596 = vld [vmem:[%s3] sm:$0xf]
        %v1597 = vld [vmem:[%s3 + $0x4] sm:$0xf]
        %v1598 = vld [vmem:[%s3 + $0x8] sm:$0xf]
        %v1599 = vld [vmem:[%s3 + $0xc] sm:$0xf]
        %v1600 = vld [vmem:[%s3 + $0x10] sm:$0xf]
        %v1601 = vld [vmem:[%s3 + $0x14] sm:$0xf]
        %v1602 = vld [vmem:[%s3 + $0x18] sm:$0xf]
        %v1603 = vld [vmem:[%s3 + $0x1c] sm:$0xf]
        %v1604 = vld [vmem:[%s3 + $0x20] sm:$0xf]
        %v1605 = vld [vmem:[%s3 + $0x24] sm:$0xf]
        %v1606 = vld [vmem:[%s3 + $0x28] sm:$0xf]
        %v1607 = vld [vmem:[%s3 + $0x2c] sm:$0xf]
        %v1608 = vld [vmem:[%s3 + $0x30] sm:$0xf]
        %v1609 = vld [vmem:[%s3 + $0x34] sm:$0xf]
        %v1610 = vld [vmem:[%s3 + $0x38] sm:$0xf]
        %v1611 = vld [vmem:[%s3 + $0x3c] sm:$0xf]
        %v1612 = vld [vmem:[%s3 + $0x40] sm:$0xf]
        %v1613 = vld [vmem:[%s3 + $0x44] sm:$0xf]
        %v1614 = vld [vmem:[%s3 + $0x48] sm:$0xf]
        %v1615 = vld [vmem:[%s3 + $0x4c] sm:$0xf]
        %v1616 = vld [vmem:[%s3 + $0x50] sm:$0xf]
        %v1617 = vld [vmem:[%s3 + $0x54] sm:$0xf]
        %v1618 = vld [vmem:[%s3 + $0x58] sm:$0xf]
        %v1619 = vld [vmem:[%s3 + $0x5c] sm:$0xf]
        %v1620 = vld [vmem:[%s3 + $0x60] sm:$0xf]
        %v1621 = vld [vmem:[%s3 + $0x64] sm:$0xf]
        %v1622 = vld [vmem:[%s3 + $0x68] sm:$0xf]
        %v1623 = vld [vmem:[%s3 + $0x6c] sm:$0xf]
        %v1624 = vld [vmem:[%s3 + $0x70] sm:$0xf]
        %v1625 = vld [vmem:[%s3 + $0x74] sm:$0xf]
        %v1626 = vld [vmem:[%s3 + $0x78] sm:$0xf]
        %v1627 = vld [vmem:[%s3 + $0x7c] sm:$0xf]
        %v1628 = vld [vmem:[%s3 + $0x80] sm:$0xf]
        %v1629 = vld [vmem:[%s3 + $0x84] sm:$0xf]
        %v1630 = vld [vmem:[%s3 + $0x88] sm:$0xf]
        %v1631 = vld [vmem:[%s3 + $0x8c] sm:$0xf]
        %v1632 = vld [vmem:[%s3 + $0x90] sm:$0xf]
        %v1633 = vld [vmem:[%s3 + $0x94] sm:$0xf]
        %v1634 = vld [vmem:[%s3 + $0x98] sm:$0xf]
        %v1635 = vld [vmem:[%s3 + $0x9c] sm:$0xf]
        %v1636 = vld [vmem:[%s3 + $0xa0] sm:$0xf]
        %v1637 = vld [vmem:[%s3 + $0xa4] sm:$0xf]
        %v1638 = vld [vmem:[%s3 + $0xa8] sm:$0xf]
        %v1639 = vld [vmem:[%s3 + $0xac] sm:$0xf]
        %v1640 = vld [vmem:[%s3 + $0xb0] sm:$0xf]
        %v1641 = vld [vmem:[%s3 + $0xb4] sm:$0xf]
        %v1642 = vld [vmem:[%s3 + $0xb8] sm:$0xf]
        %v1643 = vld [vmem:[%s3 + $0xbc] sm:$0xf]
        %v1644 = vld [vmem:[%s3 + $0xc0] sm:$0xf]
        %v1645 = vld [vmem:[%s3 + $0xc4] sm:$0xf]
        %v1646 = vld [vmem:[%s3 + $0xc8] sm:$0xf]
        %v1647 = vld [vmem:[%s3 + $0xcc] sm:$0xf]
        %v1648 = vld [vmem:[%s3 + $0xd0] sm:$0xf]
        %v1649 = vld [vmem:[%s3 + $0xd4] sm:$0xf]
        %v1650 = vld [vmem:[%s3 + $0xd8] sm:$0xf]
        %v1651 = vld [vmem:[%s3 + $0xdc] sm:$0xf]
        %v1652 = vld [vmem:[%s3 + $0xe0] sm:$0xf]
        %v1653 = vld [vmem:[%s3 + $0xe4] sm:$0xf]
        %v1654 = vld [vmem:[%s3 + $0xe8] sm:$0xf]
        %v1655 = vld [vmem:[%s3 + $0xec] sm:$0xf]
        %v1656 = vld [vmem:[%s3 + $0xf0] sm:$0xf]
        %v1657 = vld [vmem:[%s3 + $0xf4] sm:$0xf]
        %v1658 = vld [vmem:[%s3 + $0xf8] sm:$0xf]
        %v1659 = vld [vmem:[%s3 + $0xfc] sm:$0xf]
        %v1660 = vld [vmem:[%s3 + $0x100] sm:$0xf]
        %v1661 = vld [vmem:[%s3 + $0x104] sm:$0xf]
        %v1662 = vld [vmem:[%s3 + $0x108] sm:$0xf]
        %v1663 = vld [vmem:[%s3 + $0x10c] sm:$0xf]
        %v1664 = vld [vmem:[%s3 + $0x110] sm:$0xf]
        %v1665 = vld [vmem:[%s3 + $0x114] sm:$0xf]
        %v1666 = vld [vmem:[%s3 + $0x118] sm:$0xf]
        %v1667 = vld [vmem:[%s3 + $0x11c] sm:$0xf]
        %v1668 = vld [vmem:[%s4] sm:$0x1]
        %v1670 = vlaneseq
        %v1671 = vshrl.u32 %v1670, 7
        %v1672 = vsub.s32 0, %v1671
        %v1673 = vrot.slane %v1668, %v1672
        %v1747 = vunpack.c.l.b16 %v1596
        %v1748 = vunpack.c.l.b16 %v1597
        %v1749 = vunpack.c.l.b16 %v1598
        %v1750 = vunpack.c.l.b16 %v1599
        %v1751 = vunpack.c.l.b16 %v1600
        %v1752 = vunpack.c.l.b16 %v1601
        %v1753 = vunpack.c.l.b16 %v1602
        %v1754 = vunpack.c.l.b16 %v1603
        %v1755 = vunpack.c.l.b16 %v1604
        %v1756 = vunpack.c.l.b16 %v1605
        %v1757 = vunpack.c.l.b16 %v1606
        %v1758 = vunpack.c.l.b16 %v1607
        %v1759 = vunpack.c.l.b16 %v1608
        %v1760 = vunpack.c.l.b16 %v1609
        %v1761 = vunpack.c.l.b16 %v1610
        %v1762 = vunpack.c.l.b16 %v1611
        %v1763 = vunpack.c.l.b16 %v1612
        %v1764 = vunpack.c.l.b16 %v1613
        %v1765 = vunpack.c.l.b16 %v1614
        %v1766 = vunpack.c.l.b16 %v1615
        %v1767 = vunpack.c.l.b16 %v1616
        %v1768 = vunpack.c.l.b16 %v1617
        %v1769 = vunpack.c.l.b16 %v1618
        %v1770 = vunpack.c.l.b16 %v1619
        %v1771 = vunpack.c.l.b16 %v1620
        %v1772 = vunpack.c.l.b16 %v1621
        %v1773 = vunpack.c.l.b16 %v1622
        %v1774 = vunpack.c.l.b16 %v1623
        %v1775 = vunpack.c.l.b16 %v1624
        %v1776 = vunpack.c.l.b16 %v1625
        %v1777 = vunpack.c.l.b16 %v1626
        %v1778 = vunpack.c.l.b16 %v1627
        %v1779 = vunpack.c.l.b16 %v1628
        %v1780 = vunpack.c.l.b16 %v1629
        %v1781 = vunpack.c.l.b16 %v1630
        %v1782 = vunpack.c.l.b16 %v1631
        %v1783 = vunpack.c.l.b16 %v1632
        %v1784 = vunpack.c.l.b16 %v1633
        %v1785 = vunpack.c.l.b16 %v1634
        %v1786 = vunpack.c.l.b16 %v1635
        %v1787 = vunpack.c.l.b16 %v1636
        %v1788 = vunpack.c.l.b16 %v1637
        %v1789 = vunpack.c.l.b16 %v1638
        %v1790 = vunpack.c.l.b16 %v1639
        %v1791 = vunpack.c.l.b16 %v1640
        %v1792 = vunpack.c.l.b16 %v1641
        %v1793 = vunpack.c.l.b16 %v1642
        %v1794 = vunpack.c.l.b16 %v1643
        %v1795 = vunpack.c.l.b16 %v1644
        %v1796 = vunpack.c.l.b16 %v1645
        %v1797 = vunpack.c.l.b16 %v1646
        %v1798 = vunpack.c.l.b16 %v1647
        %v1799 = vunpack.c.l.b16 %v1648
        %v1800 = vunpack.c.l.b16 %v1649
        %v1801 = vunpack.c.l.b16 %v1650
        %v1802 = vunpack.c.l.b16 %v1651
        %v1803 = vunpack.c.l.b16 %v1652
        %v1804 = vunpack.c.l.b16 %v1653
        %v1805 = vunpack.c.l.b16 %v1654
        %v1806 = vunpack.c.l.b16 %v1655
        %v1807 = vunpack.c.l.b16 %v1656
        %v1808 = vunpack.c.l.b16 %v1657
        %v1809 = vunpack.c.l.b16 %v1658
        %v1810 = vunpack.c.l.b16 %v1659
        %v1811 = vunpack.c.l.b16 %v1660
        %v1812 = vunpack.c.l.b16 %v1661
        %v1813 = vunpack.c.l.b16 %v1662
        %v1814 = vunpack.c.l.b16 %v1663
        %v1815 = vunpack.c.l.b16 %v1664
        %v1816 = vunpack.c.l.b16 %v1665
        %v1817 = vunpack.c.l.b16 %v1666
        %v1818 = vunpack.c.l.b16 %v1667
        %v1819 = vpack.c.b16 %v1748, %v1747
        %v1820 = vpack.c.b16 %v1750, %v1749
        %v1821 = vpack.c.b16 %v1752, %v1751
        %v1822 = vpack.c.b16 %v1754, %v1753
        %v1823 = vpack.c.b16 %v1756, %v1755
        %v1824 = vpack.c.b16 %v1758, %v1757
        %v1825 = vpack.c.b16 %v1760, %v1759
        %v1826 = vpack.c.b16 %v1762, %v1761
        %v1827 = vpack.c.b16 %v1764, %v1763
        %v1828 = vpack.c.b16 %v1766, %v1765
        %v1829 = vpack.c.b16 %v1768, %v1767
        %v1830 = vpack.c.b16 %v1770, %v1769
        %v1831 = vpack.c.b16 %v1772, %v1771
        %v1832 = vpack.c.b16 %v1774, %v1773
        %v1833 = vpack.c.b16 %v1776, %v1775
        %v1834 = vpack.c.b16 %v1778, %v1777
        %v1835 = vpack.c.b16 %v1780, %v1779
        %v1836 = vpack.c.b16 %v1782, %v1781
        %v1837 = vpack.c.b16 %v1784, %v1783
        %v1838 = vpack.c.b16 %v1786, %v1785
        %v1839 = vpack.c.b16 %v1788, %v1787
        %v1840 = vpack.c.b16 %v1790, %v1789
        %v1841 = vpack.c.b16 %v1792, %v1791
        %v1842 = vpack.c.b16 %v1794, %v1793
        %v1843 = vpack.c.b16 %v1796, %v1795
        %v1844 = vpack.c.b16 %v1798, %v1797
        %v1845 = vpack.c.b16 %v1800, %v1799
        %v1846 = vpack.c.b16 %v1802, %v1801
        %v1847 = vpack.c.b16 %v1804, %v1803
        %v1848 = vpack.c.b16 %v1806, %v1805
        %v1849 = vpack.c.b16 %v1808, %v1807
        %v1850 = vpack.c.b16 %v1810, %v1809
        %v1851 = vpack.c.b16 %v1812, %v1811
        %v1852 = vpack.c.b16 %v1814, %v1813
        %v1853 = vpack.c.b16 %v1816, %v1815
        %v1854 = vpack.c.b16 %v1818, %v1817
        %v1892 = vsel %vm607, %v1520, 0
        %v1895 = vsel %vm607, %v1525, 0
        %v1898 = vsel %vm607, %v1530, 0
        %v1901 = vsel %vm607, %v1535, 0
        %v1904 = vsel %vm607, %v1540, 0
        %v1907 = vsel %vm607, %v1545, 0
        %v1910 = vsel %vm607, %v1550, 0
        %v1913 = vsel %vm607, %v1555, 0
        %v1916 = vsel %vm607, %v1560, 0
        %v1919 = vsel %vm607, %v1565, 0
        %v1922 = vsel %vm607, %v1570, 0
        %v1925 = vsel %vm607, %v1575, 0
        %v1928 = vsel %vm607, %v1580, 0
        %v1931 = vsel %vm607, %v1585, 0
        %v1934 = vsel %vm607, %v1590, 0
        %v1937 = vsel %vm607, %v1595, 0
        %1939 = vmatprep.subr.bf16.mxu0 0
        %1940 = vmatpush1.bf16.msra.mxu0 %v1819
        %1941 = vmatprep.subr.bf16.mxu0 0
        %1942 = vmatpush1.bf16.msra.mxu0 %v1820
        %1943 = vmatprep.subr.bf16.mxu0 0
        %1944 = vmatpush1.bf16.msra.mxu0 %v1821
        %1945 = vmatprep.subr.bf16.mxu0 0
        %1946 = vmatpush1.bf16.msra.mxu0 %v1822
        %1947 = vmatprep.subr.bf16.mxu0 0
        %1948 = vmatpush1.bf16.msra.mxu0 %v1823
        %1949 = vmatprep.subr.bf16.mxu0 0
        %1950 = vmatpush1.bf16.msra.mxu0 %v1824
        %1951 = vmatprep.subr.bf16.mxu0 0
        %1952 = vmatpush1.bf16.msra.mxu0 %v1825
        %1953 = vmatprep.subr.bf16.mxu0 0
        %1954 = vmatpush1.bf16.msra.mxu0 %v1826
        %1955 = vmatprep.subr.bf16.mxu0 0
        %1956 = vmatpush1.bf16.msra.mxu0 %v1827
        %1957 = vmatprep.subr.bf16.mxu0 0
        %1958 = vmatpush1.bf16.msra.mxu0 %v1828
        %1959 = vmatprep.subr.bf16.mxu0 0
        %1960 = vmatpush1.bf16.msra.mxu0 %v1829
        %1961 = vmatprep.subr.bf16.mxu0 0
        %1962 = vmatpush1.bf16.msra.mxu0 %v1830
        %1963 = vmatprep.subr.bf16.mxu0 0
        %1964 = vmatpush1.bf16.msra.mxu0 %v1831
        %1965 = vmatprep.subr.bf16.mxu0 0
        %1966 = vmatpush1.bf16.msra.mxu0 %v1832
        %1967 = vmatprep.subr.bf16.mxu0 0
        %1968 = vmatpush1.bf16.msra.mxu0 %v1833
        %1969 = vmatprep.subr.bf16.mxu0 0
        %1970 = vmatpush1.bf16.msra.mxu0 %v1834
        %1971 = vmatprep.mubr.bf16.mxu0 %v1517
        %1972 = vmatmul.mubr.bf16.gmra.mrb[0].mxu0 %v1516
        %v1973 = vpop.f32.mrb[0].mxu0
        %v1974 = vadd.f32 %v1673, %v1973
        %v1975 = vpop.f32.mrb[0].mxu0
        %v1976 = vpop.f32.mrb[0].mxu0
        %v1977 = vadd.f32 %v1673, %v1976
        %v1978 = vpop.f32.mrb[0].mxu0
        %1979 = vmatprep.mubr.bf16.mxu0 %v1522
        %1980 = vmatmul.mubr.bf16.gmra.mrb[0].mxu0 %v1521
        %v1981 = vpop.f32.mrb[0].mxu0
        %v1982 = vadd.f32 %v1673, %v1981
        %v1983 = vpop.f32.mrb[0].mxu0
        %v1984 = vpop.f32.mrb[0].mxu0
        %v1985 = vadd.f32 %v1673, %v1984
        %v1986 = vpop.f32.mrb[0].mxu0
        %1987 = vmatprep.mubr.bf16.mxu0 %v1527
        %1988 = vmatmul.mubr.bf16.gmra.mrb[0].mxu0 %v1526
        %v1989 = vpop.f32.mrb[0].mxu0
        %v1990 = vadd.f32 %v1673, %v1989
        %v1991 = vpop.f32.mrb[0].mxu0
        %v1992 = vpop.f32.mrb[0].mxu0
        %v1993 = vadd.f32 %v1673, %v1992
        %v1994 = vpop.f32.mrb[0].mxu0
        %1995 = vmatprep.mubr.bf16.mxu0 %v1532
        %1996 = vmatmul.mubr.bf16.gmra.mrb[0].mxu0 %v1531
        %v1997 = vpop.f32.mrb[0].mxu0
        %v1998 = vadd.f32 %v1673, %v1997
        %v1999 = vpop.f32.mrb[0].mxu0
        %v2000 = vpop.f32.mrb[0].mxu0
        %v2001 = vadd.f32 %v1673, %v2000
        %v2002 = vpop.f32.mrb[0].mxu0
        %2003 = vmatprep.mubr.bf16.mxu0 %v1537
        %2004 = vmatmul.mubr.bf16.gmra.mrb[0].mxu0 %v1536
        %v2005 = vpop.f32.mrb[0].mxu0
        %v2006 = vadd.f32 %v1673, %v2005
        %v2007 = vpop.f32.mrb[0].mxu0
        %v2008 = vpop.f32.mrb[0].mxu0
        %v2009 = vadd.f32 %v1673, %v2008
        %v2010 = vpop.f32.mrb[0].mxu0
        %2011 = vmatprep.mubr.bf16.mxu0 %v1542
        %2012 = vmatmul.mubr.bf16.gmra.mrb[0].mxu0 %v1541
        %v2013 = vpop.f32.mrb[0].mxu0
        %v2014 = vadd.f32 %v1673, %v2013
        %v2015 = vpop.f32.mrb[0].mxu0
        %v2016 = vpop.f32.mrb[0].mxu0
        %v2017 = vadd.f32 %v1673, %v2016
        %v2018 = vpop.f32.mrb[0].mxu0
        %2019 = vmatprep.mubr.bf16.mxu0 %v1547
        %2020 = vmatmul.mubr.bf16.gmra.mrb[0].mxu0 %v1546
        %v2021 = vpop.f32.mrb[0].mxu0
        %v2022 = vadd.f32 %v1673, %v2021
        %v2023 = vpop.f32.mrb[0].mxu0
        %v2024 = vpop.f32.mrb[0].mxu0
        %v2025 = vadd.f32 %v1673, %v2024
        %v2026 = vpop.f32.mrb[0].mxu0
        %2027 = vmatprep.mubr.bf16.mxu0 %v1552
        %2028 = vmatmul.mubr.bf16.gmra.mrb[0].mxu0 %v1551
        %v2029 = vpop.f32.mrb[0].mxu0
        %v2030 = vadd.f32 %v1673, %v2029
        %v2031 = vpop.f32.mrb[0].mxu0
        %v2032 = vpop.f32.mrb[0].mxu0
        %v2033 = vadd.f32 %v1673, %v2032
        %v2034 = vpop.f32.mrb[0].mxu0
        %2035 = vmatprep.mubr.bf16.mxu0 %v1557
        %2036 = vmatmul.mubr.bf16.gmra.mrb[0].mxu0 %v1556
        %v2037 = vpop.f32.mrb[0].mxu0
        %v2038 = vadd.f32 %v1673, %v2037
        %v2039 = vpop.f32.mrb[0].mxu0
        %v2040 = vpop.f32.mrb[0].mxu0
        %v2041 = vadd.f32 %v1673, %v2040
        %v2042 = vpop.f32.mrb[0].mxu0
        %2043 = vmatprep.mubr.bf16.mxu0 %v1562
        %2044 = vmatmul.mubr.bf16.gmra.mrb[0].mxu0 %v1561
        %v2045 = vpop.f32.mrb[0].mxu0
        %v2046 = vadd.f32 %v1673, %v2045
        %v2047 = vpop.f32.mrb[0].mxu0
        %v2048 = vpop.f32.mrb[0].mxu0
        %v2049 = vadd.f32 %v1673, %v2048
        %v2050 = vpop.f32.mrb[0].mxu0
        %2051 = vmatprep.mubr.bf16.mxu0 %v1567
        %2052 = vmatmul.mubr.bf16.gmra.mrb[0].mxu0 %v1566
        %v2053 = vpop.f32.mrb[0].mxu0
        %v2054 = vadd.f32 %v1673, %v2053
        %v2055 = vpop.f32.mrb[0].mxu0
        %v2056 = vpop.f32.mrb[0].mxu0
        %v2057 = vadd.f32 %v1673, %v2056
        %v2058 = vpop.f32.mrb[0].mxu0
        %2059 = vmatprep.mubr.bf16.mxu0 %v1572
        %2060 = vmatmul.mubr.bf16.gmra.mrb[0].mxu0 %v1571
        %v2061 = vpop.f32.mrb[0].mxu0
        %v2062 = vadd.f32 %v1673, %v2061
        %v2063 = vpop.f32.mrb[0].mxu0
        %v2064 = vpop.f32.mrb[0].mxu0
        %v2065 = vadd.f32 %v1673, %v2064
        %v2066 = vpop.f32.mrb[0].mxu0
        %2067 = vmatprep.mubr.bf16.mxu0 %v1577
        %2068 = vmatmul.mubr.bf16.gmra.mrb[0].mxu0 %v1576
        %v2069 = vpop.f32.mrb[0].mxu0
        %v2070 = vadd.f32 %v1673, %v2069
        %v2071 = vpop.f32.mrb[0].mxu0
        %v2072 = vpop.f32.mrb[0].mxu0
        %v2073 = vadd.f32 %v1673, %v2072
        %v2074 = vpop.f32.mrb[0].mxu0
        %2075 = vmatprep.mubr.bf16.mxu0 %v1582
        %2076 = vmatmul.mubr.bf16.gmra.mrb[0].mxu0 %v1581
        %v2077 = vpop.f32.mrb[0].mxu0
        %v2078 = vadd.f32 %v1673, %v2077
        %v2079 = vpop.f32.mrb[0].mxu0
        %v2080 = vpop.f32.mrb[0].mxu0
        %v2081 = vadd.f32 %v1673, %v2080
        %v2082 = vpop.f32.mrb[0].mxu0
        %2083 = vmatprep.mubr.bf16.mxu0 %v1587
        %2084 = vmatmul.mubr.bf16.gmra.mrb[0].mxu0 %v1586
        %v2085 = vpop.f32.mrb[0].mxu0
        %v2086 = vadd.f32 %v1673, %v2085
        %v2087 = vpop.f32.mrb[0].mxu0
        %v2088 = vpop.f32.mrb[0].mxu0
        %v2089 = vadd.f32 %v1673, %v2088
        %v2090 = vpop.f32.mrb[0].mxu0
        %2091 = vmatprep.mubr.bf16.mxu0 %v1592
        %2092 = vmatmul.mubr.bf16.gmra.mrb[0].mxu0 %v1591
        %v2093 = vpop.f32.mrb[0].mxu0
        %v2094 = vadd.f32 %v1673, %v2093
        %v2095 = vpop.f32.mrb[0].mxu0
        %v2096 = vpop.f32.mrb[0].mxu0
        %v2097 = vadd.f32 %v1673, %v2096
        %v2098 = vpop.f32.mrb[0].mxu0
        %2099 = vdwg.mxu0
        %2100 = vmatprep.subr.bf16.mxu0 0
        %2101 = vmatpush1.bf16.msra.mxu0 %v1835
        %2102 = vmatprep.subr.bf16.mxu0 0
        %2103 = vmatpush1.bf16.msra.mxu0 %v1836
        %2104 = vmatprep.subr.bf16.mxu0 0
        %2105 = vmatpush1.bf16.msra.mxu0 %v1837
        %2106 = vmatprep.subr.bf16.mxu0 0
        %2107 = vmatpush1.bf16.msra.mxu0 %v1838
        %2108 = vmatprep.subr.bf16.mxu0 0
        %2109 = vmatpush1.bf16.msra.mxu0 %v1839
        %2110 = vmatprep.subr.bf16.mxu0 0
        %2111 = vmatpush1.bf16.msra.mxu0 %v1840
        %2112 = vmatprep.subr.bf16.mxu0 0
        %2113 = vmatpush1.bf16.msra.mxu0 %v1841
        %2114 = vmatprep.subr.bf16.mxu0 0
        %2115 = vmatpush1.bf16.msra.mxu0 %v1842
        %2116 = vmatprep.subr.bf16.mxu0 0
        %2117 = vmatpush1.bf16.msra.mxu0 %v1843
        %2118 = vmatprep.subr.bf16.mxu0 0
        %2119 = vmatpush1.bf16.msra.mxu0 %v1844
        %2120 = vmatprep.subr.bf16.mxu0 0
        %2121 = vmatpush1.bf16.msra.mxu0 %v1845
        %2122 = vmatprep.subr.bf16.mxu0 0
        %2123 = vmatpush1.bf16.msra.mxu0 %v1846
        %2124 = vmatprep.subr.bf16.mxu0 0
        %2125 = vmatpush1.bf16.msra.mxu0 %v1847
        %2126 = vmatprep.subr.bf16.mxu0 0
        %2127 = vmatpush1.bf16.msra.mxu0 %v1848
        %2128 = vmatprep.subr.bf16.mxu0 0
        %2129 = vmatpush1.bf16.msra.mxu0 %v1849
        %2130 = vmatprep.subr.bf16.mxu0 0
        %2131 = vmatpush1.bf16.msra.mxu0 %v1850
        %2132 = vmatprep.mubr.bf16.mxu0 %v1519
        %2133 = vmatmul.mubr.bf16.gmra.mrb[0].mxu0 %v1518
        %v2134 = vpop.f32.mrb[0].mxu0
        %v2135 = vadd.f32 %v1974, %v2134
        %v2136 = vpop.f32.mrb[0].mxu0
        %v2137 = vpop.f32.mrb[0].mxu0
        %v2138 = vadd.f32 %v1977, %v2137
        %v2139 = vpop.f32.mrb[0].mxu0
        %2140 = vmatprep.mubr.bf16.mxu0 %v1524
        %2141 = vmatmul.mubr.bf16.gmra.mrb[0].mxu0 %v1523
        %v2142 = vpop.f32.mrb[0].mxu0
        %v2143 = vadd.f32 %v1982, %v2142
        %v2144 = vpop.f32.mrb[0].mxu0
        %v2145 = vpop.f32.mrb[0].mxu0
        %v2146 = vadd.f32 %v1985, %v2145
        %v2147 = vpop.f32.mrb[0].mxu0
        %2148 = vmatprep.mubr.bf16.mxu0 %v1529
        %2149 = vmatmul.mubr.bf16.gmra.mrb[0].mxu0 %v1528
        %v2150 = vpop.f32.mrb[0].mxu0
        %v2151 = vadd.f32 %v1990, %v2150
        %v2152 = vpop.f32.mrb[0].mxu0
        %v2153 = vpop.f32.mrb[0].mxu0
        %v2154 = vadd.f32 %v1993, %v2153
        %v2155 = vpop.f32.mrb[0].mxu0
        %2156 = vmatprep.mubr.bf16.mxu0 %v1534
        %2157 = vmatmul.mubr.bf16.gmra.mrb[0].mxu0 %v1533
        %v2158 = vpop.f32.mrb[0].mxu0
        %v2159 = vadd.f32 %v1998, %v2158
        %v2160 = vpop.f32.mrb[0].mxu0
        %v2161 = vpop.f32.mrb[0].mxu0
        %v2162 = vadd.f32 %v2001, %v2161
        %v2163 = vpop.f32.mrb[0].mxu0
        %2164 = vmatprep.mubr.bf16.mxu0 %v1539
        %2165 = vmatmul.mubr.bf16.gmra.mrb[0].mxu0 %v1538
        %v2166 = vpop.f32.mrb[0].mxu0
        %v2167 = vadd.f32 %v2006, %v2166
        %v2168 = vpop.f32.mrb[0].mxu0
        %v2169 = vpop.f32.mrb[0].mxu0
        %v2170 = vadd.f32 %v2009, %v2169
        %v2171 = vpop.f32.mrb[0].mxu0
        %2172 = vmatprep.mubr.bf16.mxu0 %v1544
        %2173 = vmatmul.mubr.bf16.gmra.mrb[0].mxu0 %v1543
        %v2174 = vpop.f32.mrb[0].mxu0
        %v2175 = vadd.f32 %v2014, %v2174
        %v2176 = vpop.f32.mrb[0].mxu0
        %v2177 = vpop.f32.mrb[0].mxu0
        %v2178 = vadd.f32 %v2017, %v2177
        %v2179 = vpop.f32.mrb[0].mxu0
        %2180 = vmatprep.mubr.bf16.mxu0 %v1549
        %2181 = vmatmul.mubr.bf16.gmra.mrb[0].mxu0 %v1548
        %v2182 = vpop.f32.mrb[0].mxu0
        %v2183 = vadd.f32 %v2022, %v2182
        %v2184 = vpop.f32.mrb[0].mxu0
        %v2185 = vpop.f32.mrb[0].mxu0
        %v2186 = vadd.f32 %v2025, %v2185
        %v2187 = vpop.f32.mrb[0].mxu0
        %2188 = vmatprep.mubr.bf16.mxu0 %v1554
        %2189 = vmatmul.mubr.bf16.gmra.mrb[0].mxu0 %v1553
        %v2190 = vpop.f32.mrb[0].mxu0
        %v2191 = vadd.f32 %v2030, %v2190
        %v2192 = vpop.f32.mrb[0].mxu0
        %v2193 = vpop.f32.mrb[0].mxu0
        %v2194 = vadd.f32 %v2033, %v2193
        %v2195 = vpop.f32.mrb[0].mxu0
        %2196 = vmatprep.mubr.bf16.mxu0 %v1559
        %2197 = vmatmul.mubr.bf16.gmra.mrb[0].mxu0 %v1558
        %v2198 = vpop.f32.mrb[0].mxu0
        %v2199 = vadd.f32 %v2038, %v2198
        %v2200 = vpop.f32.mrb[0].mxu0
        %v2201 = vpop.f32.mrb[0].mxu0
        %v2202 = vadd.f32 %v2041, %v2201
        %v2203 = vpop.f32.mrb[0].mxu0
        %2204 = vmatprep.mubr.bf16.mxu0 %v1564
        %2205 = vmatmul.mubr.bf16.gmra.mrb[0].mxu0 %v1563
        %v2206 = vpop.f32.mrb[0].mxu0
        %v2207 = vadd.f32 %v2046, %v2206
        %v2208 = vpop.f32.mrb[0].mxu0
        %v2209 = vpop.f32.mrb[0].mxu0
        %v2210 = vadd.f32 %v2049, %v2209
        %v2211 = vpop.f32.mrb[0].mxu0
        %2212 = vmatprep.mubr.bf16.mxu0 %v1569
        %2213 = vmatmul.mubr.bf16.gmra.mrb[0].mxu0 %v1568
        %v2214 = vpop.f32.mrb[0].mxu0
        %v2215 = vadd.f32 %v2054, %v2214
        %v2216 = vpop.f32.mrb[0].mxu0
        %v2217 = vpop.f32.mrb[0].mxu0
        %v2218 = vadd.f32 %v2057, %v2217
        %v2219 = vpop.f32.mrb[0].mxu0
        %2220 = vmatprep.mubr.bf16.mxu0 %v1574
        %2221 = vmatmul.mubr.bf16.gmra.mrb[0].mxu0 %v1573
        %v2222 = vpop.f32.mrb[0].mxu0
        %v2223 = vadd.f32 %v2062, %v2222
        %v2224 = vpop.f32.mrb[0].mxu0
        %v2225 = vpop.f32.mrb[0].mxu0
        %v2226 = vadd.f32 %v2065, %v2225
        %v2227 = vpop.f32.mrb[0].mxu0
        %2228 = vmatprep.mubr.bf16.mxu0 %v1579
        %2229 = vmatmul.mubr.bf16.gmra.mrb[0].mxu0 %v1578
        %v2230 = vpop.f32.mrb[0].mxu0
        %v2231 = vadd.f32 %v2070, %v2230
        %v2232 = vpop.f32.mrb[0].mxu0
        %v2233 = vpop.f32.mrb[0].mxu0
        %v2234 = vadd.f32 %v2073, %v2233
        %v2235 = vpop.f32.mrb[0].mxu0
        %2236 = vmatprep.mubr.bf16.mxu0 %v1584
        %2237 = vmatmul.mubr.bf16.gmra.mrb[0].mxu0 %v1583
        %v2238 = vpop.f32.mrb[0].mxu0
        %v2239 = vadd.f32 %v2078, %v2238
        %v2240 = vpop.f32.mrb[0].mxu0
        %v2241 = vpop.f32.mrb[0].mxu0
        %v2242 = vadd.f32 %v2081, %v2241
        %v2243 = vpop.f32.mrb[0].mxu0
        %2244 = vmatprep.mubr.bf16.mxu0 %v1589
        %2245 = vmatmul.mubr.bf16.gmra.mrb[0].mxu0 %v1588
        %v2246 = vpop.f32.mrb[0].mxu0
        %v2247 = vadd.f32 %v2086, %v2246
        %v2248 = vpop.f32.mrb[0].mxu0
        %v2249 = vpop.f32.mrb[0].mxu0
        %v2250 = vadd.f32 %v2089, %v2249
        %v2251 = vpop.f32.mrb[0].mxu0
        %2252 = vmatprep.mubr.bf16.mxu0 %v1594
        %2253 = vmatmul.mubr.bf16.gmra.mrb[0].mxu0 %v1593
        %v2254 = vpop.f32.mrb[0].mxu0
        %v2255 = vadd.f32 %v2094, %v2254
        %v2256 = vpop.f32.mrb[0].mxu0
        %v2257 = vpop.f32.mrb[0].mxu0
        %v2258 = vadd.f32 %v2097, %v2257
        %v2259 = vpop.f32.mrb[0].mxu0
        %2260 = vdwg.mxu0
        %2261 = vmatprep.subr.bf16.mxu0 0
        %2262 = vmatpush1.bf16.msra.mxu0 %v1851
        %2263 = vmatprep.subr.bf16.mxu0 0
        %2264 = vmatpush1.bf16.msra.mxu0 %v1852
        %2265 = vmatprep.subr.bf16.mxu0 0
        %2266 = vmatpush1.bf16.msra.mxu0 %v1853
        %2267 = vmatprep.subr.bf16.mxu0 0
        %2268 = vmatpush1.bf16.msra.mxu0 %v1854
        %2269 = vmatprep.subr.bf16.mxu0 0
        %2270 = vmatpush1.bf16.msra.mxu0 0
        %2271 = vmatprep.subr.bf16.mxu0 0
        %2272 = vmatpush1.bf16.msra.mxu0 0
        %2273 = vmatprep.subr.bf16.mxu0 0
        %2274 = vmatpush1.bf16.msra.mxu0 0
        %2275 = vmatprep.subr.bf16.mxu0 0
        %2276 = vmatpush1.bf16.msra.mxu0 0
        %2277 = vmatprep.subr.bf16.mxu0 0
        %2278 = vmatpush1.bf16.msra.mxu0 0
        %2279 = vmatprep.subr.bf16.mxu0 0
        %2280 = vmatpush1.bf16.msra.mxu0 0
        %2281 = vmatprep.subr.bf16.mxu0 0
        %2282 = vmatpush1.bf16.msra.mxu0 0
        %2283 = vmatprep.subr.bf16.mxu0 0
        %2284 = vmatpush1.bf16.msra.mxu0 0
        %2285 = vmatprep.subr.bf16.mxu0 0
        %2286 = vmatpush1.bf16.msra.mxu0 0
        %2287 = vmatprep.subr.bf16.mxu0 0
        %2288 = vmatpush1.bf16.msra.mxu0 0
        %2289 = vmatprep.subr.bf16.mxu0 0
        %2290 = vmatpush1.bf16.msra.mxu0 0
        %2291 = vmatprep.subr.bf16.mxu0 0
        %2292 = vmatpush1.bf16.msra.mxu0 0
        %2293 = vmatprep.mubr.bf16.mxu0 0
        %2294 = vmatmul.mubr.bf16.gmra.mrb[0].mxu0 %v1892
        %v2295 = vpop.f32.mrb[0].mxu0
        %v2296 = vadd.f32 %v2135, %v2295
        %v2297 = vpop.f32.mrb[0].mxu0
        %v2298 = vpop.f32.mrb[0].mxu0
        %v2299 = vadd.f32 %v2138, %v2298
        %v2300 = vpop.f32.mrb[0].mxu0
        %2301 = vmatprep.mubr.bf16.mxu0 0
        %2302 = vmatmul.mubr.bf16.gmra.mrb[0].mxu0 %v1895
        %v2303 = vpop.f32.mrb[0].mxu0
        %v2304 = vadd.f32 %v2143, %v2303
        %v2305 = vpop.f32.mrb[0].mxu0
        %v2306 = vpop.f32.mrb[0].mxu0
        %v2307 = vadd.f32 %v2146, %v2306
        %v2308 = vpop.f32.mrb[0].mxu0
        %2309 = vmatprep.mubr.bf16.mxu0 0
        %2310 = vmatmul.mubr.bf16.gmra.mrb[0].mxu0 %v1898
        %v2311 = vpop.f32.mrb[0].mxu0
        %v2312 = vadd.f32 %v2151, %v2311
        %v2313 = vpop.f32.mrb[0].mxu0
        %v2314 = vpop.f32.mrb[0].mxu0
        %v2315 = vadd.f32 %v2154, %v2314
        %v2316 = vpop.f32.mrb[0].mxu0
        %2317 = vmatprep.mubr.bf16.mxu0 0
        %2318 = vmatmul.mubr.bf16.gmra.mrb[0].mxu0 %v1901
        %v2319 = vpop.f32.mrb[0].mxu0
        %v2320 = vadd.f32 %v2159, %v2319
        %v2321 = vpop.f32.mrb[0].mxu0
        %v2322 = vpop.f32.mrb[0].mxu0
        %v2323 = vadd.f32 %v2162, %v2322
        %v2324 = vpop.f32.mrb[0].mxu0
        %2325 = vmatprep.mubr.bf16.mxu0 0
        %2326 = vmatmul.mubr.bf16.gmra.mrb[0].mxu0 %v1904
        %v2327 = vpop.f32.mrb[0].mxu0
        %v2328 = vadd.f32 %v2167, %v2327
        %v2329 = vpop.f32.mrb[0].mxu0
        %v2330 = vpop.f32.mrb[0].mxu0
        %v2331 = vadd.f32 %v2170, %v2330
        %v2332 = vpop.f32.mrb[0].mxu0
        %2333 = vmatprep.mubr.bf16.mxu0 0
        %2334 = vmatmul.mubr.bf16.gmra.mrb[0].mxu0 %v1907
        %v2335 = vpop.f32.mrb[0].mxu0
        %v2336 = vadd.f32 %v2175, %v2335
        %v2337 = vpop.f32.mrb[0].mxu0
        %v2338 = vpop.f32.mrb[0].mxu0
        %v2339 = vadd.f32 %v2178, %v2338
        %v2340 = vpop.f32.mrb[0].mxu0
        %2341 = vmatprep.mubr.bf16.mxu0 0
        %2342 = vmatmul.mubr.bf16.gmra.mrb[0].mxu0 %v1910
        %v2343 = vpop.f32.mrb[0].mxu0
        %v2344 = vadd.f32 %v2183, %v2343
        %v2345 = vpop.f32.mrb[0].mxu0
        %v2346 = vpop.f32.mrb[0].mxu0
        %v2347 = vadd.f32 %v2186, %v2346
        %v2348 = vpop.f32.mrb[0].mxu0
        %2349 = vmatprep.mubr.bf16.mxu0 0
        %2350 = vmatmul.mubr.bf16.gmra.mrb[0].mxu0 %v1913
        %v2351 = vpop.f32.mrb[0].mxu0
        %v2352 = vadd.f32 %v2191, %v2351
        %v2353 = vpop.f32.mrb[0].mxu0
        %v2354 = vpop.f32.mrb[0].mxu0
        %v2355 = vadd.f32 %v2194, %v2354
        %v2356 = vpop.f32.mrb[0].mxu0
        %2357 = vmatprep.mubr.bf16.mxu0 0
        %2358 = vmatmul.mubr.bf16.gmra.mrb[0].mxu0 %v1916
        %v2359 = vpop.f32.mrb[0].mxu0
        %v2360 = vadd.f32 %v2199, %v2359
        %v2361 = vpop.f32.mrb[0].mxu0
        %v2362 = vpop.f32.mrb[0].mxu0
        %v2363 = vadd.f32 %v2202, %v2362
        %v2364 = vpop.f32.mrb[0].mxu0
        %2365 = vmatprep.mubr.bf16.mxu0 0
        %2366 = vmatmul.mubr.bf16.gmra.mrb[0].mxu0 %v1919
        %v2367 = vpop.f32.mrb[0].mxu0
        %v2368 = vadd.f32 %v2207, %v2367
        %v2369 = vpop.f32.mrb[0].mxu0
        %v2370 = vpop.f32.mrb[0].mxu0
        %v2371 = vadd.f32 %v2210, %v2370
        %v2372 = vpop.f32.mrb[0].mxu0
        %2373 = vmatprep.mubr.bf16.mxu0 0
        %2374 = vmatmul.mubr.bf16.gmra.mrb[0].mxu0 %v1922
        %v2375 = vpop.f32.mrb[0].mxu0
        %v2376 = vadd.f32 %v2215, %v2375
        %v2377 = vpop.f32.mrb[0].mxu0
        %v2378 = vpop.f32.mrb[0].mxu0
        %v2379 = vadd.f32 %v2218, %v2378
        %v2380 = vpop.f32.mrb[0].mxu0
        %2381 = vmatprep.mubr.bf16.mxu0 0
        %2382 = vmatmul.mubr.bf16.gmra.mrb[0].mxu0 %v1925
        %v2383 = vpop.f32.mrb[0].mxu0
        %v2384 = vadd.f32 %v2223, %v2383
        %v2385 = vpop.f32.mrb[0].mxu0
        %v2386 = vpop.f32.mrb[0].mxu0
        %v2387 = vadd.f32 %v2226, %v2386
        %v2388 = vpop.f32.mrb[0].mxu0
        %2389 = vmatprep.mubr.bf16.mxu0 0
        %2390 = vmatmul.mubr.bf16.gmra.mrb[0].mxu0 %v1928
        %v2391 = vpop.f32.mrb[0].mxu0
        %v2392 = vadd.f32 %v2231, %v2391
        %v2393 = vpop.f32.mrb[0].mxu0
        %v2394 = vpop.f32.mrb[0].mxu0
        %v2395 = vadd.f32 %v2234, %v2394
        %v2396 = vpop.f32.mrb[0].mxu0
        %2397 = vmatprep.mubr.bf16.mxu0 0
        %2398 = vmatmul.mubr.bf16.gmra.mrb[0].mxu0 %v1931
        %v2399 = vpop.f32.mrb[0].mxu0
        %v2400 = vadd.f32 %v2239, %v2399
        %v2401 = vpop.f32.mrb[0].mxu0
        %v2402 = vpop.f32.mrb[0].mxu0
        %v2403 = vadd.f32 %v2242, %v2402
        %v2404 = vpop.f32.mrb[0].mxu0
        %2405 = vmatprep.mubr.bf16.mxu0 0
        %2406 = vmatmul.mubr.bf16.gmra.mrb[0].mxu0 %v1934
        %v2407 = vpop.f32.mrb[0].mxu0
        %v2408 = vadd.f32 %v2247, %v2407
        %v2409 = vpop.f32.mrb[0].mxu0
        %v2410 = vpop.f32.mrb[0].mxu0
        %v2411 = vadd.f32 %v2250, %v2410
        %v2412 = vpop.f32.mrb[0].mxu0
        %2413 = vmatprep.mubr.bf16.mxu0 0
        %2414 = vmatmul.mubr.bf16.gmra.mrb[0].mxu0 %v1937
        %v2415 = vpop.f32.mrb[0].mxu0
        %v2416 = vadd.f32 %v2255, %v2415
        %v2417 = vpop.f32.mrb[0].mxu0
        %v2418 = vpop.f32.mrb[0].mxu0
        %v2419 = vadd.f32 %v2258, %v2418
        %v2420 = vpop.f32.mrb[0].mxu0
        %2421 = vdwg.mxu0
        %v2422 = vmax.f32 %v2296, 0.0
        %v2423 = vmax.f32 %v2299, 0.0
        %v2424 = vmax.f32 %v2304, 0.0
        %v2425 = vmax.f32 %v2307, 0.0
        %v2426 = vmax.f32 %v2312, 0.0
        %v2427 = vmax.f32 %v2315, 0.0
        %v2428 = vmax.f32 %v2320, 0.0
        %v2429 = vmax.f32 %v2323, 0.0
        %v2430 = vmax.f32 %v2328, 0.0
        %v2431 = vmax.f32 %v2331, 0.0
        %v2432 = vmax.f32 %v2336, 0.0
        %v2433 = vmax.f32 %v2339, 0.0
        %v2434 = vmax.f32 %v2344, 0.0
        %v2435 = vmax.f32 %v2347, 0.0
        %v2436 = vmax.f32 %v2352, 0.0
        %v2437 = vmax.f32 %v2355, 0.0
        %v2438 = vmax.f32 %v2360, 0.0
        %v2439 = vmax.f32 %v2363, 0.0
        %v2440 = vmax.f32 %v2368, 0.0
        %v2441 = vmax.f32 %v2371, 0.0
        %v2442 = vmax.f32 %v2376, 0.0
        %v2443 = vmax.f32 %v2379, 0.0
        %v2444 = vmax.f32 %v2384, 0.0
        %v2445 = vmax.f32 %v2387, 0.0
        %v2446 = vmax.f32 %v2392, 0.0
        %v2447 = vmax.f32 %v2395, 0.0
        %v2448 = vmax.f32 %v2400, 0.0
        %v2449 = vmax.f32 %v2403, 0.0
        %v2450 = vmax.f32 %v2408, 0.0
        %v2451 = vmax.f32 %v2411, 0.0
        %v2452 = vmax.f32 %v2416, 0.0
        %v2453 = vmax.f32 %v2419, 0.0
        %v2486 = vcombine.high %v2422, %v2422
        %v2488 = vunpack.c.l.s4 1983009808
        %v2489 = vunpack.c.0.s8 %v2488
        %v2490 = vlaneseq
        %v2491 = vshrl.u32 %v2490, 7
        %v2492 = vsub.s32 %v2489, %v2491
        %v2493 = vrot.slane %v2422, %v2492
        %v2495 = vunpack.c.l.s4 1983009808
        %v2496 = vunpack.c.0.s8 %v2495
        %v2497 = vlaneseq
        %v2498 = vshrl.u32 %v2497, 7
        %v2499 = vsub.s32 %v2496, %v2498
        %v2500 = vrot.slane %v2486, %v2499
        %v2501 = vcombine.high %v2493, %v2493
        %v2502 = vcombine.high %v2500, %v2500
        %v2503 = vcombine.high %v2423, %v2423
        %v2505 = vunpack.c.l.s4 1983009808
        %v2506 = vunpack.c.0.s8 %v2505
        %v2507 = vlaneseq
        %v2508 = vshrl.u32 %v2507, 7
        %v2509 = vsub.s32 %v2506, %v2508
        %v2510 = vrot.slane %v2423, %v2509
        %v2512 = vunpack.c.l.s4 1983009808
        %v2513 = vunpack.c.0.s8 %v2512
        %v2514 = vlaneseq
        %v2515 = vshrl.u32 %v2514, 7
        %v2516 = vsub.s32 %v2513, %v2515
        %v2517 = vrot.slane %v2503, %v2516
        %v2518 = vcombine.high %v2510, %v2510
        %v2519 = vcombine.high %v2517, %v2517
        %v2520 = vcombine.high %v2424, %v2424
        %v2522 = vunpack.c.l.s4 1983009808
        %v2523 = vunpack.c.0.s8 %v2522
        %v2524 = vlaneseq
        %v2525 = vshrl.u32 %v2524, 7
        %v2526 = vsub.s32 %v2523, %v2525
        %v2527 = vrot.slane %v2424, %v2526
        %v2529 = vunpack.c.l.s4 1983009808
        %v2530 = vunpack.c.0.s8 %v2529
        %v2531 = vlaneseq
        %v2532 = vshrl.u32 %v2531, 7
        %v2533 = vsub.s32 %v2530, %v2532
        %v2534 = vrot.slane %v2520, %v2533
        %v2535 = vcombine.high %v2527, %v2527
        %v2536 = vcombine.high %v2534, %v2534
        %v2537 = vcombine.high %v2425, %v2425
        %v2539 = vunpack.c.l.s4 1983009808
        %v2540 = vunpack.c.0.s8 %v2539
        %v2541 = vlaneseq
        %v2542 = vshrl.u32 %v2541, 7
        %v2543 = vsub.s32 %v2540, %v2542
        %v2544 = vrot.slane %v2425, %v2543
        %v2546 = vunpack.c.l.s4 1983009808
        %v2547 = vunpack.c.0.s8 %v2546
        %v2548 = vlaneseq
        %v2549 = vshrl.u32 %v2548, 7
        %v2550 = vsub.s32 %v2547, %v2549
        %v2551 = vrot.slane %v2537, %v2550
        %v2552 = vcombine.high %v2544, %v2544
        %v2553 = vcombine.high %v2551, %v2551
        %v2554 = vcombine.high %v2426, %v2426
        %v2556 = vunpack.c.l.s4 1983009808
        %v2557 = vunpack.c.0.s8 %v2556
        %v2558 = vlaneseq
        %v2559 = vshrl.u32 %v2558, 7
        %v2560 = vsub.s32 %v2557, %v2559
        %v2561 = vrot.slane %v2426, %v2560
        %v2563 = vunpack.c.l.s4 1983009808
        %v2564 = vunpack.c.0.s8 %v2563
        %v2565 = vlaneseq
        %v2566 = vshrl.u32 %v2565, 7
        %v2567 = vsub.s32 %v2564, %v2566
        %v2568 = vrot.slane %v2554, %v2567
        %v2569 = vcombine.high %v2561, %v2561
        %v2570 = vcombine.high %v2568, %v2568
        %v2571 = vcombine.high %v2427, %v2427
        %v2573 = vunpack.c.l.s4 1983009808
        %v2574 = vunpack.c.0.s8 %v2573
        %v2575 = vlaneseq
        %v2576 = vshrl.u32 %v2575, 7
        %v2577 = vsub.s32 %v2574, %v2576
        %v2578 = vrot.slane %v2427, %v2577
        %v2580 = vunpack.c.l.s4 1983009808
        %v2581 = vunpack.c.0.s8 %v2580
        %v2582 = vlaneseq
        %v2583 = vshrl.u32 %v2582, 7
        %v2584 = vsub.s32 %v2581, %v2583
        %v2585 = vrot.slane %v2571, %v2584
        %v2586 = vcombine.high %v2578, %v2578
        %v2587 = vcombine.high %v2585, %v2585
        %v2588 = vcombine.high %v2428, %v2428
        %v2590 = vunpack.c.l.s4 1983009808
        %v2591 = vunpack.c.0.s8 %v2590
        %v2592 = vlaneseq
        %v2593 = vshrl.u32 %v2592, 7
        %v2594 = vsub.s32 %v2591, %v2593
        %v2595 = vrot.slane %v2428, %v2594
        %v2597 = vunpack.c.l.s4 1983009808
        %v2598 = vunpack.c.0.s8 %v2597
        %v2599 = vlaneseq
        %v2600 = vshrl.u32 %v2599, 7
        %v2601 = vsub.s32 %v2598, %v2600
        %v2602 = vrot.slane %v2588, %v2601
        %v2603 = vcombine.high %v2595, %v2595
        %v2604 = vcombine.high %v2602, %v2602
        %v2605 = vcombine.high %v2429, %v2429
        %v2607 = vunpack.c.l.s4 1983009808
        %v2608 = vunpack.c.0.s8 %v2607
        %v2609 = vlaneseq
        %v2610 = vshrl.u32 %v2609, 7
        %v2611 = vsub.s32 %v2608, %v2610
        %v2612 = vrot.slane %v2429, %v2611
        %v2614 = vunpack.c.l.s4 1983009808
        %v2615 = vunpack.c.0.s8 %v2614
        %v2616 = vlaneseq
        %v2617 = vshrl.u32 %v2616, 7
        %v2618 = vsub.s32 %v2615, %v2617
        %v2619 = vrot.slane %v2605, %v2618
        %v2620 = vcombine.high %v2612, %v2612
        %v2621 = vcombine.high %v2619, %v2619
        %v2622 = vcombine.high %v2430, %v2430
        %v2624 = vunpack.c.l.s4 1983009808
        %v2625 = vunpack.c.0.s8 %v2624
        %v2626 = vlaneseq
        %v2627 = vshrl.u32 %v2626, 7
        %v2628 = vsub.s32 %v2625, %v2627
        %v2629 = vrot.slane %v2430, %v2628
        %v2631 = vunpack.c.l.s4 1983009808
        %v2632 = vunpack.c.0.s8 %v2631
        %v2633 = vlaneseq
        %v2634 = vshrl.u32 %v2633, 7
        %v2635 = vsub.s32 %v2632, %v2634
        %v2636 = vrot.slane %v2622, %v2635
        %v2637 = vcombine.high %v2629, %v2629
        %v2638 = vcombine.high %v2636, %v2636
        %v2639 = vcombine.high %v2431, %v2431
        %v2641 = vunpack.c.l.s4 1983009808
        %v2642 = vunpack.c.0.s8 %v2641
        %v2643 = vlaneseq
        %v2644 = vshrl.u32 %v2643, 7
        %v2645 = vsub.s32 %v2642, %v2644
        %v2646 = vrot.slane %v2431, %v2645
        %v2648 = vunpack.c.l.s4 1983009808
        %v2649 = vunpack.c.0.s8 %v2648
        %v2650 = vlaneseq
        %v2651 = vshrl.u32 %v2650, 7
        %v2652 = vsub.s32 %v2649, %v2651
        %v2653 = vrot.slane %v2639, %v2652
        %v2654 = vcombine.high %v2646, %v2646
        %v2655 = vcombine.high %v2653, %v2653
        %v2656 = vcombine.high %v2432, %v2432
        %v2658 = vunpack.c.l.s4 1983009808
        %v2659 = vunpack.c.0.s8 %v2658
        %v2660 = vlaneseq
        %v2661 = vshrl.u32 %v2660, 7
        %v2662 = vsub.s32 %v2659, %v2661
        %v2663 = vrot.slane %v2432, %v2662
        %v2665 = vunpack.c.l.s4 1983009808
        %v2666 = vunpack.c.0.s8 %v2665
        %v2667 = vlaneseq
        %v2668 = vshrl.u32 %v2667, 7
        %v2669 = vsub.s32 %v2666, %v2668
        %v2670 = vrot.slane %v2656, %v2669
        %v2671 = vcombine.high %v2663, %v2663
        %v2672 = vcombine.high %v2670, %v2670
        %v2673 = vcombine.high %v2433, %v2433
        %v2675 = vunpack.c.l.s4 1983009808
        %v2676 = vunpack.c.0.s8 %v2675
        %v2677 = vlaneseq
        %v2678 = vshrl.u32 %v2677, 7
        %v2679 = vsub.s32 %v2676, %v2678
        %v2680 = vrot.slane %v2433, %v2679
        %v2682 = vunpack.c.l.s4 1983009808
        %v2683 = vunpack.c.0.s8 %v2682
        %v2684 = vlaneseq
        %v2685 = vshrl.u32 %v2684, 7
        %v2686 = vsub.s32 %v2683, %v2685
        %v2687 = vrot.slane %v2673, %v2686
        %v2688 = vcombine.high %v2680, %v2680
        %v2689 = vcombine.high %v2687, %v2687
        %v2690 = vcombine.high %v2434, %v2434
        %v2692 = vunpack.c.l.s4 1983009808
        %v2693 = vunpack.c.0.s8 %v2692
        %v2694 = vlaneseq
        %v2695 = vshrl.u32 %v2694, 7
        %v2696 = vsub.s32 %v2693, %v2695
        %v2697 = vrot.slane %v2434, %v2696
        %v2699 = vunpack.c.l.s4 1983009808
        %v2700 = vunpack.c.0.s8 %v2699
        %v2701 = vlaneseq
        %v2702 = vshrl.u32 %v2701, 7
        %v2703 = vsub.s32 %v2700, %v2702
        %v2704 = vrot.slane %v2690, %v2703
        %v2705 = vcombine.high %v2697, %v2697
        %v2706 = vcombine.high %v2704, %v2704
        %v2707 = vcombine.high %v2435, %v2435
        %v2709 = vunpack.c.l.s4 1983009808
        %v2710 = vunpack.c.0.s8 %v2709
        %v2711 = vlaneseq
        %v2712 = vshrl.u32 %v2711, 7
        %v2713 = vsub.s32 %v2710, %v2712
        %v2714 = vrot.slane %v2435, %v2713
        %v2716 = vunpack.c.l.s4 1983009808
        %v2717 = vunpack.c.0.s8 %v2716
        %v2718 = vlaneseq
        %v2719 = vshrl.u32 %v2718, 7
        %v2720 = vsub.s32 %v2717, %v2719
        %v2721 = vrot.slane %v2707, %v2720
        %v2722 = vcombine.high %v2714, %v2714
        %v2723 = vcombine.high %v2721, %v2721
        %v2724 = vcombine.high %v2436, %v2436
        %v2726 = vunpack.c.l.s4 1983009808
        %v2727 = vunpack.c.0.s8 %v2726
        %v2728 = vlaneseq
        %v2729 = vshrl.u32 %v2728, 7
        %v2730 = vsub.s32 %v2727, %v2729
        %v2731 = vrot.slane %v2436, %v2730
        %v2733 = vunpack.c.l.s4 1983009808
        %v2734 = vunpack.c.0.s8 %v2733
        %v2735 = vlaneseq
        %v2736 = vshrl.u32 %v2735, 7
        %v2737 = vsub.s32 %v2734, %v2736
        %v2738 = vrot.slane %v2724, %v2737
        %v2739 = vcombine.high %v2731, %v2731
        %v2740 = vcombine.high %v2738, %v2738
        %v2741 = vcombine.high %v2437, %v2437
        %v2743 = vunpack.c.l.s4 1983009808
        %v2744 = vunpack.c.0.s8 %v2743
        %v2745 = vlaneseq
        %v2746 = vshrl.u32 %v2745, 7
        %v2747 = vsub.s32 %v2744, %v2746
        %v2748 = vrot.slane %v2437, %v2747
        %v2750 = vunpack.c.l.s4 1983009808
        %v2751 = vunpack.c.0.s8 %v2750
        %v2752 = vlaneseq
        %v2753 = vshrl.u32 %v2752, 7
        %v2754 = vsub.s32 %v2751, %v2753
        %v2755 = vrot.slane %v2741, %v2754
        %v2756 = vcombine.high %v2748, %v2748
        %v2757 = vcombine.high %v2755, %v2755
        %v2758 = vcombine.high %v2438, %v2438
        %v2760 = vunpack.c.l.s4 1983009808
        %v2761 = vunpack.c.0.s8 %v2760
        %v2762 = vlaneseq
        %v2763 = vshrl.u32 %v2762, 7
        %v2764 = vsub.s32 %v2761, %v2763
        %v2765 = vrot.slane %v2438, %v2764
        %v2767 = vunpack.c.l.s4 1983009808
        %v2768 = vunpack.c.0.s8 %v2767
        %v2769 = vlaneseq
        %v2770 = vshrl.u32 %v2769, 7
        %v2771 = vsub.s32 %v2768, %v2770
        %v2772 = vrot.slane %v2758, %v2771
        %v2773 = vcombine.high %v2765, %v2765
        %v2774 = vcombine.high %v2772, %v2772
        %v2775 = vcombine.high %v2439, %v2439
        %v2777 = vunpack.c.l.s4 1983009808
        %v2778 = vunpack.c.0.s8 %v2777
        %v2779 = vlaneseq
        %v2780 = vshrl.u32 %v2779, 7
        %v2781 = vsub.s32 %v2778, %v2780
        %v2782 = vrot.slane %v2439, %v2781
        %v2784 = vunpack.c.l.s4 1983009808
        %v2785 = vunpack.c.0.s8 %v2784
        %v2786 = vlaneseq
        %v2787 = vshrl.u32 %v2786, 7
        %v2788 = vsub.s32 %v2785, %v2787
        %v2789 = vrot.slane %v2775, %v2788
        %v2790 = vcombine.high %v2782, %v2782
        %v2791 = vcombine.high %v2789, %v2789
        %v2792 = vcombine.high %v2440, %v2440
        %v2794 = vunpack.c.l.s4 1983009808
        %v2795 = vunpack.c.0.s8 %v2794
        %v2796 = vlaneseq
        %v2797 = vshrl.u32 %v2796, 7
        %v2798 = vsub.s32 %v2795, %v2797
        %v2799 = vrot.slane %v2440, %v2798
        %v2801 = vunpack.c.l.s4 1983009808
        %v2802 = vunpack.c.0.s8 %v2801
        %v2803 = vlaneseq
        %v2804 = vshrl.u32 %v2803, 7
        %v2805 = vsub.s32 %v2802, %v2804
        %v2806 = vrot.slane %v2792, %v2805
        %v2807 = vcombine.high %v2799, %v2799
        %v2808 = vcombine.high %v2806, %v2806
        %v2809 = vcombine.high %v2441, %v2441
        %v2811 = vunpack.c.l.s4 1983009808
        %v2812 = vunpack.c.0.s8 %v2811
        %v2813 = vlaneseq
        %v2814 = vshrl.u32 %v2813, 7
        %v2815 = vsub.s32 %v2812, %v2814
        %v2816 = vrot.slane %v2441, %v2815
        %v2818 = vunpack.c.l.s4 1983009808
        %v2819 = vunpack.c.0.s8 %v2818
        %v2820 = vlaneseq
        %v2821 = vshrl.u32 %v2820, 7
        %v2822 = vsub.s32 %v2819, %v2821
        %v2823 = vrot.slane %v2809, %v2822
        %v2824 = vcombine.high %v2816, %v2816
        %v2825 = vcombine.high %v2823, %v2823
        %v2826 = vcombine.high %v2442, %v2442
        %v2828 = vunpack.c.l.s4 1983009808
        %v2829 = vunpack.c.0.s8 %v2828
        %v2830 = vlaneseq
        %v2831 = vshrl.u32 %v2830, 7
        %v2832 = vsub.s32 %v2829, %v2831
        %v2833 = vrot.slane %v2442, %v2832
        %v2835 = vunpack.c.l.s4 1983009808
        %v2836 = vunpack.c.0.s8 %v2835
        %v2837 = vlaneseq
        %v2838 = vshrl.u32 %v2837, 7
        %v2839 = vsub.s32 %v2836, %v2838
        %v2840 = vrot.slane %v2826, %v2839
        %v2841 = vcombine.high %v2833, %v2833
        %v2842 = vcombine.high %v2840, %v2840
        %v2843 = vcombine.high %v2443, %v2443
        %v2845 = vunpack.c.l.s4 1983009808
        %v2846 = vunpack.c.0.s8 %v2845
        %v2847 = vlaneseq
        %v2848 = vshrl.u32 %v2847, 7
        %v2849 = vsub.s32 %v2846, %v2848
        %v2850 = vrot.slane %v2443, %v2849
        %v2852 = vunpack.c.l.s4 1983009808
        %v2853 = vunpack.c.0.s8 %v2852
        %v2854 = vlaneseq
        %v2855 = vshrl.u32 %v2854, 7
        %v2856 = vsub.s32 %v2853, %v2855
        %v2857 = vrot.slane %v2843, %v2856
        %v2858 = vcombine.high %v2850, %v2850
        %v2859 = vcombine.high %v2857, %v2857
        %v2860 = vcombine.high %v2444, %v2444
        %v2862 = vunpack.c.l.s4 1983009808
        %v2863 = vunpack.c.0.s8 %v2862
        %v2864 = vlaneseq
        %v2865 = vshrl.u32 %v2864, 7
        %v2866 = vsub.s32 %v2863, %v2865
        %v2867 = vrot.slane %v2444, %v2866
        %v2869 = vunpack.c.l.s4 1983009808
        %v2870 = vunpack.c.0.s8 %v2869
        %v2871 = vlaneseq
        %v2872 = vshrl.u32 %v2871, 7
        %v2873 = vsub.s32 %v2870, %v2872
        %v2874 = vrot.slane %v2860, %v2873
        %v2875 = vcombine.high %v2867, %v2867
        %v2876 = vcombine.high %v2874, %v2874
        %v2877 = vcombine.high %v2445, %v2445
        %v2879 = vunpack.c.l.s4 1983009808
        %v2880 = vunpack.c.0.s8 %v2879
        %v2881 = vlaneseq
        %v2882 = vshrl.u32 %v2881, 7
        %v2883 = vsub.s32 %v2880, %v2882
        %v2884 = vrot.slane %v2445, %v2883
        %v2886 = vunpack.c.l.s4 1983009808
        %v2887 = vunpack.c.0.s8 %v2886
        %v2888 = vlaneseq
        %v2889 = vshrl.u32 %v2888, 7
        %v2890 = vsub.s32 %v2887, %v2889
        %v2891 = vrot.slane %v2877, %v2890
        %v2892 = vcombine.high %v2884, %v2884
        %v2893 = vcombine.high %v2891, %v2891
        %v2894 = vcombine.high %v2446, %v2446
        %v2896 = vunpack.c.l.s4 1983009808
        %v2897 = vunpack.c.0.s8 %v2896
        %v2898 = vlaneseq
        %v2899 = vshrl.u32 %v2898, 7
        %v2900 = vsub.s32 %v2897, %v2899
        %v2901 = vrot.slane %v2446, %v2900
        %v2903 = vunpack.c.l.s4 1983009808
        %v2904 = vunpack.c.0.s8 %v2903
        %v2905 = vlaneseq
        %v2906 = vshrl.u32 %v2905, 7
        %v2907 = vsub.s32 %v2904, %v2906
        %v2908 = vrot.slane %v2894, %v2907
        %v2909 = vcombine.high %v2901, %v2901
        %v2910 = vcombine.high %v2908, %v2908
        %v2911 = vcombine.high %v2447, %v2447
        %v2913 = vunpack.c.l.s4 1983009808
        %v2914 = vunpack.c.0.s8 %v2913
        %v2915 = vlaneseq
        %v2916 = vshrl.u32 %v2915, 7
        %v2917 = vsub.s32 %v2914, %v2916
        %v2918 = vrot.slane %v2447, %v2917
        %v2920 = vunpack.c.l.s4 1983009808
        %v2921 = vunpack.c.0.s8 %v2920
        %v2922 = vlaneseq
        %v2923 = vshrl.u32 %v2922, 7
        %v2924 = vsub.s32 %v2921, %v2923
        %v2925 = vrot.slane %v2911, %v2924
        %v2926 = vcombine.high %v2918, %v2918
        %v2927 = vcombine.high %v2925, %v2925
        %v2928 = vcombine.high %v2448, %v2448
        %v2930 = vunpack.c.l.s4 1983009808
        %v2931 = vunpack.c.0.s8 %v2930
        %v2932 = vlaneseq
        %v2933 = vshrl.u32 %v2932, 7
        %v2934 = vsub.s32 %v2931, %v2933
        %v2935 = vrot.slane %v2448, %v2934
        %v2937 = vunpack.c.l.s4 1983009808
        %v2938 = vunpack.c.0.s8 %v2937
        %v2939 = vlaneseq
        %v2940 = vshrl.u32 %v2939, 7
        %v2941 = vsub.s32 %v2938, %v2940
        %v2942 = vrot.slane %v2928, %v2941
        %v2943 = vcombine.high %v2935, %v2935
        %v2944 = vcombine.high %v2942, %v2942
        %v2945 = vcombine.high %v2449, %v2449
        %v2947 = vunpack.c.l.s4 1983009808
        %v2948 = vunpack.c.0.s8 %v2947
        %v2949 = vlaneseq
        %v2950 = vshrl.u32 %v2949, 7
        %v2951 = vsub.s32 %v2948, %v2950
        %v2952 = vrot.slane %v2449, %v2951
        %v2954 = vunpack.c.l.s4 1983009808
        %v2955 = vunpack.c.0.s8 %v2954
        %v2956 = vlaneseq
        %v2957 = vshrl.u32 %v2956, 7
        %v2958 = vsub.s32 %v2955, %v2957
        %v2959 = vrot.slane %v2945, %v2958
        %v2960 = vcombine.high %v2952, %v2952
        %v2961 = vcombine.high %v2959, %v2959
        %v2962 = vcombine.high %v2450, %v2450
        %v2964 = vunpack.c.l.s4 1983009808
        %v2965 = vunpack.c.0.s8 %v2964
        %v2966 = vlaneseq
        %v2967 = vshrl.u32 %v2966, 7
        %v2968 = vsub.s32 %v2965, %v2967
        %v2969 = vrot.slane %v2450, %v2968
        %v2971 = vunpack.c.l.s4 1983009808
        %v2972 = vunpack.c.0.s8 %v2971
        %v2973 = vlaneseq
        %v2974 = vshrl.u32 %v2973, 7
        %v2975 = vsub.s32 %v2972, %v2974
        %v2976 = vrot.slane %v2962, %v2975
        %v2977 = vcombine.high %v2969, %v2969
        %v2978 = vcombine.high %v2976, %v2976
        %v2979 = vcombine.high %v2451, %v2451
        %v2981 = vunpack.c.l.s4 1983009808
        %v2982 = vunpack.c.0.s8 %v2981
        %v2983 = vlaneseq
        %v2984 = vshrl.u32 %v2983, 7
        %v2985 = vsub.s32 %v2982, %v2984
        %v2986 = vrot.slane %v2451, %v2985
        %v2988 = vunpack.c.l.s4 1983009808
        %v2989 = vunpack.c.0.s8 %v2988
        %v2990 = vlaneseq
        %v2991 = vshrl.u32 %v2990, 7
        %v2992 = vsub.s32 %v2989, %v2991
        %v2993 = vrot.slane %v2979, %v2992
        %v2994 = vcombine.high %v2986, %v2986
        %v2995 = vcombine.high %v2993, %v2993
        %v2996 = vcombine.high %v2452, %v2452
        %v2998 = vunpack.c.l.s4 1983009808
        %v2999 = vunpack.c.0.s8 %v2998
        %v3000 = vlaneseq
        %v3001 = vshrl.u32 %v3000, 7
        %v3002 = vsub.s32 %v2999, %v3001
        %v3003 = vrot.slane %v2452, %v3002
        %v3005 = vunpack.c.l.s4 1983009808
        %v3006 = vunpack.c.0.s8 %v3005
        %v3007 = vlaneseq
        %v3008 = vshrl.u32 %v3007, 7
        %v3009 = vsub.s32 %v3006, %v3008
        %v3010 = vrot.slane %v2996, %v3009
        %v3011 = vcombine.high %v3003, %v3003
        %v3012 = vcombine.high %v3010, %v3010
        %v3013 = vcombine.high %v2453, %v2453
        %v3015 = vunpack.c.l.s4 1983009808
        %v3016 = vunpack.c.0.s8 %v3015
        %v3017 = vlaneseq
        %v3018 = vshrl.u32 %v3017, 7
        %v3019 = vsub.s32 %v3016, %v3018
        %v3020 = vrot.slane %v2453, %v3019
        %v3022 = vunpack.c.l.s4 1983009808
        %v3023 = vunpack.c.0.s8 %v3022
        %v3024 = vlaneseq
        %v3025 = vshrl.u32 %v3024, 7
        %v3026 = vsub.s32 %v3023, %v3025
        %v3027 = vrot.slane %v3013, %v3026
        %v3028 = vcombine.high %v3020, %v3020
        %v3029 = vcombine.high %v3027, %v3027
        %v3158 = vsel %vm610, %v2493, -inf
        %v3159 = vrot.slane %v3158, 4
        %v3160 = vmax.f32 %v3158, %v3159
        %v3161 = vrot.slane %v3160, 2
        %v3162 = vmax.f32 %v3160, %v3161
        %v3163 = vrot.slane %v3162, 1
        %v3164 = vmax.f32 %v3162, %v3163
        %v3165 = vsel %vm610, %v2501, -inf
        %v3166 = vrot.slane %v3165, 4
        %v3167 = vmax.f32 %v3165, %v3166
        %v3168 = vrot.slane %v3167, 2
        %v3169 = vmax.f32 %v3167, %v3168
        %v3170 = vrot.slane %v3169, 1
        %v3171 = vmax.f32 %v3169, %v3170
        %v3172 = vsel %vm610, %v2500, -inf
        %v3173 = vrot.slane %v3172, 4
        %v3174 = vmax.f32 %v3172, %v3173
        %v3175 = vrot.slane %v3174, 2
        %v3176 = vmax.f32 %v3174, %v3175
        %v3177 = vrot.slane %v3176, 1
        %v3178 = vmax.f32 %v3176, %v3177
        %v3179 = vsel %vm610, %v2502, -inf
        %v3180 = vrot.slane %v3179, 4
        %v3181 = vmax.f32 %v3179, %v3180
        %v3182 = vrot.slane %v3181, 2
        %v3183 = vmax.f32 %v3181, %v3182
        %v3184 = vrot.slane %v3183, 1
        %v3185 = vmax.f32 %v3183, %v3184
        %v3186 = vsel %vm610, %v2510, -inf
        %v3187 = vrot.slane %v3186, 4
        %v3188 = vmax.f32 %v3186, %v3187
        %v3189 = vrot.slane %v3188, 2
        %v3190 = vmax.f32 %v3188, %v3189
        %v3191 = vrot.slane %v3190, 1
        %v3192 = vmax.f32 %v3190, %v3191
        %v3193 = vsel %vm610, %v2518, -inf
        %v3194 = vrot.slane %v3193, 4
        %v3195 = vmax.f32 %v3193, %v3194
        %v3196 = vrot.slane %v3195, 2
        %v3197 = vmax.f32 %v3195, %v3196
        %v3198 = vrot.slane %v3197, 1
        %v3199 = vmax.f32 %v3197, %v3198
        %v3200 = vsel %vm610, %v2517, -inf
        %v3201 = vrot.slane %v3200, 4
        %v3202 = vmax.f32 %v3200, %v3201
        %v3203 = vrot.slane %v3202, 2
        %v3204 = vmax.f32 %v3202, %v3203
        %v3205 = vrot.slane %v3204, 1
        %v3206 = vmax.f32 %v3204, %v3205
        %v3207 = vsel %vm610, %v2519, -inf
        %v3208 = vrot.slane %v3207, 4
        %v3209 = vmax.f32 %v3207, %v3208
        %v3210 = vrot.slane %v3209, 2
        %v3211 = vmax.f32 %v3209, %v3210
        %v3212 = vrot.slane %v3211, 1
        %v3213 = vmax.f32 %v3211, %v3212
        %v3214 = vsel %vm610, %v2527, -inf
        %v3215 = vrot.slane %v3214, 4
        %v3216 = vmax.f32 %v3214, %v3215
        %v3217 = vrot.slane %v3216, 2
        %v3218 = vmax.f32 %v3216, %v3217
        %v3219 = vrot.slane %v3218, 1
        %v3220 = vmax.f32 %v3218, %v3219
        %v3221 = vsel %vm610, %v2535, -inf
        %v3222 = vrot.slane %v3221, 4
        %v3223 = vmax.f32 %v3221, %v3222
        %v3224 = vrot.slane %v3223, 2
        %v3225 = vmax.f32 %v3223, %v3224
        %v3226 = vrot.slane %v3225, 1
        %v3227 = vmax.f32 %v3225, %v3226
        %v3228 = vsel %vm610, %v2534, -inf
        %v3229 = vrot.slane %v3228, 4
        %v3230 = vmax.f32 %v3228, %v3229
        %v3231 = vrot.slane %v3230, 2
        %v3232 = vmax.f32 %v3230, %v3231
        %v3233 = vrot.slane %v3232, 1
        %v3234 = vmax.f32 %v3232, %v3233
        %v3235 = vsel %vm610, %v2536, -inf
        %v3236 = vrot.slane %v3235, 4
        %v3237 = vmax.f32 %v3235, %v3236
        %v3238 = vrot.slane %v3237, 2
        %v3239 = vmax.f32 %v3237, %v3238
        %v3240 = vrot.slane %v3239, 1
        %v3241 = vmax.f32 %v3239, %v3240
        %v3242 = vsel %vm610, %v2544, -inf
        %v3243 = vrot.slane %v3242, 4
        %v3244 = vmax.f32 %v3242, %v3243
        %v3245 = vrot.slane %v3244, 2
        %v3246 = vmax.f32 %v3244, %v3245
        %v3247 = vrot.slane %v3246, 1
        %v3248 = vmax.f32 %v3246, %v3247
        %v3249 = vsel %vm610, %v2552, -inf
        %v3250 = vrot.slane %v3249, 4
        %v3251 = vmax.f32 %v3249, %v3250
        %v3252 = vrot.slane %v3251, 2
        %v3253 = vmax.f32 %v3251, %v3252
        %v3254 = vrot.slane %v3253, 1
        %v3255 = vmax.f32 %v3253, %v3254
        %v3256 = vsel %vm610, %v2551, -inf
        %v3257 = vrot.slane %v3256, 4
        %v3258 = vmax.f32 %v3256, %v3257
        %v3259 = vrot.slane %v3258, 2
        %v3260 = vmax.f32 %v3258, %v3259
        %v3261 = vrot.slane %v3260, 1
        %v3262 = vmax.f32 %v3260, %v3261
        %v3263 = vsel %vm610, %v2553, -inf
        %v3264 = vrot.slane %v3263, 4
        %v3265 = vmax.f32 %v3263, %v3264
        %v3266 = vrot.slane %v3265, 2
        %v3267 = vmax.f32 %v3265, %v3266
        %v3268 = vrot.slane %v3267, 1
        %v3269 = vmax.f32 %v3267, %v3268
        %v3270 = vsel %vm610, %v2561, -inf
        %v3271 = vrot.slane %v3270, 4
        %v3272 = vmax.f32 %v3270, %v3271
        %v3273 = vrot.slane %v3272, 2
        %v3274 = vmax.f32 %v3272, %v3273
        %v3275 = vrot.slane %v3274, 1
        %v3276 = vmax.f32 %v3274, %v3275
        %v3277 = vsel %vm610, %v2569, -inf
        %v3278 = vrot.slane %v3277, 4
        %v3279 = vmax.f32 %v3277, %v3278
        %v3280 = vrot.slane %v3279, 2
        %v3281 = vmax.f32 %v3279, %v3280
        %v3282 = vrot.slane %v3281, 1
        %v3283 = vmax.f32 %v3281, %v3282
        %v3284 = vsel %vm610, %v2568, -inf
        %v3285 = vrot.slane %v3284, 4
        %v3286 = vmax.f32 %v3284, %v3285
        %v3287 = vrot.slane %v3286, 2
        %v3288 = vmax.f32 %v3286, %v3287
        %v3289 = vrot.slane %v3288, 1
        %v3290 = vmax.f32 %v3288, %v3289
        %v3291 = vsel %vm610, %v2570, -inf
        %v3292 = vrot.slane %v3291, 4
        %v3293 = vmax.f32 %v3291, %v3292
        %v3294 = vrot.slane %v3293, 2
        %v3295 = vmax.f32 %v3293, %v3294
        %v3296 = vrot.slane %v3295, 1
        %v3297 = vmax.f32 %v3295, %v3296
        %v3298 = vsel %vm610, %v2578, -inf
        %v3299 = vrot.slane %v3298, 4
        %v3300 = vmax.f32 %v3298, %v3299
        %v3301 = vrot.slane %v3300, 2
        %v3302 = vmax.f32 %v3300, %v3301
        %v3303 = vrot.slane %v3302, 1
        %v3304 = vmax.f32 %v3302, %v3303
        %v3305 = vsel %vm610, %v2586, -inf
        %v3306 = vrot.slane %v3305, 4
        %v3307 = vmax.f32 %v3305, %v3306
        %v3308 = vrot.slane %v3307, 2
        %v3309 = vmax.f32 %v3307, %v3308
        %v3310 = vrot.slane %v3309, 1
        %v3311 = vmax.f32 %v3309, %v3310
        %v3312 = vsel %vm610, %v2585, -inf
        %v3313 = vrot.slane %v3312, 4
        %v3314 = vmax.f32 %v3312, %v3313
        %v3315 = vrot.slane %v3314, 2
        %v3316 = vmax.f32 %v3314, %v3315
        %v3317 = vrot.slane %v3316, 1
        %v3318 = vmax.f32 %v3316, %v3317
        %v3319 = vsel %vm610, %v2587, -inf
        %v3320 = vrot.slane %v3319, 4
        %v3321 = vmax.f32 %v3319, %v3320
        %v3322 = vrot.slane %v3321, 2
        %v3323 = vmax.f32 %v3321, %v3322
        %v3324 = vrot.slane %v3323, 1
        %v3325 = vmax.f32 %v3323, %v3324
        %v3326 = vsel %vm610, %v2595, -inf
        %v3327 = vrot.slane %v3326, 4
        %v3328 = vmax.f32 %v3326, %v3327
        %v3329 = vrot.slane %v3328, 2
        %v3330 = vmax.f32 %v3328, %v3329
        %v3331 = vrot.slane %v3330, 1
        %v3332 = vmax.f32 %v3330, %v3331
        %v3333 = vsel %vm610, %v2603, -inf
        %v3334 = vrot.slane %v3333, 4
        %v3335 = vmax.f32 %v3333, %v3334
        %v3336 = vrot.slane %v3335, 2
        %v3337 = vmax.f32 %v3335, %v3336
        %v3338 = vrot.slane %v3337, 1
        %v3339 = vmax.f32 %v3337, %v3338
        %v3340 = vsel %vm610, %v2602, -inf
        %v3341 = vrot.slane %v3340, 4
        %v3342 = vmax.f32 %v3340, %v3341
        %v3343 = vrot.slane %v3342, 2
        %v3344 = vmax.f32 %v3342, %v3343
        %v3345 = vrot.slane %v3344, 1
        %v3346 = vmax.f32 %v3344, %v3345
        %v3347 = vsel %vm610, %v2604, -inf
        %v3348 = vrot.slane %v3347, 4
        %v3349 = vmax.f32 %v3347, %v3348
        %v3350 = vrot.slane %v3349, 2
        %v3351 = vmax.f32 %v3349, %v3350
        %v3352 = vrot.slane %v3351, 1
        %v3353 = vmax.f32 %v3351, %v3352
        %v3354 = vsel %vm610, %v2612, -inf
        %v3355 = vrot.slane %v3354, 4
        %v3356 = vmax.f32 %v3354, %v3355
        %v3357 = vrot.slane %v3356, 2
        %v3358 = vmax.f32 %v3356, %v3357
        %v3359 = vrot.slane %v3358, 1
        %v3360 = vmax.f32 %v3358, %v3359
        %v3361 = vsel %vm610, %v2620, -inf
        %v3362 = vrot.slane %v3361, 4
        %v3363 = vmax.f32 %v3361, %v3362
        %v3364 = vrot.slane %v3363, 2
        %v3365 = vmax.f32 %v3363, %v3364
        %v3366 = vrot.slane %v3365, 1
        %v3367 = vmax.f32 %v3365, %v3366
        %v3368 = vsel %vm610, %v2619, -inf
        %v3369 = vrot.slane %v3368, 4
        %v3370 = vmax.f32 %v3368, %v3369
        %v3371 = vrot.slane %v3370, 2
        %v3372 = vmax.f32 %v3370, %v3371
        %v3373 = vrot.slane %v3372, 1
        %v3374 = vmax.f32 %v3372, %v3373
        %v3375 = vsel %vm610, %v2621, -inf
        %v3376 = vrot.slane %v3375, 4
        %v3377 = vmax.f32 %v3375, %v3376
        %v3378 = vrot.slane %v3377, 2
        %v3379 = vmax.f32 %v3377, %v3378
        %v3380 = vrot.slane %v3379, 1
        %v3381 = vmax.f32 %v3379, %v3380
        %v3382 = vsel %vm610, %v2629, -inf
        %v3383 = vrot.slane %v3382, 4
        %v3384 = vmax.f32 %v3382, %v3383
        %v3385 = vrot.slane %v3384, 2
        %v3386 = vmax.f32 %v3384, %v3385
        %v3387 = vrot.slane %v3386, 1
        %v3388 = vmax.f32 %v3386, %v3387
        %v3389 = vsel %vm610, %v2637, -inf
        %v3390 = vrot.slane %v3389, 4
        %v3391 = vmax.f32 %v3389, %v3390
        %v3392 = vrot.slane %v3391, 2
        %v3393 = vmax.f32 %v3391, %v3392
        %v3394 = vrot.slane %v3393, 1
        %v3395 = vmax.f32 %v3393, %v3394
        %v3396 = vsel %vm610, %v2636, -inf
        %v3397 = vrot.slane %v3396, 4
        %v3398 = vmax.f32 %v3396, %v3397
        %v3399 = vrot.slane %v3398, 2
        %v3400 = vmax.f32 %v3398, %v3399
        %v3401 = vrot.slane %v3400, 1
        %v3402 = vmax.f32 %v3400, %v3401
        %v3403 = vsel %vm610, %v2638, -inf
        %v3404 = vrot.slane %v3403, 4
        %v3405 = vmax.f32 %v3403, %v3404
        %v3406 = vrot.slane %v3405, 2
        %v3407 = vmax.f32 %v3405, %v3406
        %v3408 = vrot.slane %v3407, 1
        %v3409 = vmax.f32 %v3407, %v3408
        %v3410 = vsel %vm610, %v2646, -inf
        %v3411 = vrot.slane %v3410, 4
        %v3412 = vmax.f32 %v3410, %v3411
        %v3413 = vrot.slane %v3412, 2
        %v3414 = vmax.f32 %v3412, %v3413
        %v3415 = vrot.slane %v3414, 1
        %v3416 = vmax.f32 %v3414, %v3415
        %v3417 = vsel %vm610, %v2654, -inf
        %v3418 = vrot.slane %v3417, 4
        %v3419 = vmax.f32 %v3417, %v3418
        %v3420 = vrot.slane %v3419, 2
        %v3421 = vmax.f32 %v3419, %v3420
        %v3422 = vrot.slane %v3421, 1
        %v3423 = vmax.f32 %v3421, %v3422
        %v3424 = vsel %vm610, %v2653, -inf
        %v3425 = vrot.slane %v3424, 4
        %v3426 = vmax.f32 %v3424, %v3425
        %v3427 = vrot.slane %v3426, 2
        %v3428 = vmax.f32 %v3426, %v3427
        %v3429 = vrot.slane %v3428, 1
        %v3430 = vmax.f32 %v3428, %v3429
        %v3431 = vsel %vm610, %v2655, -inf
        %v3432 = vrot.slane %v3431, 4
        %v3433 = vmax.f32 %v3431, %v3432
        %v3434 = vrot.slane %v3433, 2
        %v3435 = vmax.f32 %v3433, %v3434
        %v3436 = vrot.slane %v3435, 1
        %v3437 = vmax.f32 %v3435, %v3436
        %v3438 = vsel %vm610, %v2663, -inf
        %v3439 = vrot.slane %v3438, 4
        %v3440 = vmax.f32 %v3438, %v3439
        %v3441 = vrot.slane %v3440, 2
        %v3442 = vmax.f32 %v3440, %v3441
        %v3443 = vrot.slane %v3442, 1
        %v3444 = vmax.f32 %v3442, %v3443
        %v3445 = vsel %vm610, %v2671, -inf
        %v3446 = vrot.slane %v3445, 4
        %v3447 = vmax.f32 %v3445, %v3446
        %v3448 = vrot.slane %v3447, 2
        %v3449 = vmax.f32 %v3447, %v3448
        %v3450 = vrot.slane %v3449, 1
        %v3451 = vmax.f32 %v3449, %v3450
        %v3452 = vsel %vm610, %v2670, -inf
        %v3453 = vrot.slane %v3452, 4
        %v3454 = vmax.f32 %v3452, %v3453
        %v3455 = vrot.slane %v3454, 2
        %v3456 = vmax.f32 %v3454, %v3455
        %v3457 = vrot.slane %v3456, 1
        %v3458 = vmax.f32 %v3456, %v3457
        %v3459 = vsel %vm610, %v2672, -inf
        %v3460 = vrot.slane %v3459, 4
        %v3461 = vmax.f32 %v3459, %v3460
        %v3462 = vrot.slane %v3461, 2
        %v3463 = vmax.f32 %v3461, %v3462
        %v3464 = vrot.slane %v3463, 1
        %v3465 = vmax.f32 %v3463, %v3464
        %v3466 = vsel %vm610, %v2680, -inf
        %v3467 = vrot.slane %v3466, 4
        %v3468 = vmax.f32 %v3466, %v3467
        %v3469 = vrot.slane %v3468, 2
        %v3470 = vmax.f32 %v3468, %v3469
        %v3471 = vrot.slane %v3470, 1
        %v3472 = vmax.f32 %v3470, %v3471
        %v3473 = vsel %vm610, %v2688, -inf
        %v3474 = vrot.slane %v3473, 4
        %v3475 = vmax.f32 %v3473, %v3474
        %v3476 = vrot.slane %v3475, 2
        %v3477 = vmax.f32 %v3475, %v3476
        %v3478 = vrot.slane %v3477, 1
        %v3479 = vmax.f32 %v3477, %v3478
        %v3480 = vsel %vm610, %v2687, -inf
        %v3481 = vrot.slane %v3480, 4
        %v3482 = vmax.f32 %v3480, %v3481
        %v3483 = vrot.slane %v3482, 2
        %v3484 = vmax.f32 %v3482, %v3483
        %v3485 = vrot.slane %v3484, 1
        %v3486 = vmax.f32 %v3484, %v3485
        %v3487 = vsel %vm610, %v2689, -inf
        %v3488 = vrot.slane %v3487, 4
        %v3489 = vmax.f32 %v3487, %v3488
        %v3490 = vrot.slane %v3489, 2
        %v3491 = vmax.f32 %v3489, %v3490
        %v3492 = vrot.slane %v3491, 1
        %v3493 = vmax.f32 %v3491, %v3492
        %v3494 = vsel %vm610, %v2697, -inf
        %v3495 = vrot.slane %v3494, 4
        %v3496 = vmax.f32 %v3494, %v3495
        %v3497 = vrot.slane %v3496, 2
        %v3498 = vmax.f32 %v3496, %v3497
        %v3499 = vrot.slane %v3498, 1
        %v3500 = vmax.f32 %v3498, %v3499
        %v3501 = vsel %vm610, %v2705, -inf
        %v3502 = vrot.slane %v3501, 4
        %v3503 = vmax.f32 %v3501, %v3502
        %v3504 = vrot.slane %v3503, 2
        %v3505 = vmax.f32 %v3503, %v3504
        %v3506 = vrot.slane %v3505, 1
        %v3507 = vmax.f32 %v3505, %v3506
        %v3508 = vsel %vm610, %v2704, -inf
        %v3509 = vrot.slane %v3508, 4
        %v3510 = vmax.f32 %v3508, %v3509
        %v3511 = vrot.slane %v3510, 2
        %v3512 = vmax.f32 %v3510, %v3511
        %v3513 = vrot.slane %v3512, 1
        %v3514 = vmax.f32 %v3512, %v3513
        %v3515 = vsel %vm610, %v2706, -inf
        %v3516 = vrot.slane %v3515, 4
        %v3517 = vmax.f32 %v3515, %v3516
        %v3518 = vrot.slane %v3517, 2
        %v3519 = vmax.f32 %v3517, %v3518
        %v3520 = vrot.slane %v3519, 1
        %v3521 = vmax.f32 %v3519, %v3520
        %v3522 = vsel %vm610, %v2714, -inf
        %v3523 = vrot.slane %v3522, 4
        %v3524 = vmax.f32 %v3522, %v3523
        %v3525 = vrot.slane %v3524, 2
        %v3526 = vmax.f32 %v3524, %v3525
        %v3527 = vrot.slane %v3526, 1
        %v3528 = vmax.f32 %v3526, %v3527
        %v3529 = vsel %vm610, %v2722, -inf
        %v3530 = vrot.slane %v3529, 4
        %v3531 = vmax.f32 %v3529, %v3530
        %v3532 = vrot.slane %v3531, 2
        %v3533 = vmax.f32 %v3531, %v3532
        %v3534 = vrot.slane %v3533, 1
        %v3535 = vmax.f32 %v3533, %v3534
        %v3536 = vsel %vm610, %v2721, -inf
        %v3537 = vrot.slane %v3536, 4
        %v3538 = vmax.f32 %v3536, %v3537
        %v3539 = vrot.slane %v3538, 2
        %v3540 = vmax.f32 %v3538, %v3539
        %v3541 = vrot.slane %v3540, 1
        %v3542 = vmax.f32 %v3540, %v3541
        %v3543 = vsel %vm610, %v2723, -inf
        %v3544 = vrot.slane %v3543, 4
        %v3545 = vmax.f32 %v3543, %v3544
        %v3546 = vrot.slane %v3545, 2
        %v3547 = vmax.f32 %v3545, %v3546
        %v3548 = vrot.slane %v3547, 1
        %v3549 = vmax.f32 %v3547, %v3548
        %v3550 = vsel %vm610, %v2731, -inf
        %v3551 = vrot.slane %v3550, 4
        %v3552 = vmax.f32 %v3550, %v3551
        %v3553 = vrot.slane %v3552, 2
        %v3554 = vmax.f32 %v3552, %v3553
        %v3555 = vrot.slane %v3554, 1
        %v3556 = vmax.f32 %v3554, %v3555
        %v3557 = vsel %vm610, %v2739, -inf
        %v3558 = vrot.slane %v3557, 4
        %v3559 = vmax.f32 %v3557, %v3558
        %v3560 = vrot.slane %v3559, 2
        %v3561 = vmax.f32 %v3559, %v3560
        %v3562 = vrot.slane %v3561, 1
        %v3563 = vmax.f32 %v3561, %v3562
        %v3564 = vsel %vm610, %v2738, -inf
        %v3565 = vrot.slane %v3564, 4
        %v3566 = vmax.f32 %v3564, %v3565
        %v3567 = vrot.slane %v3566, 2
        %v3568 = vmax.f32 %v3566, %v3567
        %v3569 = vrot.slane %v3568, 1
        %v3570 = vmax.f32 %v3568, %v3569
        %v3571 = vsel %vm610, %v2740, -inf
        %v3572 = vrot.slane %v3571, 4
        %v3573 = vmax.f32 %v3571, %v3572
        %v3574 = vrot.slane %v3573, 2
        %v3575 = vmax.f32 %v3573, %v3574
        %v3576 = vrot.slane %v3575, 1
        %v3577 = vmax.f32 %v3575, %v3576
        %v3578 = vsel %vm610, %v2748, -inf
        %v3579 = vrot.slane %v3578, 4
        %v3580 = vmax.f32 %v3578, %v3579
        %v3581 = vrot.slane %v3580, 2
        %v3582 = vmax.f32 %v3580, %v3581
        %v3583 = vrot.slane %v3582, 1
        %v3584 = vmax.f32 %v3582, %v3583
        %v3585 = vsel %vm610, %v2756, -inf
        %v3586 = vrot.slane %v3585, 4
        %v3587 = vmax.f32 %v3585, %v3586
        %v3588 = vrot.slane %v3587, 2
        %v3589 = vmax.f32 %v3587, %v3588
        %v3590 = vrot.slane %v3589, 1
        %v3591 = vmax.f32 %v3589, %v3590
        %v3592 = vsel %vm610, %v2755, -inf
        %v3593 = vrot.slane %v3592, 4
        %v3594 = vmax.f32 %v3592, %v3593
        %v3595 = vrot.slane %v3594, 2
        %v3596 = vmax.f32 %v3594, %v3595
        %v3597 = vrot.slane %v3596, 1
        %v3598 = vmax.f32 %v3596, %v3597
        %v3599 = vsel %vm610, %v2757, -inf
        %v3600 = vrot.slane %v3599, 4
        %v3601 = vmax.f32 %v3599, %v3600
        %v3602 = vrot.slane %v3601, 2
        %v3603 = vmax.f32 %v3601, %v3602
        %v3604 = vrot.slane %v3603, 1
        %v3605 = vmax.f32 %v3603, %v3604
        %v3606 = vsel %vm610, %v2765, -inf
        %v3607 = vrot.slane %v3606, 4
        %v3608 = vmax.f32 %v3606, %v3607
        %v3609 = vrot.slane %v3608, 2
        %v3610 = vmax.f32 %v3608, %v3609
        %v3611 = vrot.slane %v3610, 1
        %v3612 = vmax.f32 %v3610, %v3611
        %v3613 = vsel %vm610, %v2773, -inf
        %v3614 = vrot.slane %v3613, 4
        %v3615 = vmax.f32 %v3613, %v3614
        %v3616 = vrot.slane %v3615, 2
        %v3617 = vmax.f32 %v3615, %v3616
        %v3618 = vrot.slane %v3617, 1
        %v3619 = vmax.f32 %v3617, %v3618
        %v3620 = vsel %vm610, %v2772, -inf
        %v3621 = vrot.slane %v3620, 4
        %v3622 = vmax.f32 %v3620, %v3621
        %v3623 = vrot.slane %v3622, 2
        %v3624 = vmax.f32 %v3622, %v3623
        %v3625 = vrot.slane %v3624, 1
        %v3626 = vmax.f32 %v3624, %v3625
        %v3627 = vsel %vm610, %v2774, -inf
        %v3628 = vrot.slane %v3627, 4
        %v3629 = vmax.f32 %v3627, %v3628
        %v3630 = vrot.slane %v3629, 2
        %v3631 = vmax.f32 %v3629, %v3630
        %v3632 = vrot.slane %v3631, 1
        %v3633 = vmax.f32 %v3631, %v3632
        %v3634 = vsel %vm610, %v2782, -inf
        %v3635 = vrot.slane %v3634, 4
        %v3636 = vmax.f32 %v3634, %v3635
        %v3637 = vrot.slane %v3636, 2
        %v3638 = vmax.f32 %v3636, %v3637
        %v3639 = vrot.slane %v3638, 1
        %v3640 = vmax.f32 %v3638, %v3639
        %v3641 = vsel %vm610, %v2790, -inf
        %v3642 = vrot.slane %v3641, 4
        %v3643 = vmax.f32 %v3641, %v3642
        %v3644 = vrot.slane %v3643, 2
        %v3645 = vmax.f32 %v3643, %v3644
        %v3646 = vrot.slane %v3645, 1
        %v3647 = vmax.f32 %v3645, %v3646
        %v3648 = vsel %vm610, %v2789, -inf
        %v3649 = vrot.slane %v3648, 4
        %v3650 = vmax.f32 %v3648, %v3649
        %v3651 = vrot.slane %v3650, 2
        %v3652 = vmax.f32 %v3650, %v3651
        %v3653 = vrot.slane %v3652, 1
        %v3654 = vmax.f32 %v3652, %v3653
        %v3655 = vsel %vm610, %v2791, -inf
        %v3656 = vrot.slane %v3655, 4
        %v3657 = vmax.f32 %v3655, %v3656
        %v3658 = vrot.slane %v3657, 2
        %v3659 = vmax.f32 %v3657, %v3658
        %v3660 = vrot.slane %v3659, 1
        %v3661 = vmax.f32 %v3659, %v3660
        %v3662 = vsel %vm610, %v2799, -inf
        %v3663 = vrot.slane %v3662, 4
        %v3664 = vmax.f32 %v3662, %v3663
        %v3665 = vrot.slane %v3664, 2
        %v3666 = vmax.f32 %v3664, %v3665
        %v3667 = vrot.slane %v3666, 1
        %v3668 = vmax.f32 %v3666, %v3667
        %v3669 = vsel %vm610, %v2807, -inf
        %v3670 = vrot.slane %v3669, 4
        %v3671 = vmax.f32 %v3669, %v3670
        %v3672 = vrot.slane %v3671, 2
        %v3673 = vmax.f32 %v3671, %v3672
        %v3674 = vrot.slane %v3673, 1
        %v3675 = vmax.f32 %v3673, %v3674
        %v3676 = vsel %vm610, %v2806, -inf
        %v3677 = vrot.slane %v3676, 4
        %v3678 = vmax.f32 %v3676, %v3677
        %v3679 = vrot.slane %v3678, 2
        %v3680 = vmax.f32 %v3678, %v3679
        %v3681 = vrot.slane %v3680, 1
        %v3682 = vmax.f32 %v3680, %v3681
        %v3683 = vsel %vm610, %v2808, -inf
        %v3684 = vrot.slane %v3683, 4
        %v3685 = vmax.f32 %v3683, %v3684
        %v3686 = vrot.slane %v3685, 2
        %v3687 = vmax.f32 %v3685, %v3686
        %v3688 = vrot.slane %v3687, 1
        %v3689 = vmax.f32 %v3687, %v3688
        %v3690 = vsel %vm610, %v2816, -inf
        %v3691 = vrot.slane %v3690, 4
        %v3692 = vmax.f32 %v3690, %v3691
        %v3693 = vrot.slane %v3692, 2
        %v3694 = vmax.f32 %v3692, %v3693
        %v3695 = vrot.slane %v3694, 1
        %v3696 = vmax.f32 %v3694, %v3695
        %v3697 = vsel %vm610, %v2824, -inf
        %v3698 = vrot.slane %v3697, 4
        %v3699 = vmax.f32 %v3697, %v3698
        %v3700 = vrot.slane %v3699, 2
        %v3701 = vmax.f32 %v3699, %v3700
        %v3702 = vrot.slane %v3701, 1
        %v3703 = vmax.f32 %v3701, %v3702
        %v3704 = vsel %vm610, %v2823, -inf
        %v3705 = vrot.slane %v3704, 4
        %v3706 = vmax.f32 %v3704, %v3705
        %v3707 = vrot.slane %v3706, 2
        %v3708 = vmax.f32 %v3706, %v3707
        %v3709 = vrot.slane %v3708, 1
        %v3710 = vmax.f32 %v3708, %v3709
        %v3711 = vsel %vm610, %v2825, -inf
        %v3712 = vrot.slane %v3711, 4
        %v3713 = vmax.f32 %v3711, %v3712
        %v3714 = vrot.slane %v3713, 2
        %v3715 = vmax.f32 %v3713, %v3714
        %v3716 = vrot.slane %v3715, 1
        %v3717 = vmax.f32 %v3715, %v3716
        %v3718 = vsel %vm610, %v2833, -inf
        %v3719 = vrot.slane %v3718, 4
        %v3720 = vmax.f32 %v3718, %v3719
        %v3721 = vrot.slane %v3720, 2
        %v3722 = vmax.f32 %v3720, %v3721
        %v3723 = vrot.slane %v3722, 1
        %v3724 = vmax.f32 %v3722, %v3723
        %v3725 = vsel %vm610, %v2841, -inf
        %v3726 = vrot.slane %v3725, 4
        %v3727 = vmax.f32 %v3725, %v3726
        %v3728 = vrot.slane %v3727, 2
        %v3729 = vmax.f32 %v3727, %v3728
        %v3730 = vrot.slane %v3729, 1
        %v3731 = vmax.f32 %v3729, %v3730
        %v3732 = vsel %vm610, %v2840, -inf
        %v3733 = vrot.slane %v3732, 4
        %v3734 = vmax.f32 %v3732, %v3733
        %v3735 = vrot.slane %v3734, 2
        %v3736 = vmax.f32 %v3734, %v3735
        %v3737 = vrot.slane %v3736, 1
        %v3738 = vmax.f32 %v3736, %v3737
        %v3739 = vsel %vm610, %v2842, -inf
        %v3740 = vrot.slane %v3739, 4
        %v3741 = vmax.f32 %v3739, %v3740
        %v3742 = vrot.slane %v3741, 2
        %v3743 = vmax.f32 %v3741, %v3742
        %v3744 = vrot.slane %v3743, 1
        %v3745 = vmax.f32 %v3743, %v3744
        %v3746 = vsel %vm610, %v2850, -inf
        %v3747 = vrot.slane %v3746, 4
        %v3748 = vmax.f32 %v3746, %v3747
        %v3749 = vrot.slane %v3748, 2
        %v3750 = vmax.f32 %v3748, %v3749
        %v3751 = vrot.slane %v3750, 1
        %v3752 = vmax.f32 %v3750, %v3751
        %v3753 = vsel %vm610, %v2858, -inf
        %v3754 = vrot.slane %v3753, 4
        %v3755 = vmax.f32 %v3753, %v3754
        %v3756 = vrot.slane %v3755, 2
        %v3757 = vmax.f32 %v3755, %v3756
        %v3758 = vrot.slane %v3757, 1
        %v3759 = vmax.f32 %v3757, %v3758
        %v3760 = vsel %vm610, %v2857, -inf
        %v3761 = vrot.slane %v3760, 4
        %v3762 = vmax.f32 %v3760, %v3761
        %v3763 = vrot.slane %v3762, 2
        %v3764 = vmax.f32 %v3762, %v3763
        %v3765 = vrot.slane %v3764, 1
        %v3766 = vmax.f32 %v3764, %v3765
        %v3767 = vsel %vm610, %v2859, -inf
        %v3768 = vrot.slane %v3767, 4
        %v3769 = vmax.f32 %v3767, %v3768
        %v3770 = vrot.slane %v3769, 2
        %v3771 = vmax.f32 %v3769, %v3770
        %v3772 = vrot.slane %v3771, 1
        %v3773 = vmax.f32 %v3771, %v3772
        %v3774 = vsel %vm610, %v2867, -inf
        %v3775 = vrot.slane %v3774, 4
        %v3776 = vmax.f32 %v3774, %v3775
        %v3777 = vrot.slane %v3776, 2
        %v3778 = vmax.f32 %v3776, %v3777
        %v3779 = vrot.slane %v3778, 1
        %v3780 = vmax.f32 %v3778, %v3779
        %v3781 = vsel %vm610, %v2875, -inf
        %v3782 = vrot.slane %v3781, 4
        %v3783 = vmax.f32 %v3781, %v3782
        %v3784 = vrot.slane %v3783, 2
        %v3785 = vmax.f32 %v3783, %v3784
        %v3786 = vrot.slane %v3785, 1
        %v3787 = vmax.f32 %v3785, %v3786
        %v3788 = vsel %vm610, %v2874, -inf
        %v3789 = vrot.slane %v3788, 4
        %v3790 = vmax.f32 %v3788, %v3789
        %v3791 = vrot.slane %v3790, 2
        %v3792 = vmax.f32 %v3790, %v3791
        %v3793 = vrot.slane %v3792, 1
        %v3794 = vmax.f32 %v3792, %v3793
        %v3795 = vsel %vm610, %v2876, -inf
        %v3796 = vrot.slane %v3795, 4
        %v3797 = vmax.f32 %v3795, %v3796
        %v3798 = vrot.slane %v3797, 2
        %v3799 = vmax.f32 %v3797, %v3798
        %v3800 = vrot.slane %v3799, 1
        %v3801 = vmax.f32 %v3799, %v3800
        %v3802 = vsel %vm610, %v2884, -inf
        %v3803 = vrot.slane %v3802, 4
        %v3804 = vmax.f32 %v3802, %v3803
        %v3805 = vrot.slane %v3804, 2
        %v3806 = vmax.f32 %v3804, %v3805
        %v3807 = vrot.slane %v3806, 1
        %v3808 = vmax.f32 %v3806, %v3807
        %v3809 = vsel %vm610, %v2892, -inf
        %v3810 = vrot.slane %v3809, 4
        %v3811 = vmax.f32 %v3809, %v3810
        %v3812 = vrot.slane %v3811, 2
        %v3813 = vmax.f32 %v3811, %v3812
        %v3814 = vrot.slane %v3813, 1
        %v3815 = vmax.f32 %v3813, %v3814
        %v3816 = vsel %vm610, %v2891, -inf
        %v3817 = vrot.slane %v3816, 4
        %v3818 = vmax.f32 %v3816, %v3817
        %v3819 = vrot.slane %v3818, 2
        %v3820 = vmax.f32 %v3818, %v3819
        %v3821 = vrot.slane %v3820, 1
        %v3822 = vmax.f32 %v3820, %v3821
        %v3823 = vsel %vm610, %v2893, -inf
        %v3824 = vrot.slane %v3823, 4
        %v3825 = vmax.f32 %v3823, %v3824
        %v3826 = vrot.slane %v3825, 2
        %v3827 = vmax.f32 %v3825, %v3826
        %v3828 = vrot.slane %v3827, 1
        %v3829 = vmax.f32 %v3827, %v3828
        %v3830 = vsel %vm610, %v2901, -inf
        %v3831 = vrot.slane %v3830, 4
        %v3832 = vmax.f32 %v3830, %v3831
        %v3833 = vrot.slane %v3832, 2
        %v3834 = vmax.f32 %v3832, %v3833
        %v3835 = vrot.slane %v3834, 1
        %v3836 = vmax.f32 %v3834, %v3835
        %v3837 = vsel %vm610, %v2909, -inf
        %v3838 = vrot.slane %v3837, 4
        %v3839 = vmax.f32 %v3837, %v3838
        %v3840 = vrot.slane %v3839, 2
        %v3841 = vmax.f32 %v3839, %v3840
        %v3842 = vrot.slane %v3841, 1
        %v3843 = vmax.f32 %v3841, %v3842
        %v3844 = vsel %vm610, %v2908, -inf
        %v3845 = vrot.slane %v3844, 4
        %v3846 = vmax.f32 %v3844, %v3845
        %v3847 = vrot.slane %v3846, 2
        %v3848 = vmax.f32 %v3846, %v3847
        %v3849 = vrot.slane %v3848, 1
        %v3850 = vmax.f32 %v3848, %v3849
        %v3851 = vsel %vm610, %v2910, -inf
        %v3852 = vrot.slane %v3851, 4
        %v3853 = vmax.f32 %v3851, %v3852
        %v3854 = vrot.slane %v3853, 2
        %v3855 = vmax.f32 %v3853, %v3854
        %v3856 = vrot.slane %v3855, 1
        %v3857 = vmax.f32 %v3855, %v3856
        %v3858 = vsel %vm610, %v2918, -inf
        %v3859 = vrot.slane %v3858, 4
        %v3860 = vmax.f32 %v3858, %v3859
        %v3861 = vrot.slane %v3860, 2
        %v3862 = vmax.f32 %v3860, %v3861
        %v3863 = vrot.slane %v3862, 1
        %v3864 = vmax.f32 %v3862, %v3863
        %v3865 = vsel %vm610, %v2926, -inf
        %v3866 = vrot.slane %v3865, 4
        %v3867 = vmax.f32 %v3865, %v3866
        %v3868 = vrot.slane %v3867, 2
        %v3869 = vmax.f32 %v3867, %v3868
        %v3870 = vrot.slane %v3869, 1
        %v3871 = vmax.f32 %v3869, %v3870
        %v3872 = vsel %vm610, %v2925, -inf
        %v3873 = vrot.slane %v3872, 4
        %v3874 = vmax.f32 %v3872, %v3873
        %v3875 = vrot.slane %v3874, 2
        %v3876 = vmax.f32 %v3874, %v3875
        %v3877 = vrot.slane %v3876, 1
        %v3878 = vmax.f32 %v3876, %v3877
        %v3879 = vsel %vm610, %v2927, -inf
        %v3880 = vrot.slane %v3879, 4
        %v3881 = vmax.f32 %v3879, %v3880
        %v3882 = vrot.slane %v3881, 2
        %v3883 = vmax.f32 %v3881, %v3882
        %v3884 = vrot.slane %v3883, 1
        %v3885 = vmax.f32 %v3883, %v3884
        %v3886 = vsel %vm610, %v2935, -inf
        %v3887 = vrot.slane %v3886, 4
        %v3888 = vmax.f32 %v3886, %v3887
        %v3889 = vrot.slane %v3888, 2
        %v3890 = vmax.f32 %v3888, %v3889
        %v3891 = vrot.slane %v3890, 1
        %v3892 = vmax.f32 %v3890, %v3891
        %v3893 = vsel %vm610, %v2943, -inf
        %v3894 = vrot.slane %v3893, 4
        %v3895 = vmax.f32 %v3893, %v3894
        %v3896 = vrot.slane %v3895, 2
        %v3897 = vmax.f32 %v3895, %v3896
        %v3898 = vrot.slane %v3897, 1
        %v3899 = vmax.f32 %v3897, %v3898
        %v3900 = vsel %vm610, %v2942, -inf
        %v3901 = vrot.slane %v3900, 4
        %v3902 = vmax.f32 %v3900, %v3901
        %v3903 = vrot.slane %v3902, 2
        %v3904 = vmax.f32 %v3902, %v3903
        %v3905 = vrot.slane %v3904, 1
        %v3906 = vmax.f32 %v3904, %v3905
        %v3907 = vsel %vm610, %v2944, -inf
        %v3908 = vrot.slane %v3907, 4
        %v3909 = vmax.f32 %v3907, %v3908
        %v3910 = vrot.slane %v3909, 2
        %v3911 = vmax.f32 %v3909, %v3910
        %v3912 = vrot.slane %v3911, 1
        %v3913 = vmax.f32 %v3911, %v3912
        %v3914 = vsel %vm610, %v2952, -inf
        %v3915 = vrot.slane %v3914, 4
        %v3916 = vmax.f32 %v3914, %v3915
        %v3917 = vrot.slane %v3916, 2
        %v3918 = vmax.f32 %v3916, %v3917
        %v3919 = vrot.slane %v3918, 1
        %v3920 = vmax.f32 %v3918, %v3919
        %v3921 = vsel %vm610, %v2960, -inf
        %v3922 = vrot.slane %v3921, 4
        %v3923 = vmax.f32 %v3921, %v3922
        %v3924 = vrot.slane %v3923, 2
        %v3925 = vmax.f32 %v3923, %v3924
        %v3926 = vrot.slane %v3925, 1
        %v3927 = vmax.f32 %v3925, %v3926
        %v3928 = vsel %vm610, %v2959, -inf
        %v3929 = vrot.slane %v3928, 4
        %v3930 = vmax.f32 %v3928, %v3929
        %v3931 = vrot.slane %v3930, 2
        %v3932 = vmax.f32 %v3930, %v3931
        %v3933 = vrot.slane %v3932, 1
        %v3934 = vmax.f32 %v3932, %v3933
        %v3935 = vsel %vm610, %v2961, -inf
        %v3936 = vrot.slane %v3935, 4
        %v3937 = vmax.f32 %v3935, %v3936
        %v3938 = vrot.slane %v3937, 2
        %v3939 = vmax.f32 %v3937, %v3938
        %v3940 = vrot.slane %v3939, 1
        %v3941 = vmax.f32 %v3939, %v3940
        %v3942 = vsel %vm610, %v2969, -inf
        %v3943 = vrot.slane %v3942, 4
        %v3944 = vmax.f32 %v3942, %v3943
        %v3945 = vrot.slane %v3944, 2
        %v3946 = vmax.f32 %v3944, %v3945
        %v3947 = vrot.slane %v3946, 1
        %v3948 = vmax.f32 %v3946, %v3947
        %v3949 = vsel %vm610, %v2977, -inf
        %v3950 = vrot.slane %v3949, 4
        %v3951 = vmax.f32 %v3949, %v3950
        %v3952 = vrot.slane %v3951, 2
        %v3953 = vmax.f32 %v3951, %v3952
        %v3954 = vrot.slane %v3953, 1
        %v3955 = vmax.f32 %v3953, %v3954
        %v3956 = vsel %vm610, %v2976, -inf
        %v3957 = vrot.slane %v3956, 4
        %v3958 = vmax.f32 %v3956, %v3957
        %v3959 = vrot.slane %v3958, 2
        %v3960 = vmax.f32 %v3958, %v3959
        %v3961 = vrot.slane %v3960, 1
        %v3962 = vmax.f32 %v3960, %v3961
        %v3963 = vsel %vm610, %v2978, -inf
        %v3964 = vrot.slane %v3963, 4
        %v3965 = vmax.f32 %v3963, %v3964
        %v3966 = vrot.slane %v3965, 2
        %v3967 = vmax.f32 %v3965, %v3966
        %v3968 = vrot.slane %v3967, 1
        %v3969 = vmax.f32 %v3967, %v3968
        %v3970 = vsel %vm610, %v2986, -inf
        %v3971 = vrot.slane %v3970, 4
        %v3972 = vmax.f32 %v3970, %v3971
        %v3973 = vrot.slane %v3972, 2
        %v3974 = vmax.f32 %v3972, %v3973
        %v3975 = vrot.slane %v3974, 1
        %v3976 = vmax.f32 %v3974, %v3975
        %v3977 = vsel %vm610, %v2994, -inf
        %v3978 = vrot.slane %v3977, 4
        %v3979 = vmax.f32 %v3977, %v3978
        %v3980 = vrot.slane %v3979, 2
        %v3981 = vmax.f32 %v3979, %v3980
        %v3982 = vrot.slane %v3981, 1
        %v3983 = vmax.f32 %v3981, %v3982
        %v3984 = vsel %vm610, %v2993, -inf
        %v3985 = vrot.slane %v3984, 4
        %v3986 = vmax.f32 %v3984, %v3985
        %v3987 = vrot.slane %v3986, 2
        %v3988 = vmax.f32 %v3986, %v3987
        %v3989 = vrot.slane %v3988, 1
        %v3990 = vmax.f32 %v3988, %v3989
        %v3991 = vsel %vm610, %v2995, -inf
        %v3992 = vrot.slane %v3991, 4
        %v3993 = vmax.f32 %v3991, %v3992
        %v3994 = vrot.slane %v3993, 2
        %v3995 = vmax.f32 %v3993, %v3994
        %v3996 = vrot.slane %v3995, 1
        %v3997 = vmax.f32 %v3995, %v3996
        %v3998 = vsel %vm610, %v3003, -inf
        %v3999 = vrot.slane %v3998, 4
        %v4000 = vmax.f32 %v3998, %v3999
        %v4001 = vrot.slane %v4000, 2
        %v4002 = vmax.f32 %v4000, %v4001
        %v4003 = vrot.slane %v4002, 1
        %v4004 = vmax.f32 %v4002, %v4003
        %v4005 = vsel %vm610, %v3011, -inf
        %v4006 = vrot.slane %v4005, 4
        %v4007 = vmax.f32 %v4005, %v4006
        %v4008 = vrot.slane %v4007, 2
        %v4009 = vmax.f32 %v4007, %v4008
        %v4010 = vrot.slane %v4009, 1
        %v4011 = vmax.f32 %v4009, %v4010
        %v4012 = vsel %vm610, %v3010, -inf
        %v4013 = vrot.slane %v4012, 4
        %v4014 = vmax.f32 %v4012, %v4013
        %v4015 = vrot.slane %v4014, 2
        %v4016 = vmax.f32 %v4014, %v4015
        %v4017 = vrot.slane %v4016, 1
        %v4018 = vmax.f32 %v4016, %v4017
        %v4019 = vsel %vm610, %v3012, -inf
        %v4020 = vrot.slane %v4019, 4
        %v4021 = vmax.f32 %v4019, %v4020
        %v4022 = vrot.slane %v4021, 2
        %v4023 = vmax.f32 %v4021, %v4022
        %v4024 = vrot.slane %v4023, 1
        %v4025 = vmax.f32 %v4023, %v4024
        %v4026 = vsel %vm610, %v3020, -inf
        %v4027 = vrot.slane %v4026, 4
        %v4028 = vmax.f32 %v4026, %v4027
        %v4029 = vrot.slane %v4028, 2
        %v4030 = vmax.f32 %v4028, %v4029
        %v4031 = vrot.slane %v4030, 1
        %v4032 = vmax.f32 %v4030, %v4031
        %v4033 = vsel %vm610, %v3028, -inf
        %v4034 = vrot.slane %v4033, 4
        %v4035 = vmax.f32 %v4033, %v4034
        %v4036 = vrot.slane %v4035, 2
        %v4037 = vmax.f32 %v4035, %v4036
        %v4038 = vrot.slane %v4037, 1
        %v4039 = vmax.f32 %v4037, %v4038
        %v4040 = vsel %vm610, %v3027, -inf
        %v4041 = vrot.slane %v4040, 4
        %v4042 = vmax.f32 %v4040, %v4041
        %v4043 = vrot.slane %v4042, 2
        %v4044 = vmax.f32 %v4042, %v4043
        %v4045 = vrot.slane %v4044, 1
        %v4046 = vmax.f32 %v4044, %v4045
        %v4047 = vsel %vm610, %v3029, -inf
        %v4048 = vrot.slane %v4047, 4
        %v4049 = vmax.f32 %v4047, %v4048
        %v4050 = vrot.slane %v4049, 2
        %v4051 = vmax.f32 %v4049, %v4050
        %v4052 = vrot.slane %v4051, 1
        %v4053 = vmax.f32 %v4051, %v4052
        %v4054 = vsel %vm607, %v3164, -inf
        %v4055 = vsel %vm607, %v3220, -inf
        %v4056 = vmax.f32 %v4054, %v4055
        %v4057 = vsel %vm607, %v3171, -inf
        %v4058 = vsel %vm607, %v3227, -inf
        %v4059 = vmax.f32 %v4057, %v4058
        %v4060 = vsel %vm607, %v3178, -inf
        %v4061 = vsel %vm607, %v3234, -inf
        %v4062 = vmax.f32 %v4060, %v4061
        %v4063 = vsel %vm607, %v3185, -inf
        %v4064 = vsel %vm607, %v3241, -inf
        %v4065 = vmax.f32 %v4063, %v4064
        %v4066 = vsel %vm607, %v3192, -inf
        %v4067 = vsel %vm607, %v3248, -inf
        %v4068 = vmax.f32 %v4066, %v4067
        %v4069 = vsel %vm607, %v3199, -inf
        %v4070 = vsel %vm607, %v3255, -inf
        %v4071 = vmax.f32 %v4069, %v4070
        %v4072 = vsel %vm607, %v3206, -inf
        %v4073 = vsel %vm607, %v3262, -inf
        %v4074 = vmax.f32 %v4072, %v4073
        %v4075 = vsel %vm607, %v3213, -inf
        %v4076 = vsel %vm607, %v3269, -inf
        %v4077 = vmax.f32 %v4075, %v4076
        %v4078 = vsel %vm607, %v3276, -inf
        %v4079 = vsel %vm607, %v3332, -inf
        %v4080 = vmax.f32 %v4078, %v4079
        %v4081 = vsel %vm607, %v3283, -inf
        %v4082 = vsel %vm607, %v3339, -inf
        %v4083 = vmax.f32 %v4081, %v4082
        %v4084 = vsel %vm607, %v3290, -inf
        %v4085 = vsel %vm607, %v3346, -inf
        %v4086 = vmax.f32 %v4084, %v4085
        %v4087 = vsel %vm607, %v3297, -inf
        %v4088 = vsel %vm607, %v3353, -inf
        %v4089 = vmax.f32 %v4087, %v4088
        %v4090 = vsel %vm607, %v3304, -inf
        %v4091 = vsel %vm607, %v3360, -inf
        %v4092 = vmax.f32 %v4090, %v4091
        %v4093 = vsel %vm607, %v3311, -inf
        %v4094 = vsel %vm607, %v3367, -inf
        %v4095 = vmax.f32 %v4093, %v4094
        %v4096 = vsel %vm607, %v3318, -inf
        %v4097 = vsel %vm607, %v3374, -inf
        %v4098 = vmax.f32 %v4096, %v4097
        %v4099 = vsel %vm607, %v3325, -inf
        %v4100 = vsel %vm607, %v3381, -inf
        %v4101 = vmax.f32 %v4099, %v4100
        %v4102 = vsel %vm607, %v3388, -inf
        %v4103 = vsel %vm607, %v3444, -inf
        %v4104 = vmax.f32 %v4102, %v4103
        %v4105 = vsel %vm607, %v3395, -inf
        %v4106 = vsel %vm607, %v3451, -inf
        %v4107 = vmax.f32 %v4105, %v4106
        %v4108 = vsel %vm607, %v3402, -inf
        %v4109 = vsel %vm607, %v3458, -inf
        %v4110 = vmax.f32 %v4108, %v4109
        %v4111 = vsel %vm607, %v3409, -inf
        %v4112 = vsel %vm607, %v3465, -inf
        %v4113 = vmax.f32 %v4111, %v4112
        %v4114 = vsel %vm607, %v3416, -inf
        %v4115 = vsel %vm607, %v3472, -inf
        %v4116 = vmax.f32 %v4114, %v4115
        %v4117 = vsel %vm607, %v3423, -inf
        %v4118 = vsel %vm607, %v3479, -inf
        %v4119 = vmax.f32 %v4117, %v4118
        %v4120 = vsel %vm607, %v3430, -inf
        %v4121 = vsel %vm607, %v3486, -inf
        %v4122 = vmax.f32 %v4120, %v4121
        %v4123 = vsel %vm607, %v3437, -inf
        %v4124 = vsel %vm607, %v3493, -inf
        %v4125 = vmax.f32 %v4123, %v4124
        %v4126 = vsel %vm607, %v3500, -inf
        %v4127 = vsel %vm607, %v3556, -inf
        %v4128 = vmax.f32 %v4126, %v4127
        %v4129 = vsel %vm607, %v3507, -inf
        %v4130 = vsel %vm607, %v3563, -inf
        %v4131 = vmax.f32 %v4129, %v4130
        %v4132 = vsel %vm607, %v3514, -inf
        %v4133 = vsel %vm607, %v3570, -inf
        %v4134 = vmax.f32 %v4132, %v4133
        %v4135 = vsel %vm607, %v3521, -inf
        %v4136 = vsel %vm607, %v3577, -inf
        %v4137 = vmax.f32 %v4135, %v4136
        %v4138 = vsel %vm607, %v3528, -inf
        %v4139 = vsel %vm607, %v3584, -inf
        %v4140 = vmax.f32 %v4138, %v4139
        %v4141 = vsel %vm607, %v3535, -inf
        %v4142 = vsel %vm607, %v3591, -inf
        %v4143 = vmax.f32 %v4141, %v4142
        %v4144 = vsel %vm607, %v3542, -inf
        %v4145 = vsel %vm607, %v3598, -inf
        %v4146 = vmax.f32 %v4144, %v4145
        %v4147 = vsel %vm607, %v3549, -inf
        %v4148 = vsel %vm607, %v3605, -inf
        %v4149 = vmax.f32 %v4147, %v4148
        %v4150 = vsel %vm607, %v3612, -inf
        %v4151 = vsel %vm607, %v3668, -inf
        %v4152 = vmax.f32 %v4150, %v4151
        %v4153 = vsel %vm607, %v3619, -inf
        %v4154 = vsel %vm607, %v3675, -inf
        %v4155 = vmax.f32 %v4153, %v4154
        %v4156 = vsel %vm607, %v3626, -inf
        %v4157 = vsel %vm607, %v3682, -inf
        %v4158 = vmax.f32 %v4156, %v4157
        %v4159 = vsel %vm607, %v3633, -inf
        %v4160 = vsel %vm607, %v3689, -inf
        %v4161 = vmax.f32 %v4159, %v4160
        %v4162 = vsel %vm607, %v3640, -inf
        %v4163 = vsel %vm607, %v3696, -inf
        %v4164 = vmax.f32 %v4162, %v4163
        %v4165 = vsel %vm607, %v3647, -inf
        %v4166 = vsel %vm607, %v3703, -inf
        %v4167 = vmax.f32 %v4165, %v4166
        %v4168 = vsel %vm607, %v3654, -inf
        %v4169 = vsel %vm607, %v3710, -inf
        %v4170 = vmax.f32 %v4168, %v4169
        %v4171 = vsel %vm607, %v3661, -inf
        %v4172 = vsel %vm607, %v3717, -inf
        %v4173 = vmax.f32 %v4171, %v4172
        %v4174 = vsel %vm607, %v3724, -inf
        %v4175 = vsel %vm607, %v3780, -inf
        %v4176 = vmax.f32 %v4174, %v4175
        %v4177 = vsel %vm607, %v3731, -inf
        %v4178 = vsel %vm607, %v3787, -inf
        %v4179 = vmax.f32 %v4177, %v4178
        %v4180 = vsel %vm607, %v3738, -inf
        %v4181 = vsel %vm607, %v3794, -inf
        %v4182 = vmax.f32 %v4180, %v4181
        %v4183 = vsel %vm607, %v3745, -inf
        %v4184 = vsel %vm607, %v3801, -inf
        %v4185 = vmax.f32 %v4183, %v4184
        %v4186 = vsel %vm607, %v3752, -inf
        %v4187 = vsel %vm607, %v3808, -inf
        %v4188 = vmax.f32 %v4186, %v4187
        %v4189 = vsel %vm607, %v3759, -inf
        %v4190 = vsel %vm607, %v3815, -inf
        %v4191 = vmax.f32 %v4189, %v4190
        %v4192 = vsel %vm607, %v3766, -inf
        %v4193 = vsel %vm607, %v3822, -inf
        %v4194 = vmax.f32 %v4192, %v4193
        %v4195 = vsel %vm607, %v3773, -inf
        %v4196 = vsel %vm607, %v3829, -inf
        %v4197 = vmax.f32 %v4195, %v4196
        %v4198 = vsel %vm607, %v3836, -inf
        %v4199 = vsel %vm607, %v3892, -inf
        %v4200 = vmax.f32 %v4198, %v4199
        %v4201 = vsel %vm607, %v3843, -inf
        %v4202 = vsel %vm607, %v3899, -inf
        %v4203 = vmax.f32 %v4201, %v4202
        %v4204 = vsel %vm607, %v3850, -inf
        %v4205 = vsel %vm607, %v3906, -inf
        %v4206 = vmax.f32 %v4204, %v4205
        %v4207 = vsel %vm607, %v3857, -inf
        %v4208 = vsel %vm607, %v3913, -inf
        %v4209 = vmax.f32 %v4207, %v4208
        %v4210 = vsel %vm607, %v3864, -inf
        %v4211 = vsel %vm607, %v3920, -inf
        %v4212 = vmax.f32 %v4210, %v4211
        %v4213 = vsel %vm607, %v3871, -inf
        %v4214 = vsel %vm607, %v3927, -inf
        %v4215 = vmax.f32 %v4213, %v4214
        %v4216 = vsel %vm607, %v3878, -inf
        %v4217 = vsel %vm607, %v3934, -inf
        %v4218 = vmax.f32 %v4216, %v4217
        %v4219 = vsel %vm607, %v3885, -inf
        %v4220 = vsel %vm607, %v3941, -inf
        %v4221 = vmax.f32 %v4219, %v4220
        %v4222 = vsel %vm607, %v3948, -inf
        %v4223 = vsel %vm607, %v4004, -inf
        %v4224 = vmax.f32 %v4222, %v4223
        %v4225 = vsel %vm607, %v3955, -inf
        %v4226 = vsel %vm607, %v4011, -inf
        %v4227 = vmax.f32 %v4225, %v4226
        %v4228 = vsel %vm607, %v3962, -inf
        %v4229 = vsel %vm607, %v4018, -inf
        %v4230 = vmax.f32 %v4228, %v4229
        %v4231 = vsel %vm607, %v3969, -inf
        %v4232 = vsel %vm607, %v4025, -inf
        %v4233 = vmax.f32 %v4231, %v4232
        %v4234 = vsel %vm607, %v3976, -inf
        %v4235 = vsel %vm607, %v4032, -inf
        %v4236 = vmax.f32 %v4234, %v4235
        %v4237 = vsel %vm607, %v3983, -inf
        %v4238 = vsel %vm607, %v4039, -inf
        %v4239 = vmax.f32 %v4237, %v4238
        %v4240 = vsel %vm607, %v3990, -inf
        %v4241 = vsel %vm607, %v4046, -inf
        %v4242 = vmax.f32 %v4240, %v4241
        %v4243 = vsel %vm607, %v3997, -inf
        %v4244 = vsel %vm607, %v4053, -inf
        %v4245 = vmax.f32 %v4243, %v4244
        %vm4310 = vcmask 1041409
        %v4311 = vsel %vm4310, %v4059, %v4056
        %vm4312 = vcmask 1042434
        %v4313 = vsel %vm4312, %v4062, %v4311
        %vm4314 = vcmask 1043459
        %v4315 = vsel %vm4314, %v4065, %v4313
        %vm4316 = vcmask 1044484
        %v4317 = vsel %vm4316, %v4068, %v4315
        %vm4318 = vcmask 1045509
        %v4319 = vsel %vm4318, %v4071, %v4317
        %vm4320 = vcmask 1046534
        %v4321 = vsel %vm4320, %v4074, %v4319
        %vm4322 = vcmask 1047559
        %v4323 = vsel %vm4322, %v4077, %v4321
        %v4324 = vsel %vm4310, %v4083, %v4080
        %v4325 = vsel %vm4312, %v4086, %v4324
        %v4326 = vsel %vm4314, %v4089, %v4325
        %v4327 = vsel %vm4316, %v4092, %v4326
        %v4328 = vsel %vm4318, %v4095, %v4327
        %v4329 = vsel %vm4320, %v4098, %v4328
        %v4330 = vsel %vm4322, %v4101, %v4329
        %v4331 = vsel %vm4310, %v4107, %v4104
        %v4332 = vsel %vm4312, %v4110, %v4331
        %v4333 = vsel %vm4314, %v4113, %v4332
        %v4334 = vsel %vm4316, %v4116, %v4333
        %v4335 = vsel %vm4318, %v4119, %v4334
        %v4336 = vsel %vm4320, %v4122, %v4335
        %v4337 = vsel %vm4322, %v4125, %v4336
        %v4338 = vsel %vm4310, %v4131, %v4128
        %v4339 = vsel %vm4312, %v4134, %v4338
        %v4340 = vsel %vm4314, %v4137, %v4339
        %v4341 = vsel %vm4316, %v4140, %v4340
        %v4342 = vsel %vm4318, %v4143, %v4341
        %v4343 = vsel %vm4320, %v4146, %v4342
        %v4344 = vsel %vm4322, %v4149, %v4343
        %v4345 = vsel %vm4310, %v4155, %v4152
        %v4346 = vsel %vm4312, %v4158, %v4345
        %v4347 = vsel %vm4314, %v4161, %v4346
        %v4348 = vsel %vm4316, %v4164, %v4347
        %v4349 = vsel %vm4318, %v4167, %v4348
        %v4350 = vsel %vm4320, %v4170, %v4349
        %v4351 = vsel %vm4322, %v4173, %v4350
        %v4352 = vsel %vm4310, %v4179, %v4176
        %v4353 = vsel %vm4312, %v4182, %v4352
        %v4354 = vsel %vm4314, %v4185, %v4353
        %v4355 = vsel %vm4316, %v4188, %v4354
        %v4356 = vsel %vm4318, %v4191, %v4355
        %v4357 = vsel %vm4320, %v4194, %v4356
        %v4358 = vsel %vm4322, %v4197, %v4357
        %v4359 = vsel %vm4310, %v4203, %v4200
        %v4360 = vsel %vm4312, %v4206, %v4359
        %v4361 = vsel %vm4314, %v4209, %v4360
        %v4362 = vsel %vm4316, %v4212, %v4361
        %v4363 = vsel %vm4318, %v4215, %v4362
        %v4364 = vsel %vm4320, %v4218, %v4363
        %v4365 = vsel %vm4322, %v4221, %v4364
        %v4366 = vsel %vm4310, %v4227, %v4224
        %v4367 = vsel %vm4312, %v4230, %v4366
        %v4368 = vsel %vm4314, %v4233, %v4367
        %v4369 = vsel %vm4316, %v4236, %v4368
        %v4370 = vsel %vm4318, %v4239, %v4369
        %v4371 = vsel %vm4320, %v4242, %v4370
        %v4372 = vsel %vm4322, %v4245, %v4371
        %4381 = vst.msk [vmem:[%s217] sm:$0xff] %vm607, %v4323
        %4382 = vst.msk [vmem:[%s217 + $0x8] sm:$0xff] %vm607, %v4330
        %4383 = vst.msk [vmem:[%s217 + $0x10] sm:$0xff] %vm607, %v4337
        %4384 = vst.msk [vmem:[%s217 + $0x18] sm:$0xff] %vm607, %v4344
        %4385 = vst.msk [vmem:[%s217 + $0x20] sm:$0xff] %vm607, %v4351
        %4386 = vst.msk [vmem:[%s217 + $0x28] sm:$0xff] %vm607, %v4358
        %4387 = vst.msk [vmem:[%s217 + $0x30] sm:$0xff] %vm607, %v4365
        %4388 = vst.msk [vmem:[%s217 + $0x38] sm:$0xff] %vm607, %v4372
        %s4389 = sand.u32 %s137, 1
        %s4390 = scalar_lea.sflag [#allocation5], %s4389
        %s4391 = sand.u32 %s137, 1
        %s4392 = smul.addr %s4391, 64
        %s4393 = scalar_lea.vmem [#allocation4], %s4392
        // Predicated region
        $region41: #{tpu_custom_call.1} parent=39 // pred_check
          %p4394 = pneg %p147
        $region42: #{tpu_custom_call.1} parent=39 // pred_check_branch
          %4396 = sbr.rel (%p4394) target = $region44
        $region43: #{tpu_custom_call.1} parent=39 // pred_region
          %s4398 = ssub.s32 1024, 1024
          %4399 = vsyncadd %s4390, %s4398
          %s4400 = smul.addr %s19, 8
          %s4401 = smul.addr %s4400, 128
          %s4402 = scalar_lea.hbm %s5, %s4401
          %s4403 = sshll.u32 %s4393, 4
          %s4404 = int_to_ptr.vmem [resolvable:$true] %s4403
          %4409 = dma.vmem_to_hbm [thread:$0]  %s4404, 1024, %s4402, %s4390, 128, 128, 8
        $region44: #{tpu_custom_call.1} parent=39 // pred_fallthru
          _
      $region40: #{tpu_custom_call.1} parent=5 // pred_fallthru
        _
      %p4410 = scmp.le.s32.totalorder 2, %s14
      // Predicated region
      $region45: #{tpu_custom_call.1} parent=5 // pred_check
        %p4411 = pneg %p4410
      $region46: #{tpu_custom_call.1} parent=5 // pred_check_branch
        %4413 = sbr.rel (%p4411) target = $region48
      $region47: #{tpu_custom_call.1} parent=5 // pred_region
        %s4414 = ssub.s32 %s14, 2
        // Predicated region
        $region49: #{tpu_custom_call.1} parent=47 // pred_check
          %p4415 = pneg %p153
        $region50: #{tpu_custom_call.1} parent=47 // pred_check_branch
          %4417 = sbr.rel (%p4415) target = $region52
        $region51: #{tpu_custom_call.1} parent=47 // pred_region
          %s4418 = sand.u32 %s138, 1
          %s4419 = scalar_lea.sflag [#allocation5], %s4418
          %s4420 = sand.u32 %s138, 1
          %s4421 = smul.addr %s4420, 64
          %s4422 = scalar_lea.vmem [#allocation4], %s4421
          %4423 = dma.done %s4419, 1024
        $region52: #{tpu_custom_call.1} parent=47 // pred_fallthru
          _
      $region48: #{tpu_custom_call.1} parent=5 // pred_fallthru
        _
    $region6: #{tpu_custom_call.1} parent=1 // loop_footer
      %s18 = sadd.s32 1, %s14
    $region7: #{tpu_custom_call.1} parent=1 // loop_footer_branch
      %13 = sbr.rel target = $region3
    $region8: #{tpu_custom_call.1} parent=1 // loop_exit
      _
    %4424 = vsyncpa [#allocation5], 1
    %s4425 = scalar_lea.sflag [#allocation5], 1
    %4426 = vsyncpa %s4425, 1

</llo_original>
